<compile_context>
chip_gen: v6e
topology: v6e:2x2x1
jax: 0.10.0
libtpu: 0.0.40
codegen_flags: <defaults>
</compile_context>

<pallas_src>
import math

import jax
import jax.numpy as jnp
from jax.experimental import pallas as pl
from jax.experimental.pallas import tpu as pltpu

# ----------------------------------------------------------------------------
# Tiny synthetic config (stands in for pythia_7b's GPTNeoXConfig)
# ----------------------------------------------------------------------------
B, S = 2, 8            # batch, sequence
H = 32                 # hidden size
NUM_HEADS = 4
HEAD_DIM = H // NUM_HEADS
VOCAB = 64
NUM_LAYERS = 2         # args.num_layers (full_mode -> layers [0, NUM_LAYERS))
ROTARY_PCT = 0.25      # GPT-NeoX rotary_pct
ROT = int(HEAD_DIM * ROTARY_PCT)   # rotary dims per head
LN_EPS = 1e-5
FFN = 4 * H

_VMEM = pltpu.MemorySpace.VMEM
_SMEM = pltpu.MemorySpace.SMEM


def _layernorm(x, g, b):
    # LN statistics stay in f32 even with bf16 weights/activations.
    mu = jnp.mean(x, axis=-1, keepdims=True)
    var = jnp.mean(jnp.square(x - mu), axis=-1, keepdims=True)
    return (x - mu) * jax.lax.rsqrt(var + LN_EPS) * g + b


# ----------------------------------------------------------------------------
# Kernel 1: GPTEmbeddings -- row gather (no one-hot matmul)
# ----------------------------------------------------------------------------
def embed_kernel(ids_ref, emb_ref, out_ref):
    # ids_ref: [B*S] int32 in SMEM; emb_ref: [VOCAB, H] f32 in VMEM.
    # TODO(synk): at pythia scale the table stays in HBM (bf16) and rows are
    # gathered with pltpu.make_async_copy / scalar-prefetched index_maps; at this
    # toy size the whole table sits in VMEM and we do dynamic row reads.
    for t in range(B * S):
        idx = ids_ref[t]
        out_ref[pl.ds(t, 1), :] = emb_ref[pl.ds(idx, 1), :].astype(jnp.float32)


embed_call = pl.pallas_call(
    embed_kernel,
    out_shape=jax.ShapeDtypeStruct((B * S, H), jnp.float32),
    in_specs=[pl.BlockSpec(memory_space=_SMEM),
              pl.BlockSpec(memory_space=_VMEM)],
    out_specs=pl.BlockSpec(memory_space=_VMEM),
)


# ----------------------------------------------------------------------------
# Kernel 2: all GPT-NeoX blocks (parallel residual), grid = (batch, layer)
#   out = x + Attn(LN1(x)) + MLP(LN2(x))
# The output block (constant index across the layer axis) is the resident
# residual-stream carry; stacked [L, ...] weights stream layer-by-layer.
# ----------------------------------------------------------------------------
def block_kernel(x_ref, cos_ref, sin_ref, rotp_ref,
                 ln1g_ref, ln1b_ref, ln2g_ref, ln2b_ref,
                 wqkv_ref, bqkv_ref, wo_ref, bo_ref,
                 w1_ref, b1_ref, w2_ref, b2_ref,
                 out_ref):
    layer = pl.program_id(1)

    @pl.when(layer == 0)
    def _():
        out_ref[0] = x_ref[0]

    h = out_ref[0]                                           # [S, H] f32 residual

    # ---- attention branch ---------------------------------------------------
    ln1 = _layernorm(h, ln1g_ref[0], ln1b_ref[0])
    qkv = jnp.dot(ln1.astype(jnp.bfloat16), wqkv_ref[0],
                  preferred_element_type=jnp.float32) + bqkv_ref[0]   # [S, 3H] f32

    q = qkv[:, 0 * H:1 * H]
    k = qkv[:, 1 * H:2 * H]
    v = qkv[:, 2 * H:3 * H]

    # Partial rotary: rotate-half expressed as a block-diagonal matmul; the
    # pass-through dims are baked into cos (=1) / sin (=0) -- no slices/concats.
    cosf = cos_ref[...]
    sinf = sin_ref[...]
    rotp = rotp_ref[...]
    q = q * cosf + jnp.dot(q, rotp, preferred_element_type=jnp.float32) * sinf
    k = k * cosf + jnp.dot(k, rotp, preferred_element_type=jnp.float32) * sinf

    # All-head batched attention (no per-head Python loop).
    qh = jnp.transpose(q.reshape(S, NUM_HEADS, HEAD_DIM), (1, 0, 2))   # [NH,S,HD]
    kh = jnp.transpose(k.reshape(S, NUM_HEADS, HEAD_DIM), (1, 0, 2))
    vh = jnp.transpose(v.reshape(S, NUM_HEADS, HEAD_DIM), (1, 0, 2))

    scale = 1.0 / math.sqrt(HEAD_DIM)
    s = jnp.einsum('hqd,hkd->hqk',
                   qh.astype(jnp.bfloat16), kh.astype(jnp.bfloat16),
                   preferred_element_type=jnp.float32) * scale          # f32 scores

    qi = jax.lax.broadcasted_iota(jnp.int32, (S, S), 0)
    ki = jax.lax.broadcasted_iota(jnp.int32, (S, S), 1)
    s = jnp.where((qi >= ki)[None, :, :], s, -1e30)

    m = jnp.max(s, axis=-1, keepdims=True)                   # f32 softmax stats
    e = jnp.exp(s - m)
    inv = pl.reciprocal(jnp.sum(e, axis=-1, keepdims=True), approx=True)
    p = e * inv

    ctx = jnp.einsum('hqk,hkd->hqd',
                     p.astype(jnp.bfloat16), vh.astype(jnp.bfloat16),
                     preferred_element_type=jnp.float32)                # [NH,S,HD]
    ctx = jnp.transpose(ctx, (1, 0, 2)).reshape(S, H)

    attn_out = jnp.dot(ctx.astype(jnp.bfloat16), wo_ref[0],
                       preferred_element_type=jnp.float32) + bo_ref[0]

    # ---- MLP branch (parallel residual: uses the same residual input h) -----
    ln2 = _layernorm(h, ln2g_ref[0], ln2b_ref[0])
    h1 = jnp.dot(ln2.astype(jnp.bfloat16), w1_ref[0],
                 preferred_element_type=jnp.float32) + b1_ref[0]
    # TODO(synk): HF pythia uses exact (erf) GELU; tanh approximation used for
    # guaranteed Mosaic lowering (numerically near-identical).
    h1 = jax.nn.gelu(h1, approximate=True)
    mlp = jnp.dot(h1.astype(jnp.bfloat16), w2_ref[0],
                  preferred_element_type=jnp.float32) + b2_ref[0]

    out_ref[0] = h + attn_out + mlp


def _wspec(shape):
    """Per-layer parameter stacked on a leading L axis -> block = one layer."""
    return pl.BlockSpec((1,) + shape, lambda b, l: (l,) + (0,) * len(shape))


block_call = pl.pallas_call(
    block_kernel,
    out_shape=jax.ShapeDtypeStruct((B, S, H), jnp.float32),
    grid=(B, NUM_LAYERS),
    in_specs=[
        pl.BlockSpec((1, S, H), lambda b, l: (b, 0, 0)),     # x (initial hidden)
        pl.BlockSpec((S, H), lambda b, l: (0, 0)),           # cos (tiled per head)
        pl.BlockSpec((S, H), lambda b, l: (0, 0)),           # sin (tiled per head)
        pl.BlockSpec((H, H), lambda b, l: (0, 0)),           # rotate-half matrix
        _wspec((1, H)), _wspec((1, H)),                      # ln1 g,b
        _wspec((1, H)), _wspec((1, H)),                      # ln2 g,b
        _wspec((H, 3 * H)), _wspec((1, 3 * H)),              # wqkv, bqkv
        _wspec((H, H)), _wspec((1, H)),                      # wo, bo
        _wspec((H, FFN)), _wspec((1, FFN)),                  # w1, b1
        _wspec((FFN, H)), _wspec((1, H)),                    # w2, b2
    ],
    out_specs=pl.BlockSpec((1, S, H), lambda b, l: (b, 0, 0)),
    compiler_params=pltpu.CompilerParams(
        # batch axis shards across TensorCores (v7x); layer axis is a serial carry.
        dimension_semantics=("parallel", "arbitrary"),
        vmem_limit_bytes=32 * 1024 * 1024,   # safe on v5e/v6e/v7x (64 MiB physical on v7x)
    ),
)


# ----------------------------------------------------------------------------
# Kernel 3: GPTLMHead (final layernorm + embed_out projection, no bias)
# Gridded over vocab tiles; at real scale TV should be a multiple of 128
# (256 on v6e/v7x) for lane-dense stores -- at toy size one tile covers VOCAB.
# ----------------------------------------------------------------------------
TV = VOCAB


def lmhead_kernel(x_ref, g_ref, b_ref, wout_ref, out_ref):
    xn = _layernorm(x_ref[...], g_ref[...], b_ref[...])
    out_ref[...] = jnp.dot(xn.astype(jnp.bfloat16), wout_ref[...],
                           preferred_element_type=jnp.float32)


lmhead_call = pl.pallas_call(
    lmhead_kernel,
    out_shape=jax.ShapeDtypeStruct((B * S, VOCAB), jnp.float32),
    grid=(pl.cdiv(VOCAB, TV),),
    in_specs=[
        pl.BlockSpec((B * S, H), lambda j: (0, 0)),
        pl.BlockSpec((1, H), lambda j: (0, 0)),
        pl.BlockSpec((1, H), lambda j: (0, 0)),
        pl.BlockSpec((H, TV), lambda j: (0, j)),
    ],
    out_specs=pl.BlockSpec((B * S, TV), lambda j: (0, j)),
    compiler_params=pltpu.CompilerParams(
        dimension_semantics=("parallel",),
        vmem_limit_bytes=32 * 1024 * 1024,
    ),
)


# ----------------------------------------------------------------------------
# Rotary tables (full head-dim, partial rotary folded in) + rotate-half matrix
# ----------------------------------------------------------------------------
def _rotary_tables():
    half = ROT // 2
    inv_freq = 1.0 / (10000.0 ** (jnp.arange(0, ROT, 2, dtype=jnp.float32) / ROT))
    pos = jnp.arange(S, dtype=jnp.float32)
    freqs = jnp.outer(pos, inv_freq)                         # [S, ROT//2]
    emb = jnp.concatenate([freqs, freqs], axis=-1)           # [S, ROT]
    # pass-through dims: cos=1, sin=0
    cos = jnp.concatenate(
        [jnp.cos(emb), jnp.ones((S, HEAD_DIM - ROT), jnp.float32)], axis=-1)
    sin = jnp.concatenate(
        [jnp.sin(emb), jnp.zeros((S, HEAD_DIM - ROT), jnp.float32)], axis=-1)
    cos_h = jnp.tile(cos, (1, NUM_HEADS))                    # [S, H]
    sin_h = jnp.tile(sin, (1, NUM_HEADS))                    # [S, H]
    # rotate-half as a matmul: (x @ P)[:, d] = -x[:, d+half]  for d <  half
    #                                           +x[:, d-half]  for half <= d < ROT
    #                                           0              otherwise
    p = jnp.zeros((HEAD_DIM, HEAD_DIM), jnp.float32)
    for d in range(half):
        p = p.at[d + half, d].set(-1.0)
    for d in range(half, ROT):
        p = p.at[d - half, d].set(1.0)
    p_h = jnp.kron(jnp.eye(NUM_HEADS, dtype=jnp.float32), p)  # [H, H] block-diag
    return cos_h, sin_h, p_h


# ----------------------------------------------------------------------------
# Parameter init (deterministic, synthetic); weights bf16, LN/bias f32
# ----------------------------------------------------------------------------
def init_params(key):
    def nrm(k, shape, dtype=jnp.bfloat16):
        return (0.02 * jax.random.normal(k, shape, dtype=jnp.float32)).astype(dtype)

    cos_h, sin_h, rot_p = _rotary_tables()
    keys = jax.random.split(key, 8)
    L = NUM_LAYERS
    params = {
        'embed_in': nrm(keys[0], (VOCAB, H), jnp.float32),   # GPTEmbeddings.embed_in
        'embed_out': nrm(keys[1], (H, VOCAB)),               # GPTLMHead.embed_out (pre-transposed)
        'lnf_g': jnp.ones((1, H), jnp.float32),
        'lnf_b': jnp.zeros((1, H), jnp.float32),
        'cos_h': cos_h, 'sin_h': sin_h, 'rot_p': rot_p,
        # per-layer parameters stacked on a leading L axis (layer grid axis)
        'ln1_g': jnp.ones((L, 1, H), jnp.float32),
        'ln1_b': jnp.zeros((L, 1, H), jnp.float32),
        'ln2_g': jnp.ones((L, 1, H), jnp.float32),
        'ln2_b': jnp.zeros((L, 1, H), jnp.float32),
        # NOTE: [Q(all heads) | K | V] column layout; real GPT-NeoX interleaved
        # fused query_key_value checkpoints must be permuted into this layout.
        'wqkv': nrm(keys[2], (L, H, 3 * H)),
        'bqkv': jnp.zeros((L, 1, 3 * H), jnp.float32),
        'wo': nrm(keys[3], (L, H, H)),
        'bo': jnp.zeros((L, 1, H), jnp.float32),
        'w1': nrm(keys[4], (L, H, FFN)),
        'b1': jnp.zeros((L, 1, FFN), jnp.float32),
        'w2': nrm(keys[5], (L, FFN, H)),
        'b2': jnp.zeros((L, 1, H), jnp.float32),
    }
    return params


# ----------------------------------------------------------------------------
# GPTStageFull.forward equivalent: embeddings -> blocks -> lm head
# (recompute_activations / torch checkpoint is a training-memory optimization
#  that does not change forward semantics, so it is a no-op here.)
# ----------------------------------------------------------------------------
def gpt_stage_full_forward(ids, params):
    hidden = embed_call(ids.reshape(B * S).astype(jnp.int32), params['embed_in'])
    hidden = block_call(hidden.reshape(B, S, H),
                        params['cos_h'], params['sin_h'], params['rot_p'],
                        params['ln1_g'], params['ln1_b'],
                        params['ln2_g'], params['ln2_b'],
                        params['wqkv'], params['bqkv'],
                        params['wo'], params['bo'],
                        params['w1'], params['b1'],
                        params['w2'], params['b2'])
    logits = lmhead_call(hidden.reshape(B * S, H),
                         params['lnf_g'], params['lnf_b'], params['embed_out'])
    return logits.reshape(B, S, VOCAB)


if __name__ == "__main__":
    key = jax.random.PRNGKey(0)
    k_ids, k_params = jax.random.split(key)
    input_ids = jax.random.randint(k_ids, (B, S), 0, VOCAB, dtype=jnp.int32)
    params = init_params(k_params)

    logits = jax.jit(gpt_stage_full_forward)(input_ids, params)
    logits = jax.block_until_ready(logits)
    assert logits.shape == (B, S, VOCAB)
    assert bool(jnp.isfinite(logits).all())
    print("KERNEL_OK")
</pallas_src>

<mosaic_0001>
module attributes {stable_mosaic.version = 11 : i64} {
  func.func @embed_kernel(%arg0: memref<16xi32, #tpu.memory_space<smem>>, %arg1: memref<64x32xf32, #tpu.memory_space<vmem>>, %arg2: memref<16x32xf32, #tpu.memory_space<vmem>>) attributes {dimension_semantics = [], scalar_prefetch = 0 : i64, scratch_operands = 0 : i64, tpu.core_type = #tpu.core_type<tc>} {
    %c0 = arith.constant 0 : index
    %0 = memref.load %arg0[%c0] : memref<16xi32, #tpu.memory_space<smem>>
    %1 = arith.index_cast %0 : i32 to index
    %c0_0 = arith.constant 0 : index
    %2 = vector.load %arg1[%1, %c0_0] : memref<64x32xf32, #tpu.memory_space<vmem>>, vector<1x32xf32>
    %c0_1 = arith.constant 0 : index
    %c0_2 = arith.constant 0 : index
    %3 = vector.load %arg2[%c0_1, %c0_2] : memref<16x32xf32, #tpu.memory_space<vmem>>, vector<1x32xf32>
    tpu.vector_store %arg2[%c0_1, %c0_2], %2 {strides = array<i32>} : memref<16x32xf32, #tpu.memory_space<vmem>>, vector<1x32xf32>,
    %c1 = arith.constant 1 : index
    %4 = memref.load %arg0[%c1] : memref<16xi32, #tpu.memory_space<smem>>
    %5 = arith.index_cast %4 : i32 to index
    %c0_3 = arith.constant 0 : index
    %6 = vector.load %arg1[%5, %c0_3] : memref<64x32xf32, #tpu.memory_space<vmem>>, vector<1x32xf32>
    %c1_4 = arith.constant 1 : index
    %c0_5 = arith.constant 0 : index
    %7 = vector.load %arg2[%c1_4, %c0_5] : memref<16x32xf32, #tpu.memory_space<vmem>>, vector<1x32xf32>
    tpu.vector_store %arg2[%c1_4, %c0_5], %6 {strides = array<i32>} : memref<16x32xf32, #tpu.memory_space<vmem>>, vector<1x32xf32>,
    %c2 = arith.constant 2 : index
    %8 = memref.load %arg0[%c2] : memref<16xi32, #tpu.memory_space<smem>>
    %9 = arith.index_cast %8 : i32 to index
    %c0_6 = arith.constant 0 : index
    %10 = vector.load %arg1[%9, %c0_6] : memref<64x32xf32, #tpu.memory_space<vmem>>, vector<1x32xf32>
    %c2_7 = arith.constant 2 : index
    %c0_8 = arith.constant 0 : index
    %11 = vector.load %arg2[%c2_7, %c0_8] : memref<16x32xf32, #tpu.memory_space<vmem>>, vector<1x32xf32>
    tpu.vector_store %arg2[%c2_7, %c0_8], %10 {strides = array<i32>} : memref<16x32xf32, #tpu.memory_space<vmem>>, vector<1x32xf32>,
    %c3 = arith.constant 3 : index
    %12 = memref.load %arg0[%c3] : memref<16xi32, #tpu.memory_space<smem>>
    %13 = arith.index_cast %12 : i32 to index
    %c0_9 = arith.constant 0 : index
    %14 = vector.load %arg1[%13, %c0_9] : memref<64x32xf32, #tpu.memory_space<vmem>>, vector<1x32xf32>
    %c3_10 = arith.constant 3 : index
    %c0_11 = arith.constant 0 : index
    %15 = vector.load %arg2[%c3_10, %c0_11] : memref<16x32xf32, #tpu.memory_space<vmem>>, vector<1x32xf32>
    tpu.vector_store %arg2[%c3_10, %c0_11], %14 {strides = array<i32>} : memref<16x32xf32, #tpu.memory_space<vmem>>, vector<1x32xf32>,
    %c4 = arith.constant 4 : index
    %16 = memref.load %arg0[%c4] : memref<16xi32, #tpu.memory_space<smem>>
    %17 = arith.index_cast %16 : i32 to index
    %c0_12 = arith.constant 0 : index
    %18 = vector.load %arg1[%17, %c0_12] : memref<64x32xf32, #tpu.memory_space<vmem>>, vector<1x32xf32>
    %c4_13 = arith.constant 4 : index
    %c0_14 = arith.constant 0 : index
    %19 = vector.load %arg2[%c4_13, %c0_14] : memref<16x32xf32, #tpu.memory_space<vmem>>, vector<1x32xf32>
    tpu.vector_store %arg2[%c4_13, %c0_14], %18 {strides = array<i32>} : memref<16x32xf32, #tpu.memory_space<vmem>>, vector<1x32xf32>,
    %c5 = arith.constant 5 : index
    %20 = memref.load %arg0[%c5] : memref<16xi32, #tpu.memory_space<smem>>
    %21 = arith.index_cast %20 : i32 to index
    %c0_15 = arith.constant 0 : index
    %22 = vector.load %arg1[%21, %c0_15] : memref<64x32xf32, #tpu.memory_space<vmem>>, vector<1x32xf32>
    %c5_16 = arith.constant 5 : index
    %c0_17 = arith.constant 0 : index
    %23 = vector.load %arg2[%c5_16, %c0_17] : memref<16x32xf32, #tpu.memory_space<vmem>>, vector<1x32xf32>
    tpu.vector_store %arg2[%c5_16, %c0_17], %22 {strides = array<i32>} : memref<16x32xf32, #tpu.memory_space<vmem>>, vector<1x32xf32>,
    %c6 = arith.constant 6 : index
    %24 = memref.load %arg0[%c6] : memref<16xi32, #tpu.memory_space<smem>>
    %25 = arith.index_cast %24 : i32 to index
    %c0_18 = arith.constant 0 : index
    %26 = vector.load %arg1[%25, %c0_18] : memref<64x32xf32, #tpu.memory_space<vmem>>, vector<1x32xf32>
    %c6_19 = arith.constant 6 : index
    %c0_20 = arith.constant 0 : index
    %27 = vector.load %arg2[%c6_19, %c0_20] : memref<16x32xf32, #tpu.memory_space<vmem>>, vector<1x32xf32>
    tpu.vector_store %arg2[%c6_19, %c0_20], %26 {strides = array<i32>} : memref<16x32xf32, #tpu.memory_space<vmem>>, vector<1x32xf32>,
    %c7 = arith.constant 7 : index
    %28 = memref.load %arg0[%c7] : memref<16xi32, #tpu.memory_space<smem>>
    %29 = arith.index_cast %28 : i32 to index
    %c0_21 = arith.constant 0 : index
    %30 = vector.load %arg1[%29, %c0_21] : memref<64x32xf32, #tpu.memory_space<vmem>>, vector<1x32xf32>
    %c7_22 = arith.constant 7 : index
    %c0_23 = arith.constant 0 : index
    %31 = vector.load %arg2[%c7_22, %c0_23] : memref<16x32xf32, #tpu.memory_space<vmem>>, vector<1x32xf32>
    tpu.vector_store %arg2[%c7_22, %c0_23], %30 {strides = array<i32>} : memref<16x32xf32, #tpu.memory_space<vmem>>, vector<1x32xf32>,
    %c8 = arith.constant 8 : index
    %32 = memref.load %arg0[%c8] : memref<16xi32, #tpu.memory_space<smem>>
    %33 = arith.index_cast %32 : i32 to index
    %c0_24 = arith.constant 0 : index
    %34 = vector.load %arg1[%33, %c0_24] : memref<64x32xf32, #tpu.memory_space<vmem>>, vector<1x32xf32>
    %c8_25 = arith.constant 8 : index
    %c0_26 = arith.constant 0 : index
    %35 = vector.load %arg2[%c8_25, %c0_26] : memref<16x32xf32, #tpu.memory_space<vmem>>, vector<1x32xf32>
    tpu.vector_store %arg2[%c8_25, %c0_26], %34 {strides = array<i32>} : memref<16x32xf32, #tpu.memory_space<vmem>>, vector<1x32xf32>,
    %c9 = arith.constant 9 : index
    %36 = memref.load %arg0[%c9] : memref<16xi32, #tpu.memory_space<smem>>
    %37 = arith.index_cast %36 : i32 to index
    %c0_27 = arith.constant 0 : index
    %38 = vector.load %arg1[%37, %c0_27] : memref<64x32xf32, #tpu.memory_space<vmem>>, vector<1x32xf32>
    %c9_28 = arith.constant 9 : index
    %c0_29 = arith.constant 0 : index
    %39 = vector.load %arg2[%c9_28, %c0_29] : memref<16x32xf32, #tpu.memory_space<vmem>>, vector<1x32xf32>
    tpu.vector_store %arg2[%c9_28, %c0_29], %38 {strides = array<i32>} : memref<16x32xf32, #tpu.memory_space<vmem>>, vector<1x32xf32>,
    %c10 = arith.constant 10 : index
    %40 = memref.load %arg0[%c10] : memref<16xi32, #tpu.memory_space<smem>>
    %41 = arith.index_cast %40 : i32 to index
    %c0_30 = arith.constant 0 : index
    %42 = vector.load %arg1[%41, %c0_30] : memref<64x32xf32, #tpu.memory_space<vmem>>, vector<1x32xf32>
    %c10_31 = arith.constant 10 : index
    %c0_32 = arith.constant 0 : index
    %43 = vector.load %arg2[%c10_31, %c0_32] : memref<16x32xf32, #tpu.memory_space<vmem>>, vector<1x32xf32>
    tpu.vector_store %arg2[%c10_31, %c0_32], %42 {strides = array<i32>} : memref<16x32xf32, #tpu.memory_space<vmem>>, vector<1x32xf32>,
    %c11 = arith.constant 11 : index
    %44 = memref.load %arg0[%c11] : memref<16xi32, #tpu.memory_space<smem>>
    %45 = arith.index_cast %44 : i32 to index
    %c0_33 = arith.constant 0 : index
    %46 = vector.load %arg1[%45, %c0_33] : memref<64x32xf32, #tpu.memory_space<vmem>>, vector<1x32xf32>
    %c11_34 = arith.constant 11 : index
    %c0_35 = arith.constant 0 : index
    %47 = vector.load %arg2[%c11_34, %c0_35] : memref<16x32xf32, #tpu.memory_space<vmem>>, vector<1x32xf32>
    tpu.vector_store %arg2[%c11_34, %c0_35], %46 {strides = array<i32>} : memref<16x32xf32, #tpu.memory_space<vmem>>, vector<1x32xf32>,
    %c12 = arith.constant 12 : index
    %48 = memref.load %arg0[%c12] : memref<16xi32, #tpu.memory_space<smem>>
    %49 = arith.index_cast %48 : i32 to index
    %c0_36 = arith.constant 0 : index
    %50 = vector.load %arg1[%49, %c0_36] : memref<64x32xf32, #tpu.memory_space<vmem>>, vector<1x32xf32>
    %c12_37 = arith.constant 12 : index
    %c0_38 = arith.constant 0 : index
    %51 = vector.load %arg2[%c12_37, %c0_38] : memref<16x32xf32, #tpu.memory_space<vmem>>, vector<1x32xf32>
    tpu.vector_store %arg2[%c12_37, %c0_38], %50 {strides = array<i32>} : memref<16x32xf32, #tpu.memory_space<vmem>>, vector<1x32xf32>,
    %c13 = arith.constant 13 : index
    %52 = memref.load %arg0[%c13] : memref<16xi32, #tpu.memory_space<smem>>
    %53 = arith.index_cast %52 : i32 to index
    %c0_39 = arith.constant 0 : index
    %54 = vector.load %arg1[%53, %c0_39] : memref<64x32xf32, #tpu.memory_space<vmem>>, vector<1x32xf32>
    %c13_40 = arith.constant 13 : index
    %c0_41 = arith.constant 0 : index
    %55 = vector.load %arg2[%c13_40, %c0_41] : memref<16x32xf32, #tpu.memory_space<vmem>>, vector<1x32xf32>
    tpu.vector_store %arg2[%c13_40, %c0_41], %54 {strides = array<i32>} : memref<16x32xf32, #tpu.memory_space<vmem>>, vector<1x32xf32>,
    %c14 = arith.constant 14 : index
    %56 = memref.load %arg0[%c14] : memref<16xi32, #tpu.memory_space<smem>>
    %57 = arith.index_cast %56 : i32 to index
    %c0_42 = arith.constant 0 : index
    %58 = vector.load %arg1[%57, %c0_42] : memref<64x32xf32, #tpu.memory_space<vmem>>, vector<1x32xf32>
    %c14_43 = arith.constant 14 : index
    %c0_44 = arith.constant 0 : index
    %59 = vector.load %arg2[%c14_43, %c0_44] : memref<16x32xf32, #tpu.memory_space<vmem>>, vector<1x32xf32>
    tpu.vector_store %arg2[%c14_43, %c0_44], %58 {strides = array<i32>} : memref<16x32xf32, #tpu.memory_space<vmem>>, vector<1x32xf32>,
    %c15 = arith.constant 15 : index
    %60 = memref.load %arg0[%c15] : memref<16xi32, #tpu.memory_space<smem>>
    %61 = arith.index_cast %60 : i32 to index
    %c0_45 = arith.constant 0 : index
    %62 = vector.load %arg1[%61, %c0_45] : memref<64x32xf32, #tpu.memory_space<vmem>>, vector<1x32xf32>
    %c15_46 = arith.constant 15 : index
    %c0_47 = arith.constant 0 : index
    %63 = vector.load %arg2[%c15_46, %c0_47] : memref<16x32xf32, #tpu.memory_space<vmem>>, vector<1x32xf32>
    tpu.vector_store %arg2[%c15_46, %c0_47], %62 {strides = array<i32>} : memref<16x32xf32, #tpu.memory_space<vmem>>, vector<1x32xf32>,
    return
  }
}

module attributes {stable_mosaic.version = 11 : i64} {
  func.func @lmhead_kernel(%arg0: i32, %arg1: memref<16x32xf32, #tpu.memory_space<vmem>>, %arg2: memref<1x32xf32, #tpu.memory_space<vmem>>, %arg3: memref<1x32xf32, #tpu.memory_space<vmem>>, %arg4: memref<32x64xbf16, #tpu.memory_space<vmem>>, %arg5: memref<16x64xf32, #tpu.memory_space<vmem>>) attributes {dimension_semantics = [#tpu.dimension_semantics<parallel>], iteration_bounds = array<i64: 1>, scalar_prefetch = 0 : i64, scratch_operands = 0 : i64, tpu.core_type = #tpu.core_type<tc>, window_params = [{pipeline_mode = #tpu.pipeline_mode<synchronous>, transform_indices = @transform_0, window_bounds = array<i64: 16, 32>}, {pipeline_mode = #tpu.pipeline_mode<synchronous>, transform_indices = @transform_1, window_bounds = array<i64: 1, 32>}, {pipeline_mode = #tpu.pipeline_mode<synchronous>, transform_indices = @transform_2, window_bounds = array<i64: 1, 32>}, {transform_indices = @transform_3, window_bounds = array<i64: 32, 64>}, {transform_indices = @transform_4, window_bounds = array<i64: 16, 64>}]} {
    %c0 = arith.constant 0 : index
    %c0_0 = arith.constant 0 : index
    %0 = vector.load %arg1[%c0, %c0_0] : memref<16x32xf32, #tpu.memory_space<vmem>>, vector<16x32xf32>
    %c0_1 = arith.constant 0 : index
    %c0_2 = arith.constant 0 : index
    %1 = vector.load %arg2[%c0_1, %c0_2] : memref<1x32xf32, #tpu.memory_space<vmem>>, vector<1x32xf32>
    %c0_3 = arith.constant 0 : index
    %c0_4 = arith.constant 0 : index
    %2 = vector.load %arg3[%c0_3, %c0_4] : memref<1x32xf32, #tpu.memory_space<vmem>>, vector<1x32xf32>
    %cst = arith.constant dense<0.000000e+00> : vector<16xf32>
    %3 = vector.multi_reduction <add>, %0, %cst [1] : vector<16x32xf32> to vector<16xf32>
    %4 = vector.shape_cast %3 : vector<16xf32> to vector<16x1xf32>
    %cst_5 = arith.constant 3.200000e+01 : f32
    %5 = vector.broadcast %cst_5 : f32 to vector<16x1xf32>
    %6 = arith.divf %4, %5 : vector<16x1xf32>
    %7 = vector.broadcast %6 : vector<16x1xf32> to vector<16x32xf32>
    %8 = arith.subf %0, %7 : vector<16x32xf32>
    %9 = arith.mulf %8, %8 : vector<16x32xf32>
    %cst_6 = arith.constant dense<0.000000e+00> : vector<16xf32>
    %10 = vector.multi_reduction <add>, %9, %cst_6 [1] : vector<16x32xf32> to vector<16xf32>
    %11 = vector.shape_cast %10 : vector<16xf32> to vector<16x1xf32>
    %cst_7 = arith.constant 3.200000e+01 : f32
    %12 = vector.broadcast %cst_7 : f32 to vector<16x1xf32>
    %13 = arith.divf %11, %12 : vector<16x1xf32>
    %14 = vector.broadcast %6 : vector<16x1xf32> to vector<16x32xf32>
    %15 = arith.subf %0, %14 : vector<16x32xf32>
    %cst_8 = arith.constant 9.99999974E-6 : f32
    %16 = vector.broadcast %cst_8 : f32 to vector<16x1xf32>
    %17 = arith.addf %13, %16 : vector<16x1xf32>
    %18 = math.rsqrt %17 : vector<16x1xf32>
    %19 = vector.broadcast %18 : vector<16x1xf32> to vector<16x32xf32>
    %20 = arith.mulf %15, %19 : vector<16x32xf32>
    %21 = vector.broadcast %1 : vector<1x32xf32> to vector<16x32xf32>
    %22 = arith.mulf %20, %21 : vector<16x32xf32>
    %23 = vector.broadcast %2 : vector<1x32xf32> to vector<16x32xf32>
    %24 = arith.addf %22, %23 : vector<16x32xf32>
    %25 = arith.truncf %24 : vector<16x32xf32> to vector<16x32xbf16>
    %c0_9 = arith.constant 0 : index
    %c0_10 = arith.constant 0 : index
    %26 = vector.load %arg4[%c0_9, %c0_10] : memref<32x64xbf16, #tpu.memory_space<vmem>>, vector<32x64xbf16>
    %cst_11 = arith.constant dense<0.000000e+00> : vector<16x64xf32>
    %27 = tpu.matmul %25, %26, %cst_11 {dimension_numbers = #tpu.dot_dimension_numbers<[1], [0], [0], [1], [0, 0, 1, 1], [], []>} : vector<16x32xbf16>, vector<32x64xbf16>, vector<16x64xf32> -> vector<16x64xf32>
    %c0_12 = arith.constant 0 : index
    %c0_13 = arith.constant 0 : index
    %28 = vector.load %arg5[%c0_12, %c0_13] : memref<16x64xf32, #tpu.memory_space<vmem>>, vector<16x64xf32>
    tpu.vector_store %arg5[%c0_12, %c0_13], %27 {strides = array<i32>} : memref<16x64xf32, #tpu.memory_space<vmem>>, vector<16x64xf32>,
    return
  }
  func.func @transform_0(%arg0: i32) -> (i32, i32) {
    %c0_i32 = arith.constant 0 : i32
    %c0_i32_0 = arith.constant 0 : i32
    %c0_i32_1 = arith.constant 0 : i32
    return %c0_i32, %c0_i32_0 : i32, i32
  }
  func.func @transform_1(%arg0: i32) -> (i32, i32) {
    %c0_i32 = arith.constant 0 : i32
    %c0_i32_0 = arith.constant 0 : i32
    %c0_i32_1 = arith.constant 0 : i32
    return %c0_i32, %c0_i32_0 : i32, i32
  }
  func.func @transform_2(%arg0: i32) -> (i32, i32) {
    %c0_i32 = arith.constant 0 : i32
    %c0_i32_0 = arith.constant 0 : i32
    %c0_i32_1 = arith.constant 0 : i32
    return %c0_i32, %c0_i32_0 : i32, i32
  }
  func.func @transform_3(%arg0: i32) -> (i32, i32) {
    %c0_i32 = arith.constant 0 : i32
    %c0_i32_0 = arith.constant 0 : i32
    return %c0_i32, %arg0 : i32, i32
  }
  func.func @transform_4(%arg0: i32) -> (i32, i32) {
    %c0_i32 = arith.constant 0 : i32
    %c0_i32_0 = arith.constant 0 : i32
    return %c0_i32, %arg0 : i32, i32
  }
}

module attributes {stable_mosaic.version = 11 : i64} {
  func.func @block_kernel(%arg0: i32, %arg1: i32, %arg2: memref<1x8x32xf32, #tpu.memory_space<vmem>>, %arg3: memref<8x32xf32, #tpu.memory_space<vmem>>, %arg4: memref<8x32xf32, #tpu.memory_space<vmem>>, %arg5: memref<32x32xf32, #tpu.memory_space<vmem>>, %arg6: memref<1x1x32xf32, #tpu.memory_space<vmem>>, %arg7: memref<1x1x32xf32, #tpu.memory_space<vmem>>, %arg8: memref<1x1x32xf32, #tpu.memory_space<vmem>>, %arg9: memref<1x1x32xf32, #tpu.memory_space<vmem>>, %arg10: memref<1x32x96xbf16, #tpu.memory_space<vmem>>, %arg11: memref<1x1x96xf32, #tpu.memory_space<vmem>>, %arg12: memref<1x32x32xbf16, #tpu.memory_space<vmem>>, %arg13: memref<1x1x32xf32, #tpu.memory_space<vmem>>, %arg14: memref<1x32x128xbf16, #tpu.memory_space<vmem>>, %arg15: memref<1x1x128xf32, #tpu.memory_space<vmem>>, %arg16: memref<1x128x32xbf16, #tpu.memory_space<vmem>>, %arg17: memref<1x1x32xf32, #tpu.memory_space<vmem>>, %arg18: memref<1x8x32xf32, #tpu.memory_space<vmem>>) attributes {dimension_semantics = [#tpu.dimension_semantics<parallel>, #tpu.dimension_semantics<arbitrary>], iteration_bounds = array<i64: 2, 2>, scalar_prefetch = 0 : i64, scratch_operands = 0 : i64, tpu.core_type = #tpu.core_type<tc>, window_params = [{transform_indices = @transform_0, window_bounds = array<i64: 1, 8, 32>}, {pipeline_mode = #tpu.pipeline_mode<synchronous>, transform_indices = @transform_1, window_bounds = array<i64: 8, 32>}, {pipeline_mode = #tpu.pipeline_mode<synchronous>, transform_indices = @transform_2, window_bounds = array<i64: 8, 32>}, {pipeline_mode = #tpu.pipeline_mode<synchronous>, transform_indices = @transform_3, window_bounds = array<i64: 32, 32>}, {transform_indices = @transform_4, window_bounds = array<i64: 1, 1, 32>}, {transform_indices = @transform_5, window_bounds = array<i64: 1, 1, 32>}, {transform_indices = @transform_6, window_bounds = array<i64: 1, 1, 32>}, {transform_indices = @transform_7, window_bounds = array<i64: 1, 1, 32>}, {transform_indices = @transform_8, window_bounds = array<i64: 1, 32, 96>}, {transform_indices = @transform_9, window_bounds = array<i64: 1, 1, 96>}, {transform_indices = @transform_10, window_bounds = array<i64: 1, 32, 32>}, {transform_indices = @transform_11, window_bounds = array<i64: 1, 1, 32>}, {transform_indices = @transform_12, window_bounds = array<i64: 1, 32, 128>}, {transform_indices = @transform_13, window_bounds = array<i64: 1, 1, 128>}, {transform_indices = @transform_14, window_bounds = array<i64: 1, 128, 32>}, {transform_indices = @transform_15, window_bounds = array<i64: 1, 1, 32>}, {transform_indices = @transform_16, window_bounds = array<i64: 1, 8, 32>}]} {
    %c0_i32 = arith.constant 0 : i32
    %0 = arith.cmpi eq, %arg1, %c0_i32 : i32
    %1 = arith.extui %0 : i1 to i32
    %c0_i32_0 = arith.constant 0 : i32
    %2 = arith.cmpi ne, %1, %c0_i32_0 : i32
    scf.if %2 {
      %c0_73 = arith.constant 0 : index
      %c0_74 = arith.constant 0 : index
      %c0_75 = arith.constant 0 : index
      %155 = vector.load %arg2[%c0_73, %c0_74, %c0_75] : memref<1x8x32xf32, #tpu.memory_space<vmem>>, vector<1x8x32xf32>
      %156 = vector.shape_cast %155 : vector<1x8x32xf32> to vector<8x32xf32>
      %c0_76 = arith.constant 0 : index
      %c0_77 = arith.constant 0 : index
      %c0_78 = arith.constant 0 : index
      %157 = vector.load %arg18[%c0_76, %c0_77, %c0_78] : memref<1x8x32xf32, #tpu.memory_space<vmem>>, vector<1x8x32xf32>
      %158 = vector.shape_cast %157 : vector<1x8x32xf32> to vector<8x32xf32>
      %159 = vector.shape_cast %156 : vector<8x32xf32> to vector<1x8x32xf32>
      tpu.vector_store %arg18[%c0_76, %c0_77, %c0_78], %159 {strides = array<i32>} : memref<1x8x32xf32, #tpu.memory_space<vmem>>, vector<1x8x32xf32>,
    } else {
    }
    %c0 = arith.constant 0 : index
    %c0_1 = arith.constant 0 : index
    %c0_2 = arith.constant 0 : index
    %3 = vector.load %arg18[%c0, %c0_1, %c0_2] : memref<1x8x32xf32, #tpu.memory_space<vmem>>, vector<1x8x32xf32>
    %4 = vector.shape_cast %3 : vector<1x8x32xf32> to vector<8x32xf32>
    %c0_3 = arith.constant 0 : index
    %c0_4 = arith.constant 0 : index
    %c0_5 = arith.constant 0 : index
    %5 = vector.load %arg6[%c0_3, %c0_4, %c0_5] : memref<1x1x32xf32, #tpu.memory_space<vmem>>, vector<1x1x32xf32>
    %6 = vector.shape_cast %5 : vector<1x1x32xf32> to vector<1x32xf32>
    %c0_6 = arith.constant 0 : index
    %c0_7 = arith.constant 0 : index
    %c0_8 = arith.constant 0 : index
    %7 = vector.load %arg7[%c0_6, %c0_7, %c0_8] : memref<1x1x32xf32, #tpu.memory_space<vmem>>, vector<1x1x32xf32>
    %8 = vector.shape_cast %7 : vector<1x1x32xf32> to vector<1x32xf32>
    %cst = arith.constant dense<0.000000e+00> : vector<8xf32>
    %9 = vector.multi_reduction <add>, %4, %cst [1] : vector<8x32xf32> to vector<8xf32>
    %10 = vector.shape_cast %9 : vector<8xf32> to vector<8x1xf32>
    %cst_9 = arith.constant 3.200000e+01 : f32
    %11 = vector.broadcast %cst_9 : f32 to vector<8x1xf32>
    %12 = arith.divf %10, %11 : vector<8x1xf32>
    %13 = vector.broadcast %12 : vector<8x1xf32> to vector<8x32xf32>
    %14 = arith.subf %4, %13 : vector<8x32xf32>
    %15 = arith.mulf %14, %14 : vector<8x32xf32>
    %cst_10 = arith.constant dense<0.000000e+00> : vector<8xf32>
    %16 = vector.multi_reduction <add>, %15, %cst_10 [1] : vector<8x32xf32> to vector<8xf32>
    %17 = vector.shape_cast %16 : vector<8xf32> to vector<8x1xf32>
    %cst_11 = arith.constant 3.200000e+01 : f32
    %18 = vector.broadcast %cst_11 : f32 to vector<8x1xf32>
    %19 = arith.divf %17, %18 : vector<8x1xf32>
    %20 = vector.broadcast %12 : vector<8x1xf32> to vector<8x32xf32>
    %21 = arith.subf %4, %20 : vector<8x32xf32>
    %cst_12 = arith.constant 9.99999974E-6 : f32
    %22 = vector.broadcast %cst_12 : f32 to vector<8x1xf32>
    %23 = arith.addf %19, %22 : vector<8x1xf32>
    %24 = math.rsqrt %23 : vector<8x1xf32>
    %25 = vector.broadcast %24 : vector<8x1xf32> to vector<8x32xf32>
    %26 = arith.mulf %21, %25 : vector<8x32xf32>
    %27 = vector.broadcast %6 : vector<1x32xf32> to vector<8x32xf32>
    %28 = arith.mulf %26, %27 : vector<8x32xf32>
    %29 = vector.broadcast %8 : vector<1x32xf32> to vector<8x32xf32>
    %30 = arith.addf %28, %29 : vector<8x32xf32>
    %31 = arith.truncf %30 : vector<8x32xf32> to vector<8x32xbf16>
    %c0_13 = arith.constant 0 : index
    %c0_14 = arith.constant 0 : index
    %c0_15 = arith.constant 0 : index
    %32 = vector.load %arg10[%c0_13, %c0_14, %c0_15] : memref<1x32x96xbf16, #tpu.memory_space<vmem>>, vector<1x32x96xbf16>
    %33 = vector.shape_cast %32 : vector<1x32x96xbf16> to vector<32x96xbf16>
    %cst_16 = arith.constant dense<0.000000e+00> : vector<8x96xf32>
    %34 = tpu.matmul %31, %33, %cst_16 {dimension_numbers = #tpu.dot_dimension_numbers<[1], [0], [0], [1], [0, 0, 1, 1], [], []>} : vector<8x32xbf16>, vector<32x96xbf16>, vector<8x96xf32> -> vector<8x96xf32>
    %c0_17 = arith.constant 0 : index
    %c0_18 = arith.constant 0 : index
    %c0_19 = arith.constant 0 : index
    %35 = vector.load %arg11[%c0_17, %c0_18, %c0_19] : memref<1x1x96xf32, #tpu.memory_space<vmem>>, vector<1x1x96xf32>
    %36 = vector.shape_cast %35 : vector<1x1x96xf32> to vector<1x96xf32>
    %37 = vector.broadcast %36 : vector<1x96xf32> to vector<8x96xf32>
    %38 = arith.addf %34, %37 : vector<8x96xf32>
    %39 = vector.extract_strided_slice %38 {offsets = [0, 0], sizes = [8, 32], strides = [1, 1]} : vector<8x96xf32> to vector<8x32xf32>
    %40 = vector.extract_strided_slice %38 {offsets = [0, 32], sizes = [8, 32], strides = [1, 1]} : vector<8x96xf32> to vector<8x32xf32>
    %41 = vector.extract_strided_slice %38 {offsets = [0, 64], sizes = [8, 32], strides = [1, 1]} : vector<8x96xf32> to vector<8x32xf32>
    %c0_20 = arith.constant 0 : index
    %c0_21 = arith.constant 0 : index
    %42 = vector.load %arg3[%c0_20, %c0_21] : memref<8x32xf32, #tpu.memory_space<vmem>>, vector<8x32xf32>
    %c0_22 = arith.constant 0 : index
    %c0_23 = arith.constant 0 : index
    %43 = vector.load %arg4[%c0_22, %c0_23] : memref<8x32xf32, #tpu.memory_space<vmem>>, vector<8x32xf32>
    %c0_24 = arith.constant 0 : index
    %c0_25 = arith.constant 0 : index
    %44 = vector.load %arg5[%c0_24, %c0_25] : memref<32x32xf32, #tpu.memory_space<vmem>>, vector<32x32xf32>
    %45 = arith.mulf %39, %42 : vector<8x32xf32>
    %cst_26 = arith.constant dense<0.000000e+00> : vector<8x32xf32>
    %46 = tpu.matmul %39, %44, %cst_26 {dimension_numbers = #tpu.dot_dimension_numbers<[1], [0], [0], [1], [0, 0, 1, 1], [], []>} : vector<8x32xf32>, vector<32x32xf32>, vector<8x32xf32> -> vector<8x32xf32>
    %47 = arith.mulf %46, %43 : vector<8x32xf32>
    %48 = arith.addf %45, %47 : vector<8x32xf32>
    %49 = arith.mulf %40, %42 : vector<8x32xf32>
    %cst_27 = arith.constant dense<0.000000e+00> : vector<8x32xf32>
    %50 = tpu.matmul %40, %44, %cst_27 {dimension_numbers = #tpu.dot_dimension_numbers<[1], [0], [0], [1], [0, 0, 1, 1], [], []>} : vector<8x32xf32>, vector<32x32xf32>, vector<8x32xf32> -> vector<8x32xf32>
    %51 = arith.mulf %50, %43 : vector<8x32xf32>
    %52 = arith.addf %49, %51 : vector<8x32xf32>
    %53 = vector.shape_cast %48 : vector<8x32xf32> to vector<8x4x8xf32>
    %54 = tpu.transpose %53, [1, 0, 2] : vector<8x4x8xf32> -> vector<4x8x8xf32>
    %55 = vector.shape_cast %52 : vector<8x32xf32> to vector<8x4x8xf32>
    %56 = tpu.transpose %55, [1, 0, 2] : vector<8x4x8xf32> -> vector<4x8x8xf32>
    %57 = vector.shape_cast %41 : vector<8x32xf32> to vector<8x4x8xf32>
    %58 = tpu.transpose %57, [1, 0, 2] : vector<8x4x8xf32> -> vector<4x8x8xf32>
    %59 = arith.truncf %54 : vector<4x8x8xf32> to vector<4x8x8xbf16>
    %60 = arith.truncf %56 : vector<4x8x8xf32> to vector<4x8x8xbf16>
    "tpu.trace_start"() <{level = 10 : i32, message = "hqd,hkd->hqk"}> : () -> ()
    %cst_28 = arith.constant dense<0.000000e+00> : vector<4x8x8xf32>
    %61 = tpu.matmul %59, %60, %cst_28 {dimension_numbers = #tpu.dot_dimension_numbers<[2], [2], [1], [1], [0, 0, 0, 1, 1, 1], [0], [0]>} : vector<4x8x8xbf16>, vector<4x8x8xbf16>, vector<4x8x8xf32> -> vector<4x8x8xf32>
    "tpu.trace_stop"() : () -> ()
    %cst_29 = arith.constant 0.353553385 : f32
    %62 = vector.broadcast %cst_29 : f32 to vector<4x8x8xf32>
    %63 = arith.mulf %61, %62 : vector<4x8x8xf32>
    %64 = tpu.iota {dimensions = array<i32: 0>} : vector<8x8xi32>
    %65 = tpu.iota {dimensions = array<i32: 1>} : vector<8x8xi32>
    %66 = arith.cmpi sge, %64, %65 : vector<8x8xi32>
    %67 = vector.shape_cast %66 : vector<8x8xi1> to vector<1x8x8xi1>
    %cst_30 = arith.constant -1.000000e+30 : f32
    %68 = vector.shape_cast %67 : vector<1x8x8xi1> to vector<1x8x8xi1>
    %69 = vector.broadcast %68 : vector<1x8x8xi1> to vector<4x8x8xi1>
    %70 = vector.broadcast %cst_30 : f32 to vector<4x8x8xf32>
    %71 = arith.select %69, %63, %70 : vector<4x8x8xi1>, vector<4x8x8xf32>
    %cst_31 = arith.constant dense<0xFF800000> : vector<4x8xf32>
    %72 = vector.multi_reduction <maximumf>, %71, %cst_31 [2] : vector<4x8x8xf32> to vector<4x8xf32>
    %73 = vector.shape_cast %72 : vector<4x8xf32> to vector<4x8x1xf32>
    %74 = vector.broadcast %73 : vector<4x8x1xf32> to vector<4x8x8xf32>
    %75 = arith.subf %71, %74 : vector<4x8x8xf32>
    %76 = math.exp %75 : vector<4x8x8xf32>
    %cst_32 = arith.constant dense<0.000000e+00> : vector<4x8xf32>
    %77 = vector.multi_reduction <add>, %76, %cst_32 [2] : vector<4x8x8xf32> to vector<4x8xf32>
    %78 = vector.shape_cast %77 : vector<4x8xf32> to vector<4x8x1xf32>
    %79 = tpu.reciprocal %78 {approx = true} : vector<4x8x1xf32> -> vector<4x8x1xf32>
    %80 = vector.broadcast %79 : vector<4x8x1xf32> to vector<4x8x8xf32>
    %81 = arith.mulf %76, %80 : vector<4x8x8xf32>
    %82 = arith.truncf %81 : vector<4x8x8xf32> to vector<4x8x8xbf16>
    %83 = arith.truncf %58 : vector<4x8x8xf32> to vector<4x8x8xbf16>
    "tpu.trace_start"() <{level = 10 : i32, message = "hqk,hkd->hqd"}> : () -> ()
    %cst_33 = arith.constant dense<0.000000e+00> : vector<4x8x8xf32>
    %84 = tpu.matmul %82, %83, %cst_33 {dimension_numbers = #tpu.dot_dimension_numbers<[2], [1], [1], [2], [0, 0, 0, 1, 1, 2], [0], [0]>} : vector<4x8x8xbf16>, vector<4x8x8xbf16>, vector<4x8x8xf32> -> vector<4x8x8xf32>
    "tpu.trace_stop"() : () -> ()
    %85 = tpu.transpose %84, [1, 0, 2] : vector<4x8x8xf32> -> vector<8x4x8xf32>
    %86 = vector.shape_cast %85 : vector<8x4x8xf32> to vector<8x32xf32>
    %87 = arith.truncf %86 : vector<8x32xf32> to vector<8x32xbf16>
    %c0_34 = arith.constant 0 : index
    %c0_35 = arith.constant 0 : index
    %c0_36 = arith.constant 0 : index
    %88 = vector.load %arg12[%c0_34, %c0_35, %c0_36] : memref<1x32x32xbf16, #tpu.memory_space<vmem>>, vector<1x32x32xbf16>
    %89 = vector.shape_cast %88 : vector<1x32x32xbf16> to vector<32x32xbf16>
    %cst_37 = arith.constant dense<0.000000e+00> : vector<8x32xf32>
    %90 = tpu.matmul %87, %89, %cst_37 {dimension_numbers = #tpu.dot_dimension_numbers<[1], [0], [0], [1], [0, 0, 1, 1], [], []>} : vector<8x32xbf16>, vector<32x32xbf16>, vector<8x32xf32> -> vector<8x32xf32>
    %c0_38 = arith.constant 0 : index
    %c0_39 = arith.constant 0 : index
    %c0_40 = arith.constant 0 : index
    %91 = vector.load %arg13[%c0_38, %c0_39, %c0_40] : memref<1x1x32xf32, #tpu.memory_space<vmem>>, vector<1x1x32xf32>
    %92 = vector.shape_cast %91 : vector<1x1x32xf32> to vector<1x32xf32>
    %93 = vector.broadcast %92 : vector<1x32xf32> to vector<8x32xf32>
    %94 = arith.addf %90, %93 : vector<8x32xf32>
    %c0_41 = arith.constant 0 : index
    %c0_42 = arith.constant 0 : index
    %c0_43 = arith.constant 0 : index
    %95 = vector.load %arg8[%c0_41, %c0_42, %c0_43] : memref<1x1x32xf32, #tpu.memory_space<vmem>>, vector<1x1x32xf32>
    %96 = vector.shape_cast %95 : vector<1x1x32xf32> to vector<1x32xf32>
    %c0_44 = arith.constant 0 : index
    %c0_45 = arith.constant 0 : index
    %c0_46 = arith.constant 0 : index
    %97 = vector.load %arg9[%c0_44, %c0_45, %c0_46] : memref<1x1x32xf32, #tpu.memory_space<vmem>>, vector<1x1x32xf32>
    %98 = vector.shape_cast %97 : vector<1x1x32xf32> to vector<1x32xf32>
    %cst_47 = arith.constant dense<0.000000e+00> : vector<8xf32>
    %99 = vector.multi_reduction <add>, %4, %cst_47 [1] : vector<8x32xf32> to vector<8xf32>
    %100 = vector.shape_cast %99 : vector<8xf32> to vector<8x1xf32>
    %cst_48 = arith.constant 3.200000e+01 : f32
    %101 = vector.broadcast %cst_48 : f32 to vector<8x1xf32>
    %102 = arith.divf %100, %101 : vector<8x1xf32>
    %103 = vector.broadcast %102 : vector<8x1xf32> to vector<8x32xf32>
    %104 = arith.subf %4, %103 : vector<8x32xf32>
    %105 = arith.mulf %104, %104 : vector<8x32xf32>
    %cst_49 = arith.constant dense<0.000000e+00> : vector<8xf32>
    %106 = vector.multi_reduction <add>, %105, %cst_49 [1] : vector<8x32xf32> to vector<8xf32>
    %107 = vector.shape_cast %106 : vector<8xf32> to vector<8x1xf32>
    %cst_50 = arith.constant 3.200000e+01 : f32
    %108 = vector.broadcast %cst_50 : f32 to vector<8x1xf32>
    %109 = arith.divf %107, %108 : vector<8x1xf32>
    %110 = vector.broadcast %102 : vector<8x1xf32> to vector<8x32xf32>
    %111 = arith.subf %4, %110 : vector<8x32xf32>
    %cst_51 = arith.constant 9.99999974E-6 : f32
    %112 = vector.broadcast %cst_51 : f32 to vector<8x1xf32>
    %113 = arith.addf %109, %112 : vector<8x1xf32>
    %114 = math.rsqrt %113 : vector<8x1xf32>
    %115 = vector.broadcast %114 : vector<8x1xf32> to vector<8x32xf32>
    %116 = arith.mulf %111, %115 : vector<8x32xf32>
    %117 = vector.broadcast %96 : vector<1x32xf32> to vector<8x32xf32>
    %118 = arith.mulf %116, %117 : vector<8x32xf32>
    %119 = vector.broadcast %98 : vector<1x32xf32> to vector<8x32xf32>
    %120 = arith.addf %118, %119 : vector<8x32xf32>
    %121 = arith.truncf %120 : vector<8x32xf32> to vector<8x32xbf16>
    %c0_52 = arith.constant 0 : index
    %c0_53 = arith.constant 0 : index
    %c0_54 = arith.constant 0 : index
    %122 = vector.load %arg14[%c0_52, %c0_53, %c0_54] : memref<1x32x128xbf16, #tpu.memory_space<vmem>>, vector<1x32x128xbf16>
    %123 = vector.shape_cast %122 : vector<1x32x128xbf16> to vector<32x128xbf16>
    %cst_55 = arith.constant dense<0.000000e+00> : vector<8x128xf32>
    %124 = tpu.matmul %121, %123, %cst_55 {dimension_numbers = #tpu.dot_dimension_numbers<[1], [0], [0], [1], [0, 0, 1, 1], [], []>} : vector<8x32xbf16>, vector<32x128xbf16>, vector<8x128xf32> -> vector<8x128xf32>
    %c0_56 = arith.constant 0 : index
    %c0_57 = arith.constant 0 : index
    %c0_58 = arith.constant 0 : index
    %125 = vector.load %arg15[%c0_56, %c0_57, %c0_58] : memref<1x1x128xf32, #tpu.memory_space<vmem>>, vector<1x1x128xf32>
    %126 = vector.shape_cast %125 : vector<1x1x128xf32> to vector<1x128xf32>
    %127 = vector.broadcast %126 : vector<1x128xf32> to vector<8x128xf32>
    %128 = arith.addf %124, %127 : vector<8x128xf32>
    %129 = arith.mulf %128, %128 : vector<8x128xf32>
    %130 = arith.mulf %128, %129 : vector<8x128xf32>
    %cst_59 = arith.constant 4.471500e-02 : f32
    %131 = vector.broadcast %cst_59 : f32 to vector<8x128xf32>
    %132 = arith.mulf %131, %130 : vector<8x128xf32>
    %133 = arith.addf %128, %132 : vector<8x128xf32>
    %cst_60 = arith.constant 0.797884583 : f32
    %134 = vector.broadcast %cst_60 : f32 to vector<8x128xf32>
    %135 = arith.mulf %134, %133 : vector<8x128xf32>
    %136 = math.tanh %135 : vector<8x128xf32>
    %cst_61 = arith.constant 1.000000e+00 : f32
    %137 = vector.broadcast %cst_61 : f32 to vector<8x128xf32>
    %138 = arith.addf %137, %136 : vector<8x128xf32>
    %cst_62 = arith.constant 5.000000e-01 : f32
    %139 = vector.broadcast %cst_62 : f32 to vector<8x128xf32>
    %140 = arith.mulf %139, %138 : vector<8x128xf32>
    %141 = arith.mulf %128, %140 : vector<8x128xf32>
    %142 = arith.truncf %141 : vector<8x128xf32> to vector<8x128xbf16>
    %c0_63 = arith.constant 0 : index
    %c0_64 = arith.constant 0 : index
    %c0_65 = arith.constant 0 : index
    %143 = vector.load %arg16[%c0_63, %c0_64, %c0_65] : memref<1x128x32xbf16, #tpu.memory_space<vmem>>, vector<1x128x32xbf16>
    %144 = vector.shape_cast %143 : vector<1x128x32xbf16> to vector<128x32xbf16>
    %cst_66 = arith.constant dense<0.000000e+00> : vector<8x32xf32>
    %145 = tpu.matmul %142, %144, %cst_66 {dimension_numbers = #tpu.dot_dimension_numbers<[1], [0], [0], [1], [0, 0, 1, 1], [], []>} : vector<8x128xbf16>, vector<128x32xbf16>, vector<8x32xf32> -> vector<8x32xf32>
    %c0_67 = arith.constant 0 : index
    %c0_68 = arith.constant 0 : index
    %c0_69 = arith.constant 0 : index
    %146 = vector.load %arg17[%c0_67, %c0_68, %c0_69] : memref<1x1x32xf32, #tpu.memory_space<vmem>>, vector<1x1x32xf32>
    %147 = vector.shape_cast %146 : vector<1x1x32xf32> to vector<1x32xf32>
    %148 = vector.broadcast %147 : vector<1x32xf32> to vector<8x32xf32>
    %149 = arith.addf %145, %148 : vector<8x32xf32>
    %150 = arith.addf %4, %94 : vector<8x32xf32>
    %151 = arith.addf %150, %149 : vector<8x32xf32>
    %c0_70 = arith.constant 0 : index
    %c0_71 = arith.constant 0 : index
    %c0_72 = arith.constant 0 : index
    %152 = vector.load %arg18[%c0_70, %c0_71, %c0_72] : memref<1x8x32xf32, #tpu.memory_space<vmem>>, vector<1x8x32xf32>
    %153 = vector.shape_cast %152 : vector<1x8x32xf32> to vector<8x32xf32>
    %154 = vector.shape_cast %151 : vector<8x32xf32> to vector<1x8x32xf32>
    tpu.vector_store %arg18[%c0_70, %c0_71, %c0_72], %154 {strides = array<i32>} : memref<1x8x32xf32, #tpu.memory_space<vmem>>, vector<1x8x32xf32>,
    return
  }
  func.func @transform_0(%arg0: i32, %arg1: i32) -> (i32, i32, i32) {
    %c0_i32 = arith.constant 0 : i32
    %c0_i32_0 = arith.constant 0 : i32
    %c0_i32_1 = arith.constant 0 : i32
    return %arg0, %c0_i32, %c0_i32_0 : i32, i32, i32
  }
  func.func @transform_1(%arg0: i32, %arg1: i32) -> (i32, i32) {
    %c0_i32 = arith.constant 0 : i32
    %c0_i32_0 = arith.constant 0 : i32
    %c0_i32_1 = arith.constant 0 : i32
    return %c0_i32, %c0_i32_0 : i32, i32
  }
  func.func @transform_2(%arg0: i32, %arg1: i32) -> (i32, i32) {
    %c0_i32 = arith.constant 0 : i32
    %c0_i32_0 = arith.constant 0 : i32
    %c0_i32_1 = arith.constant 0 : i32
    return %c0_i32, %c0_i32_0 : i32, i32
  }
  func.func @transform_3(%arg0: i32, %arg1: i32) -> (i32, i32) {
    %c0_i32 = arith.constant 0 : i32
    %c0_i32_0 = arith.constant 0 : i32
    %c0_i32_1 = arith.constant 0 : i32
    return %c0_i32, %c0_i32_0 : i32, i32
  }
  func.func @transform_4(%arg0: i32, %arg1: i32) -> (i32, i32, i32) {
    %c0_i32 = arith.constant 0 : i32
    %c0_i32_0 = arith.constant 0 : i32
    %c0_i32_1 = arith.constant 0 : i32
    return %arg1, %c0_i32, %c0_i32_0 : i32, i32, i32
  }
  func.func @transform_5(%arg0: i32, %arg1: i32) -> (i32, i32, i32) {
    %c0_i32 = arith.constant 0 : i32
    %c0_i32_0 = arith.constant 0 : i32
    %c0_i32_1 = arith.constant 0 : i32
    return %arg1, %c0_i32, %c0_i32_0 : i32, i32, i32
  }
  func.func @transform_6(%arg0: i32, %arg1: i32) -> (i32, i32, i32) {
    %c0_i32 = arith.constant 0 : i32
    %c0_i32_0 = arith.constant 0 : i32
    %c0_i32_1 = arith.constant 0 : i32
    return %arg1, %c0_i32, %c0_i32_0 : i32, i32, i32
  }
  func.func @transform_7(%arg0: i32, %arg1: i32) -> (i32, i32, i32) {
    %c0_i32 = arith.constant 0 : i32
    %c0_i32_0 = arith.constant 0 : i32
    %c0_i32_1 = arith.constant 0 : i32
    return %arg1, %c0_i32, %c0_i32_0 : i32, i32, i32
  }
  func.func @transform_8(%arg0: i32, %arg1: i32) -> (i32, i32, i32) {
    %c0_i32 = arith.constant 0 : i32
    %c0_i32_0 = arith.constant 0 : i32
    %c0_i32_1 = arith.constant 0 : i32
    return %arg1, %c0_i32, %c0_i32_0 : i32, i32, i32
  }
  func.func @transform_9(%arg0: i32, %arg1: i32) -> (i32, i32, i32) {
    %c0_i32 = arith.constant 0 : i32
    %c0_i32_0 = arith.constant 0 : i32
    %c0_i32_1 = arith.constant 0 : i32
    return %arg1, %c0_i32, %c0_i32_0 : i32, i32, i32
  }
  func.func @transform_10(%arg0: i32, %arg1: i32) -> (i32, i32, i32) {
    %c0_i32 = arith.constant 0 : i32
    %c0_i32_0 = arith.constant 0 : i32
    %c0_i32_1 = arith.constant 0 : i32
    return %arg1, %c0_i32, %c0_i32_0 : i32, i32, i32
  }
  func.func @transform_11(%arg0: i32, %arg1: i32) -> (i32, i32, i32) {
    %c0_i32 = arith.constant 0 : i32
    %c0_i32_0 = arith.constant 0 : i32
    %c0_i32_1 = arith.constant 0 : i32
    return %arg1, %c0_i32, %c0_i32_0 : i32, i32, i32
  }
  func.func @transform_12(%arg0: i32, %arg1: i32) -> (i32, i32, i32) {
    %c0_i32 = arith.constant 0 : i32
    %c0_i32_0 = arith.constant 0 : i32
    %c0_i32_1 = arith.constant 0 : i32
    return %arg1, %c0_i32, %c0_i32_0 : i32, i32, i32
  }
  func.func @transform_13(%arg0: i32, %arg1: i32) -> (i32, i32, i32) {
    %c0_i32 = arith.constant 0 : i32
    %c0_i32_0 = arith.constant 0 : i32
    %c0_i32_1 = arith.constant 0 : i32
    return %arg1, %c0_i32, %c0_i32_0 : i32, i32, i32
  }
  func.func @transform_14(%arg0: i32, %arg1: i32) -> (i32, i32, i32) {
    %c0_i32 = arith.constant 0 : i32
    %c0_i32_0 = arith.constant 0 : i32
    %c0_i32_1 = arith.constant 0 : i32
    return %arg1, %c0_i32, %c0_i32_0 : i32, i32, i32
  }
  func.func @transform_15(%arg0: i32, %arg1: i32) -> (i32, i32, i32) {
    %c0_i32 = arith.constant 0 : i32
    %c0_i32_0 = arith.constant 0 : i32
    %c0_i32_1 = arith.constant 0 : i32
    return %arg1, %c0_i32, %c0_i32_0 : i32, i32, i32
  }
  func.func @transform_16(%arg0: i32, %arg1: i32) -> (i32, i32, i32) {
    %c0_i32 = arith.constant 0 : i32
    %c0_i32_0 = arith.constant 0 : i32
    %c0_i32_1 = arith.constant 0 : i32
    return %arg0, %c0_i32, %c0_i32_0 : i32, i32, i32
  }
}

</mosaic_0001>

<llo_original>
// kernel: gpt_stage_full_forward.3
$region0: #{gpt_stage_full_forward.3}
  #allocation0 [shape = 'u32[]', space=smem, size = 0x4, offset = 0x4, fixed_abs, tag = 'smem constant byte address 0x4 - core index']
  #allocation1 [shape = 'u32[144,128]{1,0:T(1,128)}', space=vmem, size = 0x12000, scoped, tag = 'internal scratch']
  %s0 = inlined_call_operand.vmem [shape: s32[16], index: 0, kind: input, shape index: {}]
  %s1 = inlined_call_operand.vmem [shape: f32[64,32], index: 1, kind: input, shape index: {}]
  %s2 = inlined_call_operand.vmem [shape: f32[16,32], index: 2, kind: output, shape index: {}]
  %s3 = sld [smem:[#allocation0]]
  $region22: #{gpt_stage_full_forward.3} parent=0
    _
  %s5 = ssub.s32 1, %s3
  %s6 = scalar_select 0, %s5, %s3
  $region1: #{gpt_stage_full_forward.3} parent=0
    #allocation2 [shape = 'u8[512]{0}', space=smem, size = 0x200, scoped, tag = 'input window, operand 0, single buffered']
    #allocation3 [shape = 's32[1]{0}', space=sflag, size = 0x4, scoped, tag = 'scoped memory for gpt_stage_full_forward.3']
    %7 = vsyncpa [#allocation3], 0
    // Predicated region
    $region2: #{gpt_stage_full_forward.3} parent=1 // pred_check
      _
    $region3: #{gpt_stage_full_forward.3} parent=1 // pred_check_branch
      %9 = sbr.rel (0) target = $region5
    $region4: #{gpt_stage_full_forward.3} parent=1 // pred_region
      %s11 = ssub.s32 16, 16
      %12 = vsyncadd [#allocation3], %s11
      %s14 = sshll.u32 %s0, 4
      %s15 = int_to_ptr.vmem [resolvable:$true] %s14
      %17 = dma.vmem_to_smem %s15, 16, [#allocation2], [#allocation3]
    $region5: #{gpt_stage_full_forward.3} parent=1 // pred_fallthru
      _
    // Predicated region
    $region6: #{gpt_stage_full_forward.3} parent=1 // pred_check
      _
    $region7: #{gpt_stage_full_forward.3} parent=1 // pred_check_branch
      %19 = sbr.rel (0) target = $region9
    $region8: #{gpt_stage_full_forward.3} parent=1 // pred_region
      _
    $region9: #{gpt_stage_full_forward.3} parent=1 // pred_fallthru
      _
    // Predicated region
    $region10: #{gpt_stage_full_forward.3} parent=1 // pred_check
      _
    $region11: #{gpt_stage_full_forward.3} parent=1 // pred_check_branch
      %21 = sbr.rel (0) target = $region13
    $region12: #{gpt_stage_full_forward.3} parent=1 // pred_region
      %22 = dma.done [#allocation3], 16
    $region13: #{gpt_stage_full_forward.3} parent=1 // pred_fallthru
      _
    %23 = sfence
    %s24 = sld [smem:[#allocation2]]
    %s25 = scalar_lea.vmem %s1, %s24
    %v26 = vld [vmem:[%s25] sm:$0x1]
    %vm27 = vcmask 253952
    %28 = vst.msk [vmem:[%s2] sm:$0x1] %vm27, %v26
    %s29 = sld [smem:[#allocation2 + $0x1]]
    %s30 = scalar_lea.vmem %s1, %s29
    %v31 = vld [vmem:[%s30] sm:$0x1]
    %32 = vst.msk [vmem:[%s2 + $0x1] sm:$0x1] %vm27, %v31
    %s33 = sld [smem:[#allocation2 + $0x2]]
    %s34 = scalar_lea.vmem %s1, %s33
    %v35 = vld [vmem:[%s34] sm:$0x1]
    %36 = vst.msk [vmem:[%s2 + $0x2] sm:$0x1] %vm27, %v35
    %s37 = sld [smem:[#allocation2 + $0x3]]
    %s38 = scalar_lea.vmem %s1, %s37
    %v39 = vld [vmem:[%s38] sm:$0x1]
    %40 = vst.msk [vmem:[%s2 + $0x3] sm:$0x1] %vm27, %v39
    %s41 = sld [smem:[#allocation2 + $0x4]]
    %s42 = scalar_lea.vmem %s1, %s41
    %v43 = vld [vmem:[%s42] sm:$0x1]
    %44 = vst.msk [vmem:[%s2 + $0x4] sm:$0x1] %vm27, %v43
    %s45 = sld [smem:[#allocation2 + $0x5]]
    %s46 = scalar_lea.vmem %s1, %s45
    %v47 = vld [vmem:[%s46] sm:$0x1]
    %48 = vst.msk [vmem:[%s2 + $0x5] sm:$0x1] %vm27, %v47
    %s49 = sld [smem:[#allocation2 + $0x6]]
    %s50 = scalar_lea.vmem %s1, %s49
    %v51 = vld [vmem:[%s50] sm:$0x1]
    %52 = vst.msk [vmem:[%s2 + $0x6] sm:$0x1] %vm27, %v51
    %s53 = sld [smem:[#allocation2 + $0x7]]
    %s54 = scalar_lea.vmem %s1, %s53
    %v55 = vld [vmem:[%s54] sm:$0x1]
    %56 = vst.msk [vmem:[%s2 + $0x7] sm:$0x1] %vm27, %v55
    %s57 = sld [smem:[#allocation2 + $0x8]]
    %s58 = scalar_lea.vmem %s1, %s57
    %v59 = vld [vmem:[%s58] sm:$0x1]
    %60 = vst.msk [vmem:[%s2 + $0x8] sm:$0x1] %vm27, %v59
    %s61 = sld [smem:[#allocation2 + $0x9]]
    %s62 = scalar_lea.vmem %s1, %s61
    %v63 = vld [vmem:[%s62] sm:$0x1]
    %64 = vst.msk [vmem:[%s2 + $0x9] sm:$0x1] %vm27, %v63
    %s65 = sld [smem:[#allocation2 + $0xa]]
    %s66 = scalar_lea.vmem %s1, %s65
    %v67 = vld [vmem:[%s66] sm:$0x1]
    %68 = vst.msk [vmem:[%s2 + $0xa] sm:$0x1] %vm27, %v67
    %s69 = sld [smem:[#allocation2 + $0xb]]
    %s70 = scalar_lea.vmem %s1, %s69
    %v71 = vld [vmem:[%s70] sm:$0x1]
    %72 = vst.msk [vmem:[%s2 + $0xb] sm:$0x1] %vm27, %v71
    %s73 = sld [smem:[#allocation2 + $0xc]]
    %s74 = scalar_lea.vmem %s1, %s73
    %v75 = vld [vmem:[%s74] sm:$0x1]
    %76 = vst.msk [vmem:[%s2 + $0xc] sm:$0x1] %vm27, %v75
    %s77 = sld [smem:[#allocation2 + $0xd]]
    %s78 = scalar_lea.vmem %s1, %s77
    %v79 = vld [vmem:[%s78] sm:$0x1]
    %80 = vst.msk [vmem:[%s2 + $0xd] sm:$0x1] %vm27, %v79
    %s81 = sld [smem:[#allocation2 + $0xe]]
    %s82 = scalar_lea.vmem %s1, %s81
    %v83 = vld [vmem:[%s82] sm:$0x1]
    %84 = vst.msk [vmem:[%s2 + $0xe] sm:$0x1] %vm27, %v83
    %s85 = sld [smem:[#allocation2 + $0xf]]
    %s86 = scalar_lea.vmem %s1, %s85
    %v87 = vld [vmem:[%s86] sm:$0x1]
    %88 = vst.msk [vmem:[%s2 + $0xf] sm:$0x1] %vm27, %v87
    // Predicated region
    $region14: #{gpt_stage_full_forward.3} parent=1 // pred_check
      _
    $region15: #{gpt_stage_full_forward.3} parent=1 // pred_check_branch
      %90 = sbr.rel (0) target = $region17
    $region16: #{gpt_stage_full_forward.3} parent=1 // pred_region
      _
    $region17: #{gpt_stage_full_forward.3} parent=1 // pred_fallthru
      _
    // Predicated region
    $region18: #{gpt_stage_full_forward.3} parent=1 // pred_check
      _
    $region19: #{gpt_stage_full_forward.3} parent=1 // pred_check_branch
      %92 = sbr.rel (0) target = $region21
    $region20: #{gpt_stage_full_forward.3} parent=1 // pred_region
      _
    $region21: #{gpt_stage_full_forward.3} parent=1 // pred_fallthru
      _
    %93 = vsyncpa [#allocation3], 1

// kernel: gpt_stage_full_forward.5
$region0: #{gpt_stage_full_forward.5}
  #allocation0 [shape = 'u32[]', space=smem, size = 0x4, offset = 0x4, fixed_abs, tag = 'smem constant byte address 0x4 - core index']
  #allocation1 [shape = 'u32[144,128]{1,0:T(1,128)}', space=vmem, size = 0x12000, scoped, tag = 'internal scratch']
  %s0 = inlined_call_operand.vmem [shape: f32[16,32], index: 0, kind: input, shape index: {}]
  %s1 = inlined_call_operand.vmem [shape: f32[1,32], index: 1, kind: input, shape index: {}]
  %s2 = inlined_call_operand.vmem [shape: f32[1,32], index: 2, kind: input, shape index: {}]
  %s3 = inlined_call_operand.vmem [shape: bf16[32,64], index: 3, kind: input, shape index: {}]
  %s4 = inlined_call_operand.hbm [shape: f32[16,64], index: 4, kind: output, shape index: {}]
  %s5 = sld [smem:[#allocation0]]
  $region26: #{gpt_stage_full_forward.5} parent=0
    _
  %s7 = ssub.s32 1, %s5
  %s8 = scalar_select 0, %s7, %s5
  $region1: #{gpt_stage_full_forward.5} parent=0
    #allocation2 [shape = 'u8[8192]{0}', space=vmem, size = 0x2000, scoped, tag = 'output window, operand 0, single buffered']
    #allocation3 [shape = 's32[1]{0}', space=sflag, size = 0x4, scoped, tag = 'scoped memory for gpt_stage_full_forward.5']
    %9 = vsyncpa [#allocation3], 0
    // Predicated region
    $region2: #{gpt_stage_full_forward.5} parent=1 // pred_check
      _
    $region3: #{gpt_stage_full_forward.5} parent=1 // pred_check_branch
      %11 = sbr.rel (0) target = $region5
    $region4: #{gpt_stage_full_forward.5} parent=1 // pred_region
      _
    $region5: #{gpt_stage_full_forward.5} parent=1 // pred_fallthru
      _
    // Predicated region
    $region6: #{gpt_stage_full_forward.5} parent=1 // pred_check
      _
    $region7: #{gpt_stage_full_forward.5} parent=1 // pred_check_branch
      %13 = sbr.rel (0) target = $region9
    $region8: #{gpt_stage_full_forward.5} parent=1 // pred_region
      _
    $region9: #{gpt_stage_full_forward.5} parent=1 // pred_fallthru
      _
    // Predicated region
    $region10: #{gpt_stage_full_forward.5} parent=1 // pred_check
      _
    $region11: #{gpt_stage_full_forward.5} parent=1 // pred_check_branch
      %15 = sbr.rel (0) target = $region13
    $region12: #{gpt_stage_full_forward.5} parent=1 // pred_region
      _
    $region13: #{gpt_stage_full_forward.5} parent=1 // pred_fallthru
      _
    // Predicated region
    $region14: #{gpt_stage_full_forward.5} parent=1 // pred_check
      _
    $region15: #{gpt_stage_full_forward.5} parent=1 // pred_check_branch
      %17 = sbr.rel (0) target = $region17
    $region16: #{gpt_stage_full_forward.5} parent=1 // pred_region
      _
    $region17: #{gpt_stage_full_forward.5} parent=1 // pred_fallthru
      _
    %v19 = vld [vmem:[%s0] sm:$0xff]
    %v20 = vld [vmem:[%s0 + $0x8] sm:$0xff]
    %v21 = vld [vmem:[%s1] sm:$0x1]
    %v22 = vld [vmem:[%s2] sm:$0x1]
    %vm23 = vcmask 261120
    %v24 = vsel %vm23, %v19, 0.0
    %25 = vadd.xlane.f32.xlu0 %v24
    %v26 = vpop.xlane.xlu0 %25
    %v27 = vsel %vm23, %v20, 0.0
    %28 = vadd.xlane.f32.xlu0 %v27
    %v29 = vpop.xlane.xlu0 %28
    %v30 = vrcp.pop 32.0
    %v31 = vmul.f32 %v26, %v30
    %v32 = vmul.f32 %v29, %v30
    %v33 = vsub.f32 %v19, %v31
    %v34 = vsub.f32 %v20, %v32
    %v35 = vmul.f32 %v33, %v33
    %v36 = vmul.f32 %v34, %v34
    %v37 = vsel %vm23, %v35, 0.0
    %38 = vadd.xlane.f32.xlu0 %v37
    %v39 = vpop.xlane.xlu0 %38
    %v40 = vsel %vm23, %v36, 0.0
    %41 = vadd.xlane.f32.xlu0 %v40
    %v42 = vpop.xlane.xlu0 %41
    %v43 = vmul.f32 %v39, %v30
    %v44 = vmul.f32 %v42, %v30
    %v45 = vadd.f32 %v43, 1e-05
    %v46 = vadd.f32 %v44, 1e-05
    %v47 = vrsqrt.pop %v45
    %v48 = vrsqrt.pop %v46
    %v49 = vmul.f32 %v33, %v47
    %v50 = vmul.f32 %v34, %v48
    %v52 = vlaneseq
    %v53 = vshrl.u32 %v52, 7
    %v54 = vsub.s32 0, %v53
    %v55 = vrot.slane %v21, %v54
    %v57 = vmul.f32 %v49, %v55
    %v58 = vmul.f32 %v50, %v55
    %v60 = vlaneseq
    %v61 = vshrl.u32 %v60, 7
    %v62 = vsub.s32 0, %v61
    %v63 = vrot.slane %v22, %v62
    %v65 = vadd.f32 %v57, %v63
    %v66 = vadd.f32 %v58, %v63
    %v67 = vpack.c.bf16 %v66, %v65
    %v68 = vld [vmem:[%s3] sm:$0xf]
    %v69 = vld [vmem:[%s3 + $0x4] sm:$0xf]
    %v70 = vld [vmem:[%s3 + $0x8] sm:$0xf]
    %v71 = vld [vmem:[%s3 + $0xc] sm:$0xf]
    %v76 = vunpack.c.l.b16 %v68
    %v77 = vunpack.c.l.b16 %v69
    %v78 = vunpack.c.l.b16 %v70
    %v79 = vunpack.c.l.b16 %v71
    %v80 = vpack.c.b16 %v77, %v76
    %v81 = vpack.c.b16 %v79, %v78
    %v85 = vsel %vm23, %v67, 0
    %87 = vmatprep.subr.bf16.mxu0 0
    %88 = vmatpush1.bf16.msra.mxu0 0
    %89 = vmatprep.subr.bf16.mxu0 0
    %90 = vmatpush1.bf16.msra.mxu0 0
    %91 = vmatprep.subr.bf16.mxu0 0
    %92 = vmatpush1.bf16.msra.mxu0 0
    %93 = vmatprep.subr.bf16.mxu0 0
    %94 = vmatpush1.bf16.msra.mxu0 0
    %95 = vmatprep.subr.bf16.mxu0 0
    %96 = vmatpush1.bf16.msra.mxu0 0
    %97 = vmatprep.subr.bf16.mxu0 0
    %98 = vmatpush1.bf16.msra.mxu0 0
    %99 = vmatprep.subr.bf16.mxu0 0
    %100 = vmatpush1.bf16.msra.mxu0 %v81
    %101 = vmatprep.subr.bf16.mxu0 0
    %102 = vmatpush1.bf16.msra.mxu0 %v80
    %103 = vmatprep.subr.bf16.mxu0 0
    %104 = vmatpush2.bf16.msra.mxu0 0
    %105 = vmatprep.subr.bf16.mxu0 0
    %106 = vmatpush2.bf16.msra.mxu0 0
    %107 = vmatprep.subr.bf16.mxu0 0
    %108 = vmatpush2.bf16.msra.mxu0 0
    %109 = vmatprep.subr.bf16.mxu0 0
    %110 = vmatpush2.bf16.msra.mxu0 0
    %111 = vmatprep.subr.bf16.mxu0 0
    %112 = vmatpush2.bf16.msra.mxu0 0
    %113 = vmatprep.subr.bf16.mxu0 0
    %114 = vmatpush2.bf16.msra.mxu0 0
    %115 = vmatprep.subr.bf16.mxu0 0
    %116 = vmatpush2.bf16.msra.mxu0 0
    %117 = vmatprep.subr.bf16.mxu0 0
    %118 = vmatpush2.bf16.msra.mxu0 0
    %119 = vmatprep.mubr.bf16.mxu0 0
    %120 = vmatmul.mubr.bf16.gmra.mxu0 %v85
    %v121 = vpop.f32.mrf.mxu0
    %v122 = vadd.f32 0.0, %v121
    %v123 = vpop.f32.mrf.mxu0
    %v124 = vpop.f32.mrf.mxu0
    %v125 = vadd.f32 0.0, %v124
    %v126 = vpop.f32.mrf.mxu0
    %127 = vdwg.mxu0
    %vm128 = vcmask 523264
    %129 = vst.msk [vmem:[#allocation2] sm:$0xff] %vm128, %v122
    %130 = vst.msk [vmem:[#allocation2 + $0x8] sm:$0xff] %vm128, %v125
    // Predicated region
    $region18: #{gpt_stage_full_forward.5} parent=1 // pred_check
      _
    $region19: #{gpt_stage_full_forward.5} parent=1 // pred_check_branch
      %132 = sbr.rel (0) target = $region21
    $region20: #{gpt_stage_full_forward.5} parent=1 // pred_region
      %s134 = ssub.s32 256, 256
      %135 = vsyncadd [#allocation3], %s134
      %s136 = sshll.u32 [#allocation2], 4
      %s137 = int_to_ptr.vmem [resolvable:$true] %s136
      %142 = dma.vmem_to_hbm [thread:$0]  %s137, 256, %s4, [#allocation3], 128, 128, 8
    $region21: #{gpt_stage_full_forward.5} parent=1 // pred_fallthru
      _
    // Predicated region
    $region22: #{gpt_stage_full_forward.5} parent=1 // pred_check
      _
    $region23: #{gpt_stage_full_forward.5} parent=1 // pred_check_branch
      %144 = sbr.rel (0) target = $region25
    $region24: #{gpt_stage_full_forward.5} parent=1 // pred_region
      %145 = dma.done [#allocation3], 256
    $region25: #{gpt_stage_full_forward.5} parent=1 // pred_fallthru
      _
    %146 = vsyncpa [#allocation3], 1

// kernel: gpt_stage_full_forward.4
$region0: #{gpt_stage_full_forward.4}
  #allocation0 [shape = 'u32[]', space=smem, size = 0x4, offset = 0x4, fixed_abs, tag = 'smem constant byte address 0x4 - core index']
  #allocation1 [shape = 'u32[144,128]{1,0:T(1,128)}', space=vmem, size = 0x12000, scoped, tag = 'internal scratch']
  %s0 = inlined_call_operand.vmem [shape: f32[2,8,32], index: 0, kind: input, shape index: {}]
  %s1 = inlined_call_operand.vmem [shape: f32[8,32], index: 1, kind: input, shape index: {}]
  %s2 = inlined_call_operand.vmem [shape: f32[8,32], index: 2, kind: input, shape index: {}]
  %s3 = inlined_call_operand.vmem [shape: f32[32,32], index: 3, kind: input, shape index: {}]
  %s4 = inlined_call_operand.vmem [shape: f32[2,1,32], index: 4, kind: input, shape index: {}]
  %s5 = inlined_call_operand.vmem [shape: f32[2,1,32], index: 5, kind: input, shape index: {}]
  %s6 = inlined_call_operand.vmem [shape: f32[2,1,32], index: 6, kind: input, shape index: {}]
  %s7 = inlined_call_operand.vmem [shape: f32[2,1,32], index: 7, kind: input, shape index: {}]
  %s8 = inlined_call_operand.vmem [shape: bf16[2,32,96], index: 8, kind: input, shape index: {}]
  %s9 = inlined_call_operand.vmem [shape: f32[2,1,96], index: 9, kind: input, shape index: {}]
  %s10 = inlined_call_operand.vmem [shape: bf16[2,32,32], index: 10, kind: input, shape index: {}]
  %s11 = inlined_call_operand.vmem [shape: f32[2,1,32], index: 11, kind: input, shape index: {}]
  %s12 = inlined_call_operand.vmem [shape: bf16[2,32,128], index: 12, kind: input, shape index: {}]
  %s13 = inlined_call_operand.vmem [shape: f32[2,1,128], index: 13, kind: input, shape index: {}]
  %s14 = inlined_call_operand.vmem [shape: bf16[2,128,32], index: 14, kind: input, shape index: {}]
  %s15 = inlined_call_operand.vmem [shape: f32[2,1,32], index: 15, kind: input, shape index: {}]
  %s16 = inlined_call_operand.vmem [shape: f32[2,8,32], index: 16, kind: output, shape index: {}]
  %s17 = sld [smem:[#allocation0]]
  $region101: #{gpt_stage_full_forward.4} parent=0
    _
  %s19 = ssub.s32 1, %s17
  %s20 = scalar_select 0, %s19, %s17
  loop: start=0, step=1, limit=6
  $region2: #{gpt_stage_full_forward.4} parent=0 // loop_pre_header
    _
  $region3: #{gpt_stage_full_forward.4} parent=0 // loop_header
    %s22 = sphi 0, %s26
    %p23 = scmp.ge.s32.totalorder %s22, 6
    %s29 = sphi 0, %s41
    %s30 = sphi 0, %s37
    %s31 = sphi 0, %s29
    %s32 = sphi 0, %s30
    %s33 = sphi 0, %s31
    %s34 = sphi 0, %s32
    %s44 = sphi 0, %s46
    %s47 = sphi 0, %s44
    %s48 = sphi 0, %s47
    %s64 = sphi 0, %s48
    %s68 = sphi 0, %s68
    %s70 = sphi 0, %s68
    %s71 = sphi 0, %s70
    %s85 = sphi 0, %s71
    %s89 = sphi 0, %s89
    %s91 = sphi 0, %s89
    %s92 = sphi 0, %s91
    %s106 = sphi 0, %s92
    %s110 = sphi 0, %s110
    %s112 = sphi 0, %s110
    %s113 = sphi 0, %s112
    %s127 = sphi 0, %s113
    %s133 = sphi 0, %s135
    %s136 = sphi 0, %s133
    %s137 = sphi 0, %s136
    %s153 = sphi 0, %s137
    %s159 = sphi 0, %s161
    %s162 = sphi 0, %s159
    %s163 = sphi 0, %s162
    %s179 = sphi 0, %s163
    %s185 = sphi 0, %s187
    %s188 = sphi 0, %s185
    %s189 = sphi 0, %s188
    %s205 = sphi 0, %s189
    %s211 = sphi 0, %s213
    %s214 = sphi 0, %s211
    %s215 = sphi 0, %s214
    %s231 = sphi 0, %s215
    %s237 = sphi 0, %s239
    %s240 = sphi 0, %s237
    %s241 = sphi 0, %s240
    %s257 = sphi 0, %s241
    %s263 = sphi 0, %s265
    %s266 = sphi 0, %s263
    %s267 = sphi 0, %s266
    %s283 = sphi 0, %s267
    %s289 = sphi 0, %s291
    %s292 = sphi 0, %s289
    %s293 = sphi 0, %s292
    %s309 = sphi 0, %s293
    %s315 = sphi 0, %s317
    %s318 = sphi 0, %s315
    %s319 = sphi 0, %s318
    %s335 = sphi 0, %s319
    %s341 = sphi 0, %s343
    %s344 = sphi 0, %s341
    %s345 = sphi 0, %s344
    %s361 = sphi 0, %s345
    %s367 = sphi 0, %s369
    %s370 = sphi 0, %s367
    %s371 = sphi 0, %s370
    %s387 = sphi 0, %s371
    %s393 = sphi 0, %s395
    %s396 = sphi 0, %s393
    %s397 = sphi 0, %s396
    %s413 = sphi 0, %s397
    %s419 = sphi 0, %s421
    %s422 = sphi 0, %s419
    %s423 = sphi 0, %s422
    %s439 = sphi 0, %s423
    %s445 = sphi 0, %s447
    %s448 = sphi 0, %s445
    %s449 = sphi 0, %s448
    %s465 = sphi 0, %s449
  $region4: #{gpt_stage_full_forward.4} parent=0 // loop_header_branch
    %25 = sbr.rel (%p23) target = $region8
  $region5: #{gpt_stage_full_forward.4} parent=0 // loop_body
    %s27 = ssub.s32 %s22, 1
    %s28 = ssub.s32 %s22, 2
    %s35 = sadd.s32 1, %s30
    %p36 = scmp.ge.s32.totalorder %s35, 2
    %s37 = scalar_select %p36, 0, %s35
    %s38 = sadd.s32 1, %s29
    %s39 = scalar_select %p36, %s38, %s29
    %p40 = scmp.ge.s32.totalorder %s39, 2
    %s41 = scalar_select %p40, 0, %s39
    %s42 = ssub.s32 %s29, %s41
    %p43 = scmp.eq.s32.totalorder %s42, 0
    %s45 = sadd.s32 %s44, 1
    %s46 = scalar_select %p43, %s44, %s45
    %p49 = pneg %p43
    %p50 = scmp.eq.s32.totalorder %s22, 3
    %p51 = por %p49, %p50
    %p52 = scmp.ne.s32.totalorder %s44, %s47
    %p53 = scmp.eq.s32.totalorder %s22, 0
    %p54 = por %p52, %p53
    %p55 = scmp.ne.s32.totalorder %s44, %s47
    %p56 = scmp.eq.s32.totalorder %s27, 3
    %p57 = por %p55, %p56
    %p58 = scmp.ne.s32.totalorder %s47, %s48
    %p59 = scmp.eq.s32.totalorder %s27, 0
    %p60 = por %p58, %p59
    %p61 = scmp.ne.s32.totalorder %s47, %s48
    %p62 = scmp.eq.s32.totalorder %s28, 3
    %p63 = por %p61, %p62
    %p65 = scmp.ne.s32.totalorder %s48, %s64
    %p66 = scmp.eq.s32.totalorder %s28, 0
    %p67 = por %p65, %p66
    %s69 = sadd.s32 %s68, 1
    %p72 = scmp.eq.s32.totalorder %s22, 3
    %p73 = scmp.ne.s32.totalorder %s68, %s70
    %p74 = scmp.eq.s32.totalorder %s22, 0
    %p75 = por %p73, %p74
    %p76 = scmp.ne.s32.totalorder %s68, %s70
    %p77 = scmp.eq.s32.totalorder %s27, 3
    %p78 = por %p76, %p77
    %p79 = scmp.ne.s32.totalorder %s70, %s71
    %p80 = scmp.eq.s32.totalorder %s27, 0
    %p81 = por %p79, %p80
    %p82 = scmp.ne.s32.totalorder %s70, %s71
    %p83 = scmp.eq.s32.totalorder %s28, 3
    %p84 = por %p82, %p83
    %p86 = scmp.ne.s32.totalorder %s71, %s85
    %p87 = scmp.eq.s32.totalorder %s28, 0
    %p88 = por %p86, %p87
    %s90 = sadd.s32 %s89, 1
    %p93 = scmp.eq.s32.totalorder %s22, 3
    %p94 = scmp.ne.s32.totalorder %s89, %s91
    %p95 = scmp.eq.s32.totalorder %s22, 0
    %p96 = por %p94, %p95
    %p97 = scmp.ne.s32.totalorder %s89, %s91
    %p98 = scmp.eq.s32.totalorder %s27, 3
    %p99 = por %p97, %p98
    %p100 = scmp.ne.s32.totalorder %s91, %s92
    %p101 = scmp.eq.s32.totalorder %s27, 0
    %p102 = por %p100, %p101
    %p103 = scmp.ne.s32.totalorder %s91, %s92
    %p104 = scmp.eq.s32.totalorder %s28, 3
    %p105 = por %p103, %p104
    %p107 = scmp.ne.s32.totalorder %s92, %s106
    %p108 = scmp.eq.s32.totalorder %s28, 0
    %p109 = por %p107, %p108
    %s111 = sadd.s32 %s110, 1
    %p114 = scmp.eq.s32.totalorder %s22, 3
    %p115 = scmp.ne.s32.totalorder %s110, %s112
    %p116 = scmp.eq.s32.totalorder %s22, 0
    %p117 = por %p115, %p116
    %p118 = scmp.ne.s32.totalorder %s110, %s112
    %p119 = scmp.eq.s32.totalorder %s27, 3
    %p120 = por %p118, %p119
    %p121 = scmp.ne.s32.totalorder %s112, %s113
    %p122 = scmp.eq.s32.totalorder %s27, 0
    %p123 = por %p121, %p122
    %p124 = scmp.ne.s32.totalorder %s112, %s113
    %p125 = scmp.eq.s32.totalorder %s28, 3
    %p126 = por %p124, %p125
    %p128 = scmp.ne.s32.totalorder %s113, %s127
    %p129 = scmp.eq.s32.totalorder %s28, 0
    %p130 = por %p128, %p129
    %s131 = ssub.s32 %s30, %s37
    %p132 = scmp.eq.s32.totalorder %s131, 0
    %s134 = sadd.s32 %s133, 1
    %s135 = scalar_select %p132, %s133, %s134
    %p138 = pneg %p132
    %p139 = scmp.eq.s32.totalorder %s22, 3
    %p140 = por %p138, %p139
    %p141 = scmp.ne.s32.totalorder %s133, %s136
    %p142 = scmp.eq.s32.totalorder %s22, 0
    %p143 = por %p141, %p142
    %p144 = scmp.ne.s32.totalorder %s133, %s136
    %p145 = scmp.eq.s32.totalorder %s27, 3
    %p146 = por %p144, %p145
    %p147 = scmp.ne.s32.totalorder %s136, %s137
    %p148 = scmp.eq.s32.totalorder %s27, 0
    %p149 = por %p147, %p148
    %p150 = scmp.ne.s32.totalorder %s136, %s137
    %p151 = scmp.eq.s32.totalorder %s28, 3
    %p152 = por %p150, %p151
    %p154 = scmp.ne.s32.totalorder %s137, %s153
    %p155 = scmp.eq.s32.totalorder %s28, 0
    %p156 = por %p154, %p155
    %s157 = ssub.s32 %s30, %s37
    %p158 = scmp.eq.s32.totalorder %s157, 0
    %s160 = sadd.s32 %s159, 1
    %s161 = scalar_select %p158, %s159, %s160
    %p164 = pneg %p158
    %p165 = scmp.eq.s32.totalorder %s22, 3
    %p166 = por %p164, %p165
    %p167 = scmp.ne.s32.totalorder %s159, %s162
    %p168 = scmp.eq.s32.totalorder %s22, 0
    %p169 = por %p167, %p168
    %p170 = scmp.ne.s32.totalorder %s159, %s162
    %p171 = scmp.eq.s32.totalorder %s27, 3
    %p172 = por %p170, %p171
    %p173 = scmp.ne.s32.totalorder %s162, %s163
    %p174 = scmp.eq.s32.totalorder %s27, 0
    %p175 = por %p173, %p174
    %p176 = scmp.ne.s32.totalorder %s162, %s163
    %p177 = scmp.eq.s32.totalorder %s28, 3
    %p178 = por %p176, %p177
    %p180 = scmp.ne.s32.totalorder %s163, %s179
    %p181 = scmp.eq.s32.totalorder %s28, 0
    %p182 = por %p180, %p181
    %s183 = ssub.s32 %s30, %s37
    %p184 = scmp.eq.s32.totalorder %s183, 0
    %s186 = sadd.s32 %s185, 1
    %s187 = scalar_select %p184, %s185, %s186
    %p190 = pneg %p184
    %p191 = scmp.eq.s32.totalorder %s22, 3
    %p192 = por %p190, %p191
    %p193 = scmp.ne.s32.totalorder %s185, %s188
    %p194 = scmp.eq.s32.totalorder %s22, 0
    %p195 = por %p193, %p194
    %p196 = scmp.ne.s32.totalorder %s185, %s188
    %p197 = scmp.eq.s32.totalorder %s27, 3
    %p198 = por %p196, %p197
    %p199 = scmp.ne.s32.totalorder %s188, %s189
    %p200 = scmp.eq.s32.totalorder %s27, 0
    %p201 = por %p199, %p200
    %p202 = scmp.ne.s32.totalorder %s188, %s189
    %p203 = scmp.eq.s32.totalorder %s28, 3
    %p204 = por %p202, %p203
    %p206 = scmp.ne.s32.totalorder %s189, %s205
    %p207 = scmp.eq.s32.totalorder %s28, 0
    %p208 = por %p206, %p207
    %s209 = ssub.s32 %s30, %s37
    %p210 = scmp.eq.s32.totalorder %s209, 0
    %s212 = sadd.s32 %s211, 1
    %s213 = scalar_select %p210, %s211, %s212
    %p216 = pneg %p210
    %p217 = scmp.eq.s32.totalorder %s22, 3
    %p218 = por %p216, %p217
    %p219 = scmp.ne.s32.totalorder %s211, %s214
    %p220 = scmp.eq.s32.totalorder %s22, 0
    %p221 = por %p219, %p220
    %p222 = scmp.ne.s32.totalorder %s211, %s214
    %p223 = scmp.eq.s32.totalorder %s27, 3
    %p224 = por %p222, %p223
    %p225 = scmp.ne.s32.totalorder %s214, %s215
    %p226 = scmp.eq.s32.totalorder %s27, 0
    %p227 = por %p225, %p226
    %p228 = scmp.ne.s32.totalorder %s214, %s215
    %p229 = scmp.eq.s32.totalorder %s28, 3
    %p230 = por %p228, %p229
    %p232 = scmp.ne.s32.totalorder %s215, %s231
    %p233 = scmp.eq.s32.totalorder %s28, 0
    %p234 = por %p232, %p233
    %s235 = ssub.s32 %s30, %s37
    %p236 = scmp.eq.s32.totalorder %s235, 0
    %s238 = sadd.s32 %s237, 1
    %s239 = scalar_select %p236, %s237, %s238
    %p242 = pneg %p236
    %p243 = scmp.eq.s32.totalorder %s22, 3
    %p244 = por %p242, %p243
    %p245 = scmp.ne.s32.totalorder %s237, %s240
    %p246 = scmp.eq.s32.totalorder %s22, 0
    %p247 = por %p245, %p246
    %p248 = scmp.ne.s32.totalorder %s237, %s240
    %p249 = scmp.eq.s32.totalorder %s27, 3
    %p250 = por %p248, %p249
    %p251 = scmp.ne.s32.totalorder %s240, %s241
    %p252 = scmp.eq.s32.totalorder %s27, 0
    %p253 = por %p251, %p252
    %p254 = scmp.ne.s32.totalorder %s240, %s241
    %p255 = scmp.eq.s32.totalorder %s28, 3
    %p256 = por %p254, %p255
    %p258 = scmp.ne.s32.totalorder %s241, %s257
    %p259 = scmp.eq.s32.totalorder %s28, 0
    %p260 = por %p258, %p259
    %s261 = ssub.s32 %s30, %s37
    %p262 = scmp.eq.s32.totalorder %s261, 0
    %s264 = sadd.s32 %s263, 1
    %s265 = scalar_select %p262, %s263, %s264
    %p268 = pneg %p262
    %p269 = scmp.eq.s32.totalorder %s22, 3
    %p270 = por %p268, %p269
    %p271 = scmp.ne.s32.totalorder %s263, %s266
    %p272 = scmp.eq.s32.totalorder %s22, 0
    %p273 = por %p271, %p272
    %p274 = scmp.ne.s32.totalorder %s263, %s266
    %p275 = scmp.eq.s32.totalorder %s27, 3
    %p276 = por %p274, %p275
    %p277 = scmp.ne.s32.totalorder %s266, %s267
    %p278 = scmp.eq.s32.totalorder %s27, 0
    %p279 = por %p277, %p278
    %p280 = scmp.ne.s32.totalorder %s266, %s267
    %p281 = scmp.eq.s32.totalorder %s28, 3
    %p282 = por %p280, %p281
    %p284 = scmp.ne.s32.totalorder %s267, %s283
    %p285 = scmp.eq.s32.totalorder %s28, 0
    %p286 = por %p284, %p285
    %s287 = ssub.s32 %s30, %s37
    %p288 = scmp.eq.s32.totalorder %s287, 0
    %s290 = sadd.s32 %s289, 1
    %s291 = scalar_select %p288, %s289, %s290
    %p294 = pneg %p288
    %p295 = scmp.eq.s32.totalorder %s22, 3
    %p296 = por %p294, %p295
    %p297 = scmp.ne.s32.totalorder %s289, %s292
    %p298 = scmp.eq.s32.totalorder %s22, 0
    %p299 = por %p297, %p298
    %p300 = scmp.ne.s32.totalorder %s289, %s292
    %p301 = scmp.eq.s32.totalorder %s27, 3
    %p302 = por %p300, %p301
    %p303 = scmp.ne.s32.totalorder %s292, %s293
    %p304 = scmp.eq.s32.totalorder %s27, 0
    %p305 = por %p303, %p304
    %p306 = scmp.ne.s32.totalorder %s292, %s293
    %p307 = scmp.eq.s32.totalorder %s28, 3
    %p308 = por %p306, %p307
    %p310 = scmp.ne.s32.totalorder %s293, %s309
    %p311 = scmp.eq.s32.totalorder %s28, 0
    %p312 = por %p310, %p311
    %s313 = ssub.s32 %s30, %s37
    %p314 = scmp.eq.s32.totalorder %s313, 0
    %s316 = sadd.s32 %s315, 1
    %s317 = scalar_select %p314, %s315, %s316
    %p320 = pneg %p314
    %p321 = scmp.eq.s32.totalorder %s22, 3
    %p322 = por %p320, %p321
    %p323 = scmp.ne.s32.totalorder %s315, %s318
    %p324 = scmp.eq.s32.totalorder %s22, 0
    %p325 = por %p323, %p324
    %p326 = scmp.ne.s32.totalorder %s315, %s318
    %p327 = scmp.eq.s32.totalorder %s27, 3
    %p328 = por %p326, %p327
    %p329 = scmp.ne.s32.totalorder %s318, %s319
    %p330 = scmp.eq.s32.totalorder %s27, 0
    %p331 = por %p329, %p330
    %p332 = scmp.ne.s32.totalorder %s318, %s319
    %p333 = scmp.eq.s32.totalorder %s28, 3
    %p334 = por %p332, %p333
    %p336 = scmp.ne.s32.totalorder %s319, %s335
    %p337 = scmp.eq.s32.totalorder %s28, 0
    %p338 = por %p336, %p337
    %s339 = ssub.s32 %s30, %s37
    %p340 = scmp.eq.s32.totalorder %s339, 0
    %s342 = sadd.s32 %s341, 1
    %s343 = scalar_select %p340, %s341, %s342
    %p346 = pneg %p340
    %p347 = scmp.eq.s32.totalorder %s22, 3
    %p348 = por %p346, %p347
    %p349 = scmp.ne.s32.totalorder %s341, %s344
    %p350 = scmp.eq.s32.totalorder %s22, 0
    %p351 = por %p349, %p350
    %p352 = scmp.ne.s32.totalorder %s341, %s344
    %p353 = scmp.eq.s32.totalorder %s27, 3
    %p354 = por %p352, %p353
    %p355 = scmp.ne.s32.totalorder %s344, %s345
    %p356 = scmp.eq.s32.totalorder %s27, 0
    %p357 = por %p355, %p356
    %p358 = scmp.ne.s32.totalorder %s344, %s345
    %p359 = scmp.eq.s32.totalorder %s28, 3
    %p360 = por %p358, %p359
    %p362 = scmp.ne.s32.totalorder %s345, %s361
    %p363 = scmp.eq.s32.totalorder %s28, 0
    %p364 = por %p362, %p363
    %s365 = ssub.s32 %s30, %s37
    %p366 = scmp.eq.s32.totalorder %s365, 0
    %s368 = sadd.s32 %s367, 1
    %s369 = scalar_select %p366, %s367, %s368
    %p372 = pneg %p366
    %p373 = scmp.eq.s32.totalorder %s22, 3
    %p374 = por %p372, %p373
    %p375 = scmp.ne.s32.totalorder %s367, %s370
    %p376 = scmp.eq.s32.totalorder %s22, 0
    %p377 = por %p375, %p376
    %p378 = scmp.ne.s32.totalorder %s367, %s370
    %p379 = scmp.eq.s32.totalorder %s27, 3
    %p380 = por %p378, %p379
    %p381 = scmp.ne.s32.totalorder %s370, %s371
    %p382 = scmp.eq.s32.totalorder %s27, 0
    %p383 = por %p381, %p382
    %p384 = scmp.ne.s32.totalorder %s370, %s371
    %p385 = scmp.eq.s32.totalorder %s28, 3
    %p386 = por %p384, %p385
    %p388 = scmp.ne.s32.totalorder %s371, %s387
    %p389 = scmp.eq.s32.totalorder %s28, 0
    %p390 = por %p388, %p389
    %s391 = ssub.s32 %s30, %s37
    %p392 = scmp.eq.s32.totalorder %s391, 0
    %s394 = sadd.s32 %s393, 1
    %s395 = scalar_select %p392, %s393, %s394
    %p398 = pneg %p392
    %p399 = scmp.eq.s32.totalorder %s22, 3
    %p400 = por %p398, %p399
    %p401 = scmp.ne.s32.totalorder %s393, %s396
    %p402 = scmp.eq.s32.totalorder %s22, 0
    %p403 = por %p401, %p402
    %p404 = scmp.ne.s32.totalorder %s393, %s396
    %p405 = scmp.eq.s32.totalorder %s27, 3
    %p406 = por %p404, %p405
    %p407 = scmp.ne.s32.totalorder %s396, %s397
    %p408 = scmp.eq.s32.totalorder %s27, 0
    %p409 = por %p407, %p408
    %p410 = scmp.ne.s32.totalorder %s396, %s397
    %p411 = scmp.eq.s32.totalorder %s28, 3
    %p412 = por %p410, %p411
    %p414 = scmp.ne.s32.totalorder %s397, %s413
    %p415 = scmp.eq.s32.totalorder %s28, 0
    %p416 = por %p414, %p415
    %s417 = ssub.s32 %s30, %s37
    %p418 = scmp.eq.s32.totalorder %s417, 0
    %s420 = sadd.s32 %s419, 1
    %s421 = scalar_select %p418, %s419, %s420
    %p424 = pneg %p418
    %p425 = scmp.eq.s32.totalorder %s22, 3
    %p426 = por %p424, %p425
    %p427 = scmp.ne.s32.totalorder %s419, %s422
    %p428 = scmp.eq.s32.totalorder %s22, 0
    %p429 = por %p427, %p428
    %p430 = scmp.ne.s32.totalorder %s419, %s422
    %p431 = scmp.eq.s32.totalorder %s27, 3
    %p432 = por %p430, %p431
    %p433 = scmp.ne.s32.totalorder %s422, %s423
    %p434 = scmp.eq.s32.totalorder %s27, 0
    %p435 = por %p433, %p434
    %p436 = scmp.ne.s32.totalorder %s422, %s423
    %p437 = scmp.eq.s32.totalorder %s28, 3
    %p438 = por %p436, %p437
    %p440 = scmp.ne.s32.totalorder %s423, %s439
    %p441 = scmp.eq.s32.totalorder %s28, 0
    %p442 = por %p440, %p441
    %s443 = ssub.s32 %s29, %s41
    %p444 = scmp.eq.s32.totalorder %s443, 0
    %s446 = sadd.s32 %s445, 1
    %s447 = scalar_select %p444, %s445, %s446
    %p450 = pneg %p444
    %p451 = scmp.eq.s32.totalorder %s22, 3
    %p452 = por %p450, %p451
    %p453 = scmp.ne.s32.totalorder %s445, %s448
    %p454 = scmp.eq.s32.totalorder %s22, 0
    %p455 = por %p453, %p454
    %p456 = scmp.ne.s32.totalorder %s445, %s448
    %p457 = scmp.eq.s32.totalorder %s27, 3
    %p458 = por %p456, %p457
    %p459 = scmp.ne.s32.totalorder %s448, %s449
    %p460 = scmp.eq.s32.totalorder %s27, 0
    %p461 = por %p459, %p460
    %p462 = scmp.ne.s32.totalorder %s448, %s449
    %p463 = scmp.eq.s32.totalorder %s28, 3
    %p464 = por %p462, %p463
    %p466 = scmp.ne.s32.totalorder %s449, %s465
    %p467 = scmp.eq.s32.totalorder %s28, 0
    %p468 = por %p466, %p467
    %p469 = scmp.le.s32.totalorder 1, %s22
    %p470 = scmp.lt.s32.totalorder %s22, 5
    %p471 = pnand %p469, %p470
    %p472 = pneg %p471
    // Predicated region
    $region9: #{gpt_stage_full_forward.4} parent=5 // pred_check
      _
    $region10: #{gpt_stage_full_forward.4} parent=5 // pred_check_branch
      %474 = sbr.rel (%p471) target = $region12
    $region11: #{gpt_stage_full_forward.4} parent=5 // pred_region
      %s475 = ssub.s32 %s22, 1
      // Predicated region
      $region13: #{gpt_stage_full_forward.4} parent=11 // pred_check
        %p476 = pneg %p81
      $region14: #{gpt_stage_full_forward.4} parent=11 // pred_check_branch
        %478 = sbr.rel (%p476) target = $region16
      $region15: #{gpt_stage_full_forward.4} parent=11 // pred_region
        _
      $region16: #{gpt_stage_full_forward.4} parent=11 // pred_fallthru
        _
      // Predicated region
      $region17: #{gpt_stage_full_forward.4} parent=11 // pred_check
        %p479 = pneg %p102
      $region18: #{gpt_stage_full_forward.4} parent=11 // pred_check_branch
        %481 = sbr.rel (%p479) target = $region20
      $region19: #{gpt_stage_full_forward.4} parent=11 // pred_region
        _
      $region20: #{gpt_stage_full_forward.4} parent=11 // pred_fallthru
        _
      // Predicated region
      $region21: #{gpt_stage_full_forward.4} parent=11 // pred_check
        %p482 = pneg %p123
      $region22: #{gpt_stage_full_forward.4} parent=11 // pred_check_branch
        %484 = sbr.rel (%p482) target = $region24
      $region23: #{gpt_stage_full_forward.4} parent=11 // pred_region
        _
      $region24: #{gpt_stage_full_forward.4} parent=11 // pred_fallthru
        _
    $region12: #{gpt_stage_full_forward.4} parent=5 // pred_fallthru
      _
    %p485 = scmp.lt.s32.totalorder %s22, 4
    // Predicated region
    $region25: #{gpt_stage_full_forward.4} parent=5 // pred_check
      %p486 = pneg %p485
    $region26: #{gpt_stage_full_forward.4} parent=5 // pred_check_branch
      %488 = sbr.rel (%p486) target = $region28
    $region27: #{gpt_stage_full_forward.4} parent=5 // pred_region
      // Predicated region
      $region29: #{gpt_stage_full_forward.4} parent=27 // pred_check
        %p489 = pneg %p54
      $region30: #{gpt_stage_full_forward.4} parent=27 // pred_check_branch
        %491 = sbr.rel (%p489) target = $region32
      $region31: #{gpt_stage_full_forward.4} parent=27 // pred_region
        %p492 = scmp.lt.s32.totalorder %s29, 1
        %s493 = scalar_select %p492, %s29, 1
        %s494 = smul.addr %s493, 8
        %s495 = scalar_lea.vmem %s0, %s494
      $region32: #{gpt_stage_full_forward.4} parent=27 // pred_fallthru
        _
      // Predicated region
      $region33: #{gpt_stage_full_forward.4} parent=27 // pred_check
        %p496 = pneg %p143
      $region34: #{gpt_stage_full_forward.4} parent=27 // pred_check_branch
        %498 = sbr.rel (%p496) target = $region36
      $region35: #{gpt_stage_full_forward.4} parent=27 // pred_region
        %p499 = scmp.lt.s32.totalorder %s30, 1
        %s500 = scalar_select %p499, %s30, 1
        %s501 = scalar_lea.vmem %s4, %s500
      $region36: #{gpt_stage_full_forward.4} parent=27 // pred_fallthru
        _
      // Predicated region
      $region37: #{gpt_stage_full_forward.4} parent=27 // pred_check
        %p502 = pneg %p169
      $region38: #{gpt_stage_full_forward.4} parent=27 // pred_check_branch
        %504 = sbr.rel (%p502) target = $region40
      $region39: #{gpt_stage_full_forward.4} parent=27 // pred_region
        %p505 = scmp.lt.s32.totalorder %s30, 1
        %s506 = scalar_select %p505, %s30, 1
        %s507 = scalar_lea.vmem %s5, %s506
      $region40: #{gpt_stage_full_forward.4} parent=27 // pred_fallthru
        _
      // Predicated region
      $region41: #{gpt_stage_full_forward.4} parent=27 // pred_check
        %p508 = pneg %p195
      $region42: #{gpt_stage_full_forward.4} parent=27 // pred_check_branch
        %510 = sbr.rel (%p508) target = $region44
      $region43: #{gpt_stage_full_forward.4} parent=27 // pred_region
        %p511 = scmp.lt.s32.totalorder %s30, 1
        %s512 = scalar_select %p511, %s30, 1
        %s513 = scalar_lea.vmem %s6, %s512
      $region44: #{gpt_stage_full_forward.4} parent=27 // pred_fallthru
        _
      // Predicated region
      $region45: #{gpt_stage_full_forward.4} parent=27 // pred_check
        %p514 = pneg %p221
      $region46: #{gpt_stage_full_forward.4} parent=27 // pred_check_branch
        %516 = sbr.rel (%p514) target = $region48
      $region47: #{gpt_stage_full_forward.4} parent=27 // pred_region
        %p517 = scmp.lt.s32.totalorder %s30, 1
        %s518 = scalar_select %p517, %s30, 1
        %s519 = scalar_lea.vmem %s7, %s518
      $region48: #{gpt_stage_full_forward.4} parent=27 // pred_fallthru
        _
      // Predicated region
      $region49: #{gpt_stage_full_forward.4} parent=27 // pred_check
        %p520 = pneg %p247
      $region50: #{gpt_stage_full_forward.4} parent=27 // pred_check_branch
        %522 = sbr.rel (%p520) target = $region52
      $region51: #{gpt_stage_full_forward.4} parent=27 // pred_region
        %p523 = scmp.lt.s32.totalorder %s30, 1
        %s524 = scalar_select %p523, %s30, 1
        %s525 = smul.addr %s524, 4
        %s526 = smul.addr %s525, 4
        %s527 = scalar_lea.vmem %s8, %s526
      $region52: #{gpt_stage_full_forward.4} parent=27 // pred_fallthru
        _
      // Predicated region
      $region53: #{gpt_stage_full_forward.4} parent=27 // pred_check
        %p528 = pneg %p273
      $region54: #{gpt_stage_full_forward.4} parent=27 // pred_check_branch
        %530 = sbr.rel (%p528) target = $region56
      $region55: #{gpt_stage_full_forward.4} parent=27 // pred_region
        %p531 = scmp.lt.s32.totalorder %s30, 1
        %s532 = scalar_select %p531, %s30, 1
        %s533 = scalar_lea.vmem %s9, %s532
      $region56: #{gpt_stage_full_forward.4} parent=27 // pred_fallthru
        _
      // Predicated region
      $region57: #{gpt_stage_full_forward.4} parent=27 // pred_check
        %p534 = pneg %p299
      $region58: #{gpt_stage_full_forward.4} parent=27 // pred_check_branch
        %536 = sbr.rel (%p534) target = $region60
      $region59: #{gpt_stage_full_forward.4} parent=27 // pred_region
        %p537 = scmp.lt.s32.totalorder %s30, 1
        %s538 = scalar_select %p537, %s30, 1
        %s539 = smul.addr %s538, 4
        %s540 = smul.addr %s539, 4
        %s541 = scalar_lea.vmem %s10, %s540
      $region60: #{gpt_stage_full_forward.4} parent=27 // pred_fallthru
        _
      // Predicated region
      $region61: #{gpt_stage_full_forward.4} parent=27 // pred_check
        %p542 = pneg %p325
      $region62: #{gpt_stage_full_forward.4} parent=27 // pred_check_branch
        %544 = sbr.rel (%p542) target = $region64
      $region63: #{gpt_stage_full_forward.4} parent=27 // pred_region
        %p545 = scmp.lt.s32.totalorder %s30, 1
        %s546 = scalar_select %p545, %s30, 1
        %s547 = scalar_lea.vmem %s11, %s546
      $region64: #{gpt_stage_full_forward.4} parent=27 // pred_fallthru
        _
      // Predicated region
      $region65: #{gpt_stage_full_forward.4} parent=27 // pred_check
        %p548 = pneg %p351
      $region66: #{gpt_stage_full_forward.4} parent=27 // pred_check_branch
        %550 = sbr.rel (%p548) target = $region68
      $region67: #{gpt_stage_full_forward.4} parent=27 // pred_region
        %p551 = scmp.lt.s32.totalorder %s30, 1
        %s552 = scalar_select %p551, %s30, 1
        %s553 = smul.addr %s552, 4
        %s554 = smul.addr %s553, 4
        %s555 = scalar_lea.vmem %s12, %s554
      $region68: #{gpt_stage_full_forward.4} parent=27 // pred_fallthru
        _
      // Predicated region
      $region69: #{gpt_stage_full_forward.4} parent=27 // pred_check
        %p556 = pneg %p377
      $region70: #{gpt_stage_full_forward.4} parent=27 // pred_check_branch
        %558 = sbr.rel (%p556) target = $region72
      $region71: #{gpt_stage_full_forward.4} parent=27 // pred_region
        %p559 = scmp.lt.s32.totalorder %s30, 1
        %s560 = scalar_select %p559, %s30, 1
        %s561 = scalar_lea.vmem %s13, %s560
      $region72: #{gpt_stage_full_forward.4} parent=27 // pred_fallthru
        _
      // Predicated region
      $region73: #{gpt_stage_full_forward.4} parent=27 // pred_check
        %p562 = pneg %p403
      $region74: #{gpt_stage_full_forward.4} parent=27 // pred_check_branch
        %564 = sbr.rel (%p562) target = $region76
      $region75: #{gpt_stage_full_forward.4} parent=27 // pred_region
        %p565 = scmp.lt.s32.totalorder %s30, 1
        %s566 = scalar_select %p565, %s30, 1
        %s567 = smul.addr %s566, 16
        %s568 = smul.addr %s567, 4
        %s569 = scalar_lea.vmem %s14, %s568
      $region76: #{gpt_stage_full_forward.4} parent=27 // pred_fallthru
        _
      // Predicated region
      $region77: #{gpt_stage_full_forward.4} parent=27 // pred_check
        %p570 = pneg %p429
      $region78: #{gpt_stage_full_forward.4} parent=27 // pred_check_branch
        %572 = sbr.rel (%p570) target = $region80
      $region79: #{gpt_stage_full_forward.4} parent=27 // pred_region
        %p573 = scmp.lt.s32.totalorder %s30, 1
        %s574 = scalar_select %p573, %s30, 1
        %s575 = scalar_lea.vmem %s15, %s574
      $region80: #{gpt_stage_full_forward.4} parent=27 // pred_fallthru
        _
    $region28: #{gpt_stage_full_forward.4} parent=5 // pred_fallthru
      _
    %p576 = scmp.le.s32.totalorder 1, %s22
    %p577 = scmp.lt.s32.totalorder %s22, 5
    %p578 = pnand %p576, %p577
    %p579 = pneg %p578
    // Predicated region
    $region81: #{gpt_stage_full_forward.4} parent=5 // pred_check
      _
    $region82: #{gpt_stage_full_forward.4} parent=5 // pred_check_branch
      %581 = sbr.rel (%p578) target = $region84
    $region83: #{gpt_stage_full_forward.4} parent=5 // pred_region
      %s582 = ssub.s32 %s22, 1
      %p583 = scmp.lt.s32.totalorder %s31, 1
      %s584 = scalar_select %p583, %s31, 1
      %s585 = smul.addr %s584, 8
      %s586 = scalar_lea.vmem %s0, %s585
      %p587 = pneg %p60
      %p588 = pneg %p57
      %p589 = pneg %p81
      %p590 = pneg %p78
      %p591 = pneg %p102
      %p592 = pneg %p99
      %p593 = pneg %p123
      %p594 = pneg %p120
      %p595 = scmp.lt.s32.totalorder %s32, 1
      %s596 = scalar_select %p595, %s32, 1
      %s597 = scalar_lea.vmem %s4, %s596
      %p598 = pneg %p149
      %p599 = pneg %p146
      %p600 = scmp.lt.s32.totalorder %s32, 1
      %s601 = scalar_select %p600, %s32, 1
      %s602 = scalar_lea.vmem %s5, %s601
      %p603 = pneg %p175
      %p604 = pneg %p172
      %p605 = scmp.lt.s32.totalorder %s32, 1
      %s606 = scalar_select %p605, %s32, 1
      %s607 = scalar_lea.vmem %s6, %s606
      %p608 = pneg %p201
      %p609 = pneg %p198
      %p610 = scmp.lt.s32.totalorder %s32, 1
      %s611 = scalar_select %p610, %s32, 1
      %s612 = scalar_lea.vmem %s7, %s611
      %p613 = pneg %p227
      %p614 = pneg %p224
      %p615 = scmp.lt.s32.totalorder %s32, 1
      %s616 = scalar_select %p615, %s32, 1
      %s617 = smul.addr %s616, 4
      %s618 = smul.addr %s617, 4
      %s619 = scalar_lea.vmem %s8, %s618
      %p620 = pneg %p253
      %p621 = pneg %p250
      %p622 = scmp.lt.s32.totalorder %s32, 1
      %s623 = scalar_select %p622, %s32, 1
      %s624 = scalar_lea.vmem %s9, %s623
      %p625 = pneg %p279
      %p626 = pneg %p276
      %p627 = scmp.lt.s32.totalorder %s32, 1
      %s628 = scalar_select %p627, %s32, 1
      %s629 = smul.addr %s628, 4
      %s630 = smul.addr %s629, 4
      %s631 = scalar_lea.vmem %s10, %s630
      %p632 = pneg %p305
      %p633 = pneg %p302
      %p634 = scmp.lt.s32.totalorder %s32, 1
      %s635 = scalar_select %p634, %s32, 1
      %s636 = scalar_lea.vmem %s11, %s635
      %p637 = pneg %p331
      %p638 = pneg %p328
      %p639 = scmp.lt.s32.totalorder %s32, 1
      %s640 = scalar_select %p639, %s32, 1
      %s641 = smul.addr %s640, 4
      %s642 = smul.addr %s641, 4
      %s643 = scalar_lea.vmem %s12, %s642
      %p644 = pneg %p357
      %p645 = pneg %p354
      %p646 = scmp.lt.s32.totalorder %s32, 1
      %s647 = scalar_select %p646, %s32, 1
      %s648 = scalar_lea.vmem %s13, %s647
      %p649 = pneg %p383
      %p650 = pneg %p380
      %p651 = scmp.lt.s32.totalorder %s32, 1
      %s652 = scalar_select %p651, %s32, 1
      %s653 = smul.addr %s652, 16
      %s654 = smul.addr %s653, 4
      %s655 = scalar_lea.vmem %s14, %s654
      %p656 = pneg %p409
      %p657 = pneg %p406
      %p658 = scmp.lt.s32.totalorder %s32, 1
      %s659 = scalar_select %p658, %s32, 1
      %s660 = scalar_lea.vmem %s15, %s659
      %p661 = pneg %p435
      %p662 = pneg %p432
      %p663 = pneg %p461
      %p664 = pneg %p458
      %p665 = scmp.lt.s32.totalorder %s31, 1
      %s666 = scalar_select %p665, %s31, 1
      %s667 = smul.addr %s666, 8
      %s668 = scalar_lea.vmem %s16, %s667
      %p669 = scmp.lt.s32.totalorder %s31, 1
      %s670 = scalar_select %p669, %s31, 1
      %s671 = smul.addr %s670, 8
      %s672 = scalar_lea.vmem %s0, %s671
      %p673 = scmp.lt.s32.totalorder %s32, 1
      %s674 = scalar_select %p673, %s32, 1
      %s675 = scalar_lea.vmem %s4, %s674
      %p676 = scmp.lt.s32.totalorder %s32, 1
      %s677 = scalar_select %p676, %s32, 1
      %s678 = scalar_lea.vmem %s5, %s677
      %p679 = scmp.lt.s32.totalorder %s32, 1
      %s680 = scalar_select %p679, %s32, 1
      %s681 = scalar_lea.vmem %s6, %s680
      %p682 = scmp.lt.s32.totalorder %s32, 1
      %s683 = scalar_select %p682, %s32, 1
      %s684 = scalar_lea.vmem %s7, %s683
      %p685 = scmp.lt.s32.totalorder %s32, 1
      %s686 = scalar_select %p685, %s32, 1
      %s687 = smul.addr %s686, 4
      %s688 = smul.addr %s687, 4
      %s689 = scalar_lea.vmem %s8, %s688
      %p690 = scmp.lt.s32.totalorder %s32, 1
      %s691 = scalar_select %p690, %s32, 1
      %s692 = scalar_lea.vmem %s9, %s691
      %p693 = scmp.lt.s32.totalorder %s32, 1
      %s694 = scalar_select %p693, %s32, 1
      %s695 = smul.addr %s694, 4
      %s696 = smul.addr %s695, 4
      %s697 = scalar_lea.vmem %s10, %s696
      %p698 = scmp.lt.s32.totalorder %s32, 1
      %s699 = scalar_select %p698, %s32, 1
      %s700 = scalar_lea.vmem %s11, %s699
      %p701 = scmp.lt.s32.totalorder %s32, 1
      %s702 = scalar_select %p701, %s32, 1
      %s703 = smul.addr %s702, 4
      %s704 = smul.addr %s703, 4
      %s705 = scalar_lea.vmem %s12, %s704
      %p706 = scmp.lt.s32.totalorder %s32, 1
      %s707 = scalar_select %p706, %s32, 1
      %s708 = scalar_lea.vmem %s13, %s707
      %p709 = scmp.lt.s32.totalorder %s32, 1
      %s710 = scalar_select %p709, %s32, 1
      %s711 = smul.addr %s710, 16
      %s712 = smul.addr %s711, 4
      %s713 = scalar_lea.vmem %s14, %s712
      %p714 = scmp.lt.s32.totalorder %s32, 1
      %s715 = scalar_select %p714, %s32, 1
      %s716 = scalar_lea.vmem %s15, %s715
      %p717 = scmp.lt.s32.totalorder %s31, 1
      %s718 = scalar_select %p717, %s31, 1
      %s719 = smul.addr %s718, 8
      %s720 = scalar_lea.vmem %s16, %s719
      %p722 = scmp.eq.s32.totalorder %s32, 0
      // Predicated region
      $region85: #{gpt_stage_full_forward.4} parent=83 // pred_check
        %p723 = pneg %p722
      $region86: #{gpt_stage_full_forward.4} parent=83 // pred_check_branch
        %725 = sbr.rel (%p723) target = $region88
      $region87: #{gpt_stage_full_forward.4} parent=83 // pred_region
        %v726 = vld [vmem:[%s672] sm:$0xff]
        %vm727 = vcmask 261120
        %728 = vst.msk [vmem:[%s720] sm:$0xff] %vm727, %v726
      $region88: #{gpt_stage_full_forward.4} parent=83 // pred_fallthru
        _
      %v729 = vld [vmem:[%s720] sm:$0xff]
      %v730 = vld [vmem:[%s675] sm:$0x1]
      %v731 = vld [vmem:[%s678] sm:$0x1]
      %vm732 = vcmask 261120
      %v733 = vsel %vm732, %v729, 0.0
      %734 = vadd.xlane.f32.xlu0 %v733
      %v735 = vpop.xlane.xlu0 %734
      %v736 = vrcp.pop 32.0
      %v737 = vmul.f32 %v735, %v736
      %v738 = vsub.f32 %v729, %v737
      %v739 = vmul.f32 %v738, %v738
      %v740 = vsel %vm732, %v739, 0.0
      %741 = vadd.xlane.f32.xlu0 %v740
      %v742 = vpop.xlane.xlu0 %741
      %v743 = vmul.f32 %v742, %v736
      %v744 = vadd.f32 %v743, 1e-05
      %v745 = vrsqrt.pop %v744
      %v746 = vmul.f32 %v738, %v745
      %v748 = vlaneseq
      %v749 = vshrl.u32 %v748, 7
      %v750 = vsub.s32 0, %v749
      %v751 = vrot.slane %v730, %v750
      %v753 = vmul.f32 %v746, %v751
      %v755 = vlaneseq
      %v756 = vshrl.u32 %v755, 7
      %v757 = vsub.s32 0, %v756
      %v758 = vrot.slane %v731, %v757
      %v760 = vadd.f32 %v753, %v758
      %v761 = vpack.c.bf16 %v760, %v760
      %v762 = vld [vmem:[%s689] sm:$0xf]
      %v763 = vld [vmem:[%s689 + $0x4] sm:$0xf]
      %v764 = vld [vmem:[%s689 + $0x8] sm:$0xf]
      %v765 = vld [vmem:[%s689 + $0xc] sm:$0xf]
      %v766 = vld [vmem:[%s692] sm:$0x1]
      %v768 = vlaneseq
      %v769 = vshrl.u32 %v768, 7
      %v770 = vsub.s32 0, %v769
      %v771 = vrot.slane %v766, %v770
      %v777 = vunpack.c.l.b16 %v762
      %v778 = vunpack.c.l.b16 %v763
      %v779 = vunpack.c.l.b16 %v764
      %v780 = vunpack.c.l.b16 %v765
      %v781 = vpack.c.b16 %v778, %v777
      %v782 = vpack.c.b16 %v780, %v779
      %v786 = vsel %vm732, %v761, 0
      %788 = vmatprep.subr.bf16.mxu0 0
      %789 = vmatpush1.bf16.msra.mxu0 0
      %790 = vmatprep.subr.bf16.mxu0 0
      %791 = vmatpush1.bf16.msra.mxu0 0
      %792 = vmatprep.subr.bf16.mxu0 0
      %793 = vmatpush1.bf16.msra.mxu0 0
      %794 = vmatprep.subr.bf16.mxu0 0
      %795 = vmatpush1.bf16.msra.mxu0 0
      %796 = vmatprep.subr.bf16.mxu0 0
      %797 = vmatpush1.bf16.msra.mxu0 0
      %798 = vmatprep.subr.bf16.mxu0 0
      %799 = vmatpush1.bf16.msra.mxu0 0
      %800 = vmatprep.subr.bf16.mxu0 0
      %801 = vmatpush1.bf16.msra.mxu0 %v782
      %802 = vmatprep.subr.bf16.mxu0 0
      %803 = vmatpush1.bf16.msra.mxu0 %v781
      %804 = vmatprep.subr.bf16.mxu0 0
      %805 = vmatpush2.bf16.msra.mxu0 0
      %806 = vmatprep.subr.bf16.mxu0 0
      %807 = vmatpush2.bf16.msra.mxu0 0
      %808 = vmatprep.subr.bf16.mxu0 0
      %809 = vmatpush2.bf16.msra.mxu0 0
      %810 = vmatprep.subr.bf16.mxu0 0
      %811 = vmatpush2.bf16.msra.mxu0 0
      %812 = vmatprep.subr.bf16.mxu0 0
      %813 = vmatpush2.bf16.msra.mxu0 0
      %814 = vmatprep.subr.bf16.mxu0 0
      %815 = vmatpush2.bf16.msra.mxu0 0
      %816 = vmatprep.subr.bf16.mxu0 0
      %817 = vmatpush2.bf16.msra.mxu0 0
      %818 = vmatprep.subr.bf16.mxu0 0
      %819 = vmatpush2.bf16.msra.mxu0 0
      %820 = vmatprep.mubr.bf16.mxu0 0
      %821 = vmatmul.mubr.bf16.gmra.mxu0 %v786
      %v822 = vpop.f32.mrf.mxu0
      %v823 = vadd.f32 %v771, %v822
      %v824 = vpop.f32.mrf.mxu0
      %v825 = vpop.f32.mrf.mxu0
      %v826 = vpop.f32.mrf.mxu0
      %827 = vdwg.mxu0
      %v828 = vld [vmem:[%s1] sm:$0xff]
      %v829 = vld [vmem:[%s2] sm:$0xff]
      %v830 = vld [vmem:[%s3] sm:$0xff]
      %v831 = vld [vmem:[%s3 + $0x8] sm:$0xff]
      %v832 = vld [vmem:[%s3 + $0x10] sm:$0xff]
      %v833 = vld [vmem:[%s3 + $0x18] sm:$0xff]
      %v834 = vmul.f32 %v823, %v828
      %v836 = vsel %vm732, %v823, 0
      %838 = vmatprep.subr.mxu0 0.0
      %839 = vmatpush1.msra.mxu0 0.0
      %840 = vmatprep.subr.mxu0 0.0
      %841 = vmatpush1.msra.mxu0 0.0
      %842 = vmatprep.subr.mxu0 0.0
      %843 = vmatpush1.msra.mxu0 0.0
      %844 = vmatprep.subr.mxu0 0.0
      %845 = vmatpush1.msra.mxu0 0.0
      %846 = vmatprep.subr.mxu0 0.0
      %847 = vmatpush1.msra.mxu0 0.0
      %848 = vmatprep.subr.mxu0 0.0
      %849 = vmatpush1.msra.mxu0 0.0
      %850 = vmatprep.subr.mxu0 0.0
      %851 = vmatpush1.msra.mxu0 0.0
      %852 = vmatprep.subr.mxu0 0.0
      %853 = vmatpush1.msra.mxu0 0.0
      %854 = vmatprep.subr.mxu0 0.0
      %855 = vmatpush1.msra.mxu0 0.0
      %856 = vmatprep.subr.mxu0 0.0
      %857 = vmatpush1.msra.mxu0 0.0
      %858 = vmatprep.subr.mxu0 0.0
      %859 = vmatpush1.msra.mxu0 0.0
      %860 = vmatprep.subr.mxu0 0.0
      %861 = vmatpush1.msra.mxu0 0.0
      %862 = vmatprep.subr.mxu0 0.0
      %863 = vmatpush1.msra.mxu0 %v833
      %864 = vmatprep.subr.mxu0 0.0
      %865 = vmatpush1.msra.mxu0 %v832
      %866 = vmatprep.subr.mxu0 0.0
      %867 = vmatpush1.msra.mxu0 %v831
      %868 = vmatprep.subr.mxu0 0.0
      %869 = vmatpush1.msra.mxu0 %v830
      %870 = vmatprep.subr.mxu0 0.0
      %871 = vmatpush2.msra.mxu0 0.0
      %872 = vmatprep.subr.mxu0 0.0
      %873 = vmatpush2.msra.mxu0 0.0
      %874 = vmatprep.subr.mxu0 0.0
      %875 = vmatpush2.msra.mxu0 0.0
      %876 = vmatprep.subr.mxu0 0.0
      %877 = vmatpush2.msra.mxu0 0.0
      %878 = vmatprep.subr.mxu0 0.0
      %879 = vmatpush2.msra.mxu0 0.0
      %880 = vmatprep.subr.mxu0 0.0
      %881 = vmatpush2.msra.mxu0 0.0
      %882 = vmatprep.subr.mxu0 0.0
      %883 = vmatpush2.msra.mxu0 0.0
      %884 = vmatprep.subr.mxu0 0.0
      %885 = vmatpush2.msra.mxu0 0.0
      %886 = vmatprep.subr.mxu0 0.0
      %887 = vmatpush2.msra.mxu0 0.0
      %888 = vmatprep.subr.mxu0 0.0
      %889 = vmatpush2.msra.mxu0 0.0
      %890 = vmatprep.subr.mxu0 0.0
      %891 = vmatpush2.msra.mxu0 0.0
      %892 = vmatprep.subr.mxu0 0.0
      %893 = vmatpush2.msra.mxu0 0.0
      %894 = vmatprep.subr.mxu0 0.0
      %895 = vmatpush2.msra.mxu0 0.0
      %896 = vmatprep.subr.mxu0 0.0
      %897 = vmatpush2.msra.mxu0 0.0
      %898 = vmatprep.subr.mxu0 0.0
      %899 = vmatpush2.msra.mxu0 0.0
      %900 = vmatprep.subr.mxu0 0.0
      %901 = vmatpush2.msra.mxu0 0.0
      %902 = vmatprep.mubr.f32.mxu0 0.0
      %903 = vmatmul.mubr.f32.gmra.mxu0 %v836
      %v904 = vpop.f32.mrf.mxu0
      %v905 = vadd.f32 0.0, %v904
      %v906 = vpop.f32.mrf.mxu0
      %907 = vdwg.mxu0
      %v908 = vmul.f32 %v905, %v829
      %v909 = vadd.f32 %v834, %v908
      %911 = vrot.lane.b32.xlu0 %v828, 32
      %v912 = vpop.permute.xlu0 %911
      %v914 = vmul.f32 %v823, %v912
      %915 = vrot.lane.b32.xlu0 %v823, 96
      %v916 = vpop.permute.xlu0 %915
      %v917 = vsel %vm732, %v916, 0
      %919 = vmatprep.subr.mxu0 0.0
      %920 = vmatpush1.msra.mxu0 0.0
      %921 = vmatprep.subr.mxu0 0.0
      %922 = vmatpush1.msra.mxu0 0.0
      %923 = vmatprep.subr.mxu0 0.0
      %924 = vmatpush1.msra.mxu0 0.0
      %925 = vmatprep.subr.mxu0 0.0
      %926 = vmatpush1.msra.mxu0 0.0
      %927 = vmatprep.subr.mxu0 0.0
      %928 = vmatpush1.msra.mxu0 0.0
      %929 = vmatprep.subr.mxu0 0.0
      %930 = vmatpush1.msra.mxu0 0.0
      %931 = vmatprep.subr.mxu0 0.0
      %932 = vmatpush1.msra.mxu0 0.0
      %933 = vmatprep.subr.mxu0 0.0
      %934 = vmatpush1.msra.mxu0 0.0
      %935 = vmatprep.subr.mxu0 0.0
      %936 = vmatpush1.msra.mxu0 0.0
      %937 = vmatprep.subr.mxu0 0.0
      %938 = vmatpush1.msra.mxu0 0.0
      %939 = vmatprep.subr.mxu0 0.0
      %940 = vmatpush1.msra.mxu0 0.0
      %941 = vmatprep.subr.mxu0 0.0
      %942 = vmatpush1.msra.mxu0 0.0
      %943 = vmatprep.subr.mxu0 0.0
      %944 = vmatpush1.msra.mxu0 %v833
      %945 = vmatprep.subr.mxu0 0.0
      %946 = vmatpush1.msra.mxu0 %v832
      %947 = vmatprep.subr.mxu0 0.0
      %948 = vmatpush1.msra.mxu0 %v831
      %949 = vmatprep.subr.mxu0 0.0
      %950 = vmatpush1.msra.mxu0 %v830
      %951 = vmatprep.subr.mxu0 0.0
      %952 = vmatpush2.msra.mxu0 0.0
      %953 = vmatprep.subr.mxu0 0.0
      %954 = vmatpush2.msra.mxu0 0.0
      %955 = vmatprep.subr.mxu0 0.0
      %956 = vmatpush2.msra.mxu0 0.0
      %957 = vmatprep.subr.mxu0 0.0
      %958 = vmatpush2.msra.mxu0 0.0
      %959 = vmatprep.subr.mxu0 0.0
      %960 = vmatpush2.msra.mxu0 0.0
      %961 = vmatprep.subr.mxu0 0.0
      %962 = vmatpush2.msra.mxu0 0.0
      %963 = vmatprep.subr.mxu0 0.0
      %964 = vmatpush2.msra.mxu0 0.0
      %965 = vmatprep.subr.mxu0 0.0
      %966 = vmatpush2.msra.mxu0 0.0
      %967 = vmatprep.subr.mxu0 0.0
      %968 = vmatpush2.msra.mxu0 0.0
      %969 = vmatprep.subr.mxu0 0.0
      %970 = vmatpush2.msra.mxu0 0.0
      %971 = vmatprep.subr.mxu0 0.0
      %972 = vmatpush2.msra.mxu0 0.0
      %973 = vmatprep.subr.mxu0 0.0
      %974 = vmatpush2.msra.mxu0 0.0
      %975 = vmatprep.subr.mxu0 0.0
      %976 = vmatpush2.msra.mxu0 0.0
      %977 = vmatprep.subr.mxu0 0.0
      %978 = vmatpush2.msra.mxu0 0.0
      %979 = vmatprep.subr.mxu0 0.0
      %980 = vmatpush2.msra.mxu0 0.0
      %981 = vmatprep.subr.mxu0 0.0
      %982 = vmatpush2.msra.mxu0 0.0
      %983 = vmatprep.mubr.f32.mxu0 0.0
      %984 = vmatmul.mubr.f32.gmra.mxu0 %v917
      %v985 = vpop.f32.mrf.mxu0
      %v986 = vadd.f32 0.0, %v985
      %v987 = vpop.f32.mrf.mxu0
      %988 = vdwg.mxu0
      %v989 = vmul.f32 %v986, %v829
      %991 = vrot.lane.b32.xlu0 %v989, 32
      %v992 = vpop.permute.xlu0 %991
      %v994 = vadd.f32 %v914, %v992
      %996 = vrot.lane.b32.xlu0 %v909, 120
      %v997 = vpop.permute.xlu0 %996
      %999 = vrot.lane.b32.xlu0 %v909, 112
      %v1000 = vpop.permute.xlu0 %999
      %1002 = vrot.lane.b32.xlu0 %v909, 104
      %v1003 = vpop.permute.xlu0 %1002
      %v1005 = vcombine.low %v909, %v1000
      %v1006 = vcombine.high %v909, %v1000
      %v1008 = vunpack.c.l.s4 1983009808
      %v1009 = vunpack.c.0.s8 %v1008
      %v1010 = vlaneseq
      %v1011 = vshrl.u32 %v1010, 7
      %v1012 = vsub.s32 %v1009, %v1011
      %v1013 = vrot.slane %v1005, %v1012
      %v1015 = vunpack.c.l.s4 1983009808
      %v1016 = vunpack.c.0.s8 %v1015
      %v1017 = vlaneseq
      %v1018 = vshrl.u32 %v1017, 7
      %v1019 = vsub.s32 %v1016, %v1018
      %v1020 = vrot.slane %v1006, %v1019
      %v1021 = vcombine.low %v997, %v1003
      %v1022 = vcombine.high %v997, %v1003
      %v1024 = vunpack.c.l.s4 1983009808
      %v1025 = vunpack.c.0.s8 %v1024
      %v1026 = vlaneseq
      %v1027 = vshrl.u32 %v1026, 7
      %v1028 = vsub.s32 %v1025, %v1027
      %v1029 = vrot.slane %v1021, %v1028
      %v1031 = vunpack.c.l.s4 1983009808
      %v1032 = vunpack.c.0.s8 %v1031
      %v1033 = vlaneseq
      %v1034 = vshrl.u32 %v1033, 7
      %v1035 = vsub.s32 %v1032, %v1034
      %v1036 = vrot.slane %v1022, %v1035
      %v1037 = vcombine.low %v1013, %v1029
      %v1038 = vcombine.high %v1013, %v1029
      %v1040 = vunpack.c.l.s4 1934713408
      %v1041 = vunpack.c.0.s8 %v1040
      %v1042 = vlaneseq
      %v1043 = vshrl.u32 %v1042, 7
      %v1044 = vsub.s32 %v1041, %v1043
      %v1045 = vrot.slane %v1037, %v1044
      %v1047 = vunpack.c.l.s4 1934713408
      %v1048 = vunpack.c.0.s8 %v1047
      %v1049 = vlaneseq
      %v1050 = vshrl.u32 %v1049, 7
      %v1051 = vsub.s32 %v1048, %v1050
      %v1052 = vrot.slane %v1038, %v1051
      %v1053 = vcombine.low %v1020, %v1036
      %v1054 = vcombine.high %v1020, %v1036
      %v1056 = vunpack.c.l.s4 1934713408
      %v1057 = vunpack.c.0.s8 %v1056
      %v1058 = vlaneseq
      %v1059 = vshrl.u32 %v1058, 7
      %v1060 = vsub.s32 %v1057, %v1059
      %v1061 = vrot.slane %v1053, %v1060
      %v1063 = vunpack.c.l.s4 1934713408
      %v1064 = vunpack.c.0.s8 %v1063
      %v1065 = vlaneseq
      %v1066 = vshrl.u32 %v1065, 7
      %v1067 = vsub.s32 %v1064, %v1066
      %v1068 = vrot.slane %v1054, %v1067
      %v1069 = vcombine.high %v1045, 0.0
      %v1070 = vcombine.high %v1052, 0.0
      %v1071 = vcombine.high %v1061, 0.0
      %v1072 = vcombine.high %v1068, 0.0
      %v1073 = vcombine.low %v1045, %v1052
      %v1075 = vunpack.c.l.s4 1983009808
      %v1076 = vunpack.c.0.s8 %v1075
      %v1077 = vlaneseq
      %v1078 = vshrl.u32 %v1077, 7
      %v1079 = vsub.s32 %v1076, %v1078
      %v1080 = vrot.slane %v1073, %v1079
      %v1081 = vcombine.low %v1069, %v1070
      %v1083 = vunpack.c.l.s4 1983009808
      %v1084 = vunpack.c.0.s8 %v1083
      %v1085 = vlaneseq
      %v1086 = vshrl.u32 %v1085, 7
      %v1087 = vsub.s32 %v1084, %v1086
      %v1088 = vrot.slane %v1081, %v1087
      %v1089 = vcombine.low %v1061, %v1068
      %v1091 = vunpack.c.l.s4 1983009808
      %v1092 = vunpack.c.0.s8 %v1091
      %v1093 = vlaneseq
      %v1094 = vshrl.u32 %v1093, 7
      %v1095 = vsub.s32 %v1092, %v1094
      %v1096 = vrot.slane %v1089, %v1095
      %v1097 = vcombine.low %v1071, %v1072
      %v1099 = vunpack.c.l.s4 1983009808
      %v1100 = vunpack.c.0.s8 %v1099
      %v1101 = vlaneseq
      %v1102 = vshrl.u32 %v1101, 7
      %v1103 = vsub.s32 %v1100, %v1102
      %v1104 = vrot.slane %v1097, %v1103
      %v1105 = vcombine.low %v1080, %v1088
      %v1106 = vcombine.high %v1080, %v1088
      %v1108 = vunpack.c.l.s4 1934713408
      %v1109 = vunpack.c.0.s8 %v1108
      %v1110 = vlaneseq
      %v1111 = vshrl.u32 %v1110, 7
      %v1112 = vsub.s32 %v1109, %v1111
      %v1113 = vrot.slane %v1105, %v1112
      %v1115 = vunpack.c.l.s4 1934713408
      %v1116 = vunpack.c.0.s8 %v1115
      %v1117 = vlaneseq
      %v1118 = vshrl.u32 %v1117, 7
      %v1119 = vsub.s32 %v1116, %v1118
      %v1120 = vrot.slane %v1106, %v1119
      %v1121 = vcombine.low %v1096, %v1104
      %v1122 = vcombine.high %v1096, %v1104
      %v1124 = vunpack.c.l.s4 1934713408
      %v1125 = vunpack.c.0.s8 %v1124
      %v1126 = vlaneseq
      %v1127 = vshrl.u32 %v1126, 7
      %v1128 = vsub.s32 %v1125, %v1127
      %v1129 = vrot.slane %v1121, %v1128
      %v1131 = vunpack.c.l.s4 1934713408
      %v1132 = vunpack.c.0.s8 %v1131
      %v1133 = vlaneseq
      %v1134 = vshrl.u32 %v1133, 7
      %v1135 = vsub.s32 %v1132, %v1134
      %v1136 = vrot.slane %v1122, %v1135
      %v1137 = vcombine.low %v1113, %v1129
      %v1138 = vcombine.high %v1113, %v1129
      %v1139 = vcombine.low %v1120, %v1136
      %v1140 = vcombine.high %v1120, %v1136
      %1142 = vrot.lane.b32.xlu0 %v994, 120
      %v1143 = vpop.permute.xlu0 %1142
      %1144 = vrot.lane.b32.xlu0 %v994, 112
      %v1145 = vpop.permute.xlu0 %1144
      %1146 = vrot.lane.b32.xlu0 %v994, 104
      %v1147 = vpop.permute.xlu0 %1146
      %1148 = vrot.lane.b32.xlu0 %v994, 96
      %v1149 = vpop.permute.xlu0 %1148
      %1150 = vrot.lane.b32.xlu0 %v1143, 96
      %v1151 = vpop.permute.xlu0 %1150
      %1152 = vrot.lane.b32.xlu0 %v1145, 96
      %v1153 = vpop.permute.xlu0 %1152
      %1154 = vrot.lane.b32.xlu0 %v1147, 96
      %v1155 = vpop.permute.xlu0 %1154
      %v1160 = vcombine.low %v1149, %v1153
      %v1161 = vcombine.high %v1149, %v1153
      %v1163 = vunpack.c.l.s4 1983009808
      %v1164 = vunpack.c.0.s8 %v1163
      %v1165 = vlaneseq
      %v1166 = vshrl.u32 %v1165, 7
      %v1167 = vsub.s32 %v1164, %v1166
      %v1168 = vrot.slane %v1160, %v1167
      %v1170 = vunpack.c.l.s4 1983009808
      %v1171 = vunpack.c.0.s8 %v1170
      %v1172 = vlaneseq
      %v1173 = vshrl.u32 %v1172, 7
      %v1174 = vsub.s32 %v1171, %v1173
      %v1175 = vrot.slane %v1161, %v1174
      %v1176 = vcombine.low %v1151, %v1155
      %v1177 = vcombine.high %v1151, %v1155
      %v1179 = vunpack.c.l.s4 1983009808
      %v1180 = vunpack.c.0.s8 %v1179
      %v1181 = vlaneseq
      %v1182 = vshrl.u32 %v1181, 7
      %v1183 = vsub.s32 %v1180, %v1182
      %v1184 = vrot.slane %v1176, %v1183
      %v1186 = vunpack.c.l.s4 1983009808
      %v1187 = vunpack.c.0.s8 %v1186
      %v1188 = vlaneseq
      %v1189 = vshrl.u32 %v1188, 7
      %v1190 = vsub.s32 %v1187, %v1189
      %v1191 = vrot.slane %v1177, %v1190
      %v1192 = vcombine.low %v1168, %v1184
      %v1193 = vcombine.high %v1168, %v1184
      %v1195 = vunpack.c.l.s4 1934713408
      %v1196 = vunpack.c.0.s8 %v1195
      %v1197 = vlaneseq
      %v1198 = vshrl.u32 %v1197, 7
      %v1199 = vsub.s32 %v1196, %v1198
      %v1200 = vrot.slane %v1192, %v1199
      %v1202 = vunpack.c.l.s4 1934713408
      %v1203 = vunpack.c.0.s8 %v1202
      %v1204 = vlaneseq
      %v1205 = vshrl.u32 %v1204, 7
      %v1206 = vsub.s32 %v1203, %v1205
      %v1207 = vrot.slane %v1193, %v1206
      %v1208 = vcombine.low %v1175, %v1191
      %v1209 = vcombine.high %v1175, %v1191
      %v1211 = vunpack.c.l.s4 1934713408
      %v1212 = vunpack.c.0.s8 %v1211
      %v1213 = vlaneseq
      %v1214 = vshrl.u32 %v1213, 7
      %v1215 = vsub.s32 %v1212, %v1214
      %v1216 = vrot.slane %v1208, %v1215
      %v1218 = vunpack.c.l.s4 1934713408
      %v1219 = vunpack.c.0.s8 %v1218
      %v1220 = vlaneseq
      %v1221 = vshrl.u32 %v1220, 7
      %v1222 = vsub.s32 %v1219, %v1221
      %v1223 = vrot.slane %v1209, %v1222
      %v1224 = vcombine.high %v1200, 0.0
      %v1225 = vcombine.high %v1207, 0.0
      %v1226 = vcombine.high %v1216, 0.0
      %v1227 = vcombine.high %v1223, 0.0
      %v1228 = vcombine.low %v1200, %v1207
      %v1230 = vunpack.c.l.s4 1983009808
      %v1231 = vunpack.c.0.s8 %v1230
      %v1232 = vlaneseq
      %v1233 = vshrl.u32 %v1232, 7
      %v1234 = vsub.s32 %v1231, %v1233
      %v1235 = vrot.slane %v1228, %v1234
      %v1236 = vcombine.low %v1224, %v1225
      %v1238 = vunpack.c.l.s4 1983009808
      %v1239 = vunpack.c.0.s8 %v1238
      %v1240 = vlaneseq
      %v1241 = vshrl.u32 %v1240, 7
      %v1242 = vsub.s32 %v1239, %v1241
      %v1243 = vrot.slane %v1236, %v1242
      %v1244 = vcombine.low %v1216, %v1223
      %v1246 = vunpack.c.l.s4 1983009808
      %v1247 = vunpack.c.0.s8 %v1246
      %v1248 = vlaneseq
      %v1249 = vshrl.u32 %v1248, 7
      %v1250 = vsub.s32 %v1247, %v1249
      %v1251 = vrot.slane %v1244, %v1250
      %v1252 = vcombine.low %v1226, %v1227
      %v1254 = vunpack.c.l.s4 1983009808
      %v1255 = vunpack.c.0.s8 %v1254
      %v1256 = vlaneseq
      %v1257 = vshrl.u32 %v1256, 7
      %v1258 = vsub.s32 %v1255, %v1257
      %v1259 = vrot.slane %v1252, %v1258
      %v1260 = vcombine.low %v1235, %v1243
      %v1261 = vcombine.high %v1235, %v1243
      %v1263 = vunpack.c.l.s4 1934713408
      %v1264 = vunpack.c.0.s8 %v1263
      %v1265 = vlaneseq
      %v1266 = vshrl.u32 %v1265, 7
      %v1267 = vsub.s32 %v1264, %v1266
      %v1268 = vrot.slane %v1260, %v1267
      %v1270 = vunpack.c.l.s4 1934713408
      %v1271 = vunpack.c.0.s8 %v1270
      %v1272 = vlaneseq
      %v1273 = vshrl.u32 %v1272, 7
      %v1274 = vsub.s32 %v1271, %v1273
      %v1275 = vrot.slane %v1261, %v1274
      %v1276 = vcombine.low %v1251, %v1259
      %v1277 = vcombine.high %v1251, %v1259
      %v1279 = vunpack.c.l.s4 1934713408
      %v1280 = vunpack.c.0.s8 %v1279
      %v1281 = vlaneseq
      %v1282 = vshrl.u32 %v1281, 7
      %v1283 = vsub.s32 %v1280, %v1282
      %v1284 = vrot.slane %v1276, %v1283
      %v1286 = vunpack.c.l.s4 1934713408
      %v1287 = vunpack.c.0.s8 %v1286
      %v1288 = vlaneseq
      %v1289 = vshrl.u32 %v1288, 7
      %v1290 = vsub.s32 %v1287, %v1289
      %v1291 = vrot.slane %v1277, %v1290
      %v1292 = vcombine.low %v1268, %v1284
      %v1293 = vcombine.high %v1268, %v1284
      %v1294 = vcombine.low %v1275, %v1291
      %v1295 = vcombine.high %v1275, %v1291
      %1296 = vrot.lane.b32.xlu0 %v823, 120
      %v1297 = vpop.permute.xlu0 %1296
      %1298 = vrot.lane.b32.xlu0 %v823, 112
      %v1299 = vpop.permute.xlu0 %1298
      %1300 = vrot.lane.b32.xlu0 %v823, 104
      %v1301 = vpop.permute.xlu0 %1300
      %1302 = vrot.lane.b32.xlu0 %v823, 64
      %v1303 = vpop.permute.xlu0 %1302
      %1304 = vrot.lane.b32.xlu0 %v1297, 64
      %v1305 = vpop.permute.xlu0 %1304
      %1306 = vrot.lane.b32.xlu0 %v1299, 64
      %v1307 = vpop.permute.xlu0 %1306
      %1308 = vrot.lane.b32.xlu0 %v1301, 64
      %v1309 = vpop.permute.xlu0 %1308
      %v1314 = vcombine.low %v1303, %v1307
      %v1315 = vcombine.high %v1303, %v1307
      %v1317 = vunpack.c.l.s4 1983009808
      %v1318 = vunpack.c.0.s8 %v1317
      %v1319 = vlaneseq
      %v1320 = vshrl.u32 %v1319, 7
      %v1321 = vsub.s32 %v1318, %v1320
      %v1322 = vrot.slane %v1314, %v1321
      %v1324 = vunpack.c.l.s4 1983009808
      %v1325 = vunpack.c.0.s8 %v1324
      %v1326 = vlaneseq
      %v1327 = vshrl.u32 %v1326, 7
      %v1328 = vsub.s32 %v1325, %v1327
      %v1329 = vrot.slane %v1315, %v1328
      %v1330 = vcombine.low %v1305, %v1309
      %v1331 = vcombine.high %v1305, %v1309
      %v1333 = vunpack.c.l.s4 1983009808
      %v1334 = vunpack.c.0.s8 %v1333
      %v1335 = vlaneseq
      %v1336 = vshrl.u32 %v1335, 7
      %v1337 = vsub.s32 %v1334, %v1336
      %v1338 = vrot.slane %v1330, %v1337
      %v1340 = vunpack.c.l.s4 1983009808
      %v1341 = vunpack.c.0.s8 %v1340
      %v1342 = vlaneseq
      %v1343 = vshrl.u32 %v1342, 7
      %v1344 = vsub.s32 %v1341, %v1343
      %v1345 = vrot.slane %v1331, %v1344
      %v1346 = vcombine.low %v1322, %v1338
      %v1347 = vcombine.high %v1322, %v1338
      %v1349 = vunpack.c.l.s4 1934713408
      %v1350 = vunpack.c.0.s8 %v1349
      %v1351 = vlaneseq
      %v1352 = vshrl.u32 %v1351, 7
      %v1353 = vsub.s32 %v1350, %v1352
      %v1354 = vrot.slane %v1346, %v1353
      %v1356 = vunpack.c.l.s4 1934713408
      %v1357 = vunpack.c.0.s8 %v1356
      %v1358 = vlaneseq
      %v1359 = vshrl.u32 %v1358, 7
      %v1360 = vsub.s32 %v1357, %v1359
      %v1361 = vrot.slane %v1347, %v1360
      %v1362 = vcombine.low %v1329, %v1345
      %v1363 = vcombine.high %v1329, %v1345
      %v1365 = vunpack.c.l.s4 1934713408
      %v1366 = vunpack.c.0.s8 %v1365
      %v1367 = vlaneseq
      %v1368 = vshrl.u32 %v1367, 7
      %v1369 = vsub.s32 %v1366, %v1368
      %v1370 = vrot.slane %v1362, %v1369
      %v1372 = vunpack.c.l.s4 1934713408
      %v1373 = vunpack.c.0.s8 %v1372
      %v1374 = vlaneseq
      %v1375 = vshrl.u32 %v1374, 7
      %v1376 = vsub.s32 %v1373, %v1375
      %v1377 = vrot.slane %v1363, %v1376
      %v1378 = vcombine.high %v1354, 0.0
      %v1379 = vcombine.high %v1361, 0.0
      %v1380 = vcombine.high %v1370, 0.0
      %v1381 = vcombine.high %v1377, 0.0
      %v1382 = vcombine.low %v1354, %v1361
      %v1384 = vunpack.c.l.s4 1983009808
      %v1385 = vunpack.c.0.s8 %v1384
      %v1386 = vlaneseq
      %v1387 = vshrl.u32 %v1386, 7
      %v1388 = vsub.s32 %v1385, %v1387
      %v1389 = vrot.slane %v1382, %v1388
      %v1390 = vcombine.low %v1378, %v1379
      %v1392 = vunpack.c.l.s4 1983009808
      %v1393 = vunpack.c.0.s8 %v1392
      %v1394 = vlaneseq
      %v1395 = vshrl.u32 %v1394, 7
      %v1396 = vsub.s32 %v1393, %v1395
      %v1397 = vrot.slane %v1390, %v1396
      %v1398 = vcombine.low %v1370, %v1377
      %v1400 = vunpack.c.l.s4 1983009808
      %v1401 = vunpack.c.0.s8 %v1400
      %v1402 = vlaneseq
      %v1403 = vshrl.u32 %v1402, 7
      %v1404 = vsub.s32 %v1401, %v1403
      %v1405 = vrot.slane %v1398, %v1404
      %v1406 = vcombine.low %v1380, %v1381
      %v1408 = vunpack.c.l.s4 1983009808
      %v1409 = vunpack.c.0.s8 %v1408
      %v1410 = vlaneseq
      %v1411 = vshrl.u32 %v1410, 7
      %v1412 = vsub.s32 %v1409, %v1411
      %v1413 = vrot.slane %v1406, %v1412
      %v1414 = vcombine.low %v1389, %v1397
      %v1415 = vcombine.high %v1389, %v1397
      %v1417 = vunpack.c.l.s4 1934713408
      %v1418 = vunpack.c.0.s8 %v1417
      %v1419 = vlaneseq
      %v1420 = vshrl.u32 %v1419, 7
      %v1421 = vsub.s32 %v1418, %v1420
      %v1422 = vrot.slane %v1414, %v1421
      %v1424 = vunpack.c.l.s4 1934713408
      %v1425 = vunpack.c.0.s8 %v1424
      %v1426 = vlaneseq
      %v1427 = vshrl.u32 %v1426, 7
      %v1428 = vsub.s32 %v1425, %v1427
      %v1429 = vrot.slane %v1415, %v1428
      %v1430 = vcombine.low %v1405, %v1413
      %v1431 = vcombine.high %v1405, %v1413
      %v1433 = vunpack.c.l.s4 1934713408
      %v1434 = vunpack.c.0.s8 %v1433
      %v1435 = vlaneseq
      %v1436 = vshrl.u32 %v1435, 7
      %v1437 = vsub.s32 %v1434, %v1436
      %v1438 = vrot.slane %v1430, %v1437
      %v1440 = vunpack.c.l.s4 1934713408
      %v1441 = vunpack.c.0.s8 %v1440
      %v1442 = vlaneseq
      %v1443 = vshrl.u32 %v1442, 7
      %v1444 = vsub.s32 %v1441, %v1443
      %v1445 = vrot.slane %v1431, %v1444
      %v1446 = vcombine.low %v1422, %v1438
      %v1447 = vcombine.high %v1422, %v1438
      %v1448 = vcombine.low %v1429, %v1445
      %v1449 = vcombine.high %v1429, %v1445
      %v1450 = vpack.c.bf16 %v1137, %v1137
      %v1451 = vpack.c.bf16 %v1138, %v1138
      %v1452 = vpack.c.bf16 %v1139, %v1139
      %v1453 = vpack.c.bf16 %v1140, %v1140
      %v1454 = vpack.c.bf16 %v1292, %v1292
      %v1455 = vpack.c.bf16 %v1293, %v1293
      %v1456 = vpack.c.bf16 %v1294, %v1294
      %v1457 = vpack.c.bf16 %v1295, %v1295
      %vm1458 = vcmask 64512
      %v1460 = vsel %vm1458, %v1450, 0
      %v1463 = vsel %vm1458, %v1454, 0
      %1465 = vmatprep.subr.bf16.mxu0 0
      %1466 = vmatpush1.bf16.xpose.msra.mxu0 0
      %1467 = vmatprep.subr.bf16.mxu0 0
      %1468 = vmatpush1.bf16.xpose.msra.mxu0 0
      %1469 = vmatprep.subr.bf16.mxu0 0
      %1470 = vmatpush1.bf16.xpose.msra.mxu0 0
      %1471 = vmatprep.subr.bf16.mxu0 0
      %1472 = vmatpush1.bf16.xpose.msra.mxu0 0
      %1473 = vmatprep.subr.bf16.mxu0 0
      %1474 = vmatpush1.bf16.xpose.msra.mxu0 0
      %1475 = vmatprep.subr.bf16.mxu0 0
      %1476 = vmatpush1.bf16.xpose.msra.mxu0 0
      %1477 = vmatprep.subr.bf16.mxu0 0
      %1478 = vmatpush1.bf16.xpose.msra.mxu0 0
      %1479 = vmatprep.subr.bf16.mxu0 0
      %1480 = vmatpush1.bf16.xpose.msra.mxu0 %v1463
      %1481 = vmatprep.subr.bf16.mxu0 0
      %1482 = vmatpush2.bf16.xpose.msra.mxu0 0
      %1483 = vmatprep.subr.bf16.mxu0 0
      %1484 = vmatpush2.bf16.xpose.msra.mxu0 0
      %1485 = vmatprep.subr.bf16.mxu0 0
      %1486 = vmatpush2.bf16.xpose.msra.mxu0 0
      %1487 = vmatprep.subr.bf16.mxu0 0
      %1488 = vmatpush2.bf16.xpose.msra.mxu0 0
      %1489 = vmatprep.subr.bf16.mxu0 0
      %1490 = vmatpush2.bf16.xpose.msra.mxu0 0
      %1491 = vmatprep.subr.bf16.mxu0 0
      %1492 = vmatpush2.bf16.xpose.msra.mxu0 0
      %1493 = vmatprep.subr.bf16.mxu0 0
      %1494 = vmatpush2.bf16.xpose.msra.mxu0 0
      %1495 = vmatprep.subr.bf16.mxu0 0
      %1496 = vmatpush2.bf16.xpose.msra.mxu0 0
      %1497 = vmatprep.mubr.bf16.mxu0 0
      %1498 = vmatmul.mubr.bf16.gmra.mxu0 %v1460
      %v1499 = vpop.f32.mrf.mxu0
      %v1500 = vadd.f32 0.0, %v1499
      %v1501 = vpop.f32.mrf.mxu0
      %v1502 = vpop.f32.mrf.mxu0
      %v1503 = vpop.f32.mrf.mxu0
      %1504 = vdwg.mxu0
      %v1506 = vsel %vm1458, %v1451, 0
      %v1509 = vsel %vm1458, %v1455, 0
      %1511 = vmatprep.subr.bf16.mxu0 0
      %1512 = vmatpush1.bf16.xpose.msra.mxu0 0
      %1513 = vmatprep.subr.bf16.mxu0 0
      %1514 = vmatpush1.bf16.xpose.msra.mxu0 0
      %1515 = vmatprep.subr.bf16.mxu0 0
      %1516 = vmatpush1.bf16.xpose.msra.mxu0 0
      %1517 = vmatprep.subr.bf16.mxu0 0
      %1518 = vmatpush1.bf16.xpose.msra.mxu0 0
      %1519 = vmatprep.subr.bf16.mxu0 0
      %1520 = vmatpush1.bf16.xpose.msra.mxu0 0
      %1521 = vmatprep.subr.bf16.mxu0 0
      %1522 = vmatpush1.bf16.xpose.msra.mxu0 0
      %1523 = vmatprep.subr.bf16.mxu0 0
      %1524 = vmatpush1.bf16.xpose.msra.mxu0 0
      %1525 = vmatprep.subr.bf16.mxu0 0
      %1526 = vmatpush1.bf16.xpose.msra.mxu0 %v1509
      %1527 = vmatprep.subr.bf16.mxu0 0
      %1528 = vmatpush2.bf16.xpose.msra.mxu0 0
      %1529 = vmatprep.subr.bf16.mxu0 0
      %1530 = vmatpush2.bf16.xpose.msra.mxu0 0
      %1531 = vmatprep.subr.bf16.mxu0 0
      %1532 = vmatpush2.bf16.xpose.msra.mxu0 0
      %1533 = vmatprep.subr.bf16.mxu0 0
      %1534 = vmatpush2.bf16.xpose.msra.mxu0 0
      %1535 = vmatprep.subr.bf16.mxu0 0
      %1536 = vmatpush2.bf16.xpose.msra.mxu0 0
      %1537 = vmatprep.subr.bf16.mxu0 0
      %1538 = vmatpush2.bf16.xpose.msra.mxu0 0
      %1539 = vmatprep.subr.bf16.mxu0 0
      %1540 = vmatpush2.bf16.xpose.msra.mxu0 0
      %1541 = vmatprep.subr.bf16.mxu0 0
      %1542 = vmatpush2.bf16.xpose.msra.mxu0 0
      %1543 = vmatprep.mubr.bf16.mxu0 0
      %1544 = vmatmul.mubr.bf16.gmra.mxu0 %v1506
      %v1545 = vpop.f32.mrf.mxu0
      %v1546 = vadd.f32 0.0, %v1545
      %v1547 = vpop.f32.mrf.mxu0
      %v1548 = vpop.f32.mrf.mxu0
      %v1549 = vpop.f32.mrf.mxu0
      %1550 = vdwg.mxu0
      %v1552 = vsel %vm1458, %v1452, 0
      %v1555 = vsel %vm1458, %v1456, 0
      %1557 = vmatprep.subr.bf16.mxu0 0
      %1558 = vmatpush1.bf16.xpose.msra.mxu0 0
      %1559 = vmatprep.subr.bf16.mxu0 0
      %1560 = vmatpush1.bf16.xpose.msra.mxu0 0
      %1561 = vmatprep.subr.bf16.mxu0 0
      %1562 = vmatpush1.bf16.xpose.msra.mxu0 0
      %1563 = vmatprep.subr.bf16.mxu0 0
      %1564 = vmatpush1.bf16.xpose.msra.mxu0 0
      %1565 = vmatprep.subr.bf16.mxu0 0
      %1566 = vmatpush1.bf16.xpose.msra.mxu0 0
      %1567 = vmatprep.subr.bf16.mxu0 0
      %1568 = vmatpush1.bf16.xpose.msra.mxu0 0
      %1569 = vmatprep.subr.bf16.mxu0 0
      %1570 = vmatpush1.bf16.xpose.msra.mxu0 0
      %1571 = vmatprep.subr.bf16.mxu0 0
      %1572 = vmatpush1.bf16.xpose.msra.mxu0 %v1555
      %1573 = vmatprep.subr.bf16.mxu0 0
      %1574 = vmatpush2.bf16.xpose.msra.mxu0 0
      %1575 = vmatprep.subr.bf16.mxu0 0
      %1576 = vmatpush2.bf16.xpose.msra.mxu0 0
      %1577 = vmatprep.subr.bf16.mxu0 0
      %1578 = vmatpush2.bf16.xpose.msra.mxu0 0
      %1579 = vmatprep.subr.bf16.mxu0 0
      %1580 = vmatpush2.bf16.xpose.msra.mxu0 0
      %1581 = vmatprep.subr.bf16.mxu0 0
      %1582 = vmatpush2.bf16.xpose.msra.mxu0 0
      %1583 = vmatprep.subr.bf16.mxu0 0
      %1584 = vmatpush2.bf16.xpose.msra.mxu0 0
      %1585 = vmatprep.subr.bf16.mxu0 0
      %1586 = vmatpush2.bf16.xpose.msra.mxu0 0
      %1587 = vmatprep.subr.bf16.mxu0 0
      %1588 = vmatpush2.bf16.xpose.msra.mxu0 0
      %1589 = vmatprep.mubr.bf16.mxu0 0
      %1590 = vmatmul.mubr.bf16.gmra.mxu0 %v1552
      %v1591 = vpop.f32.mrf.mxu0
      %v1592 = vadd.f32 0.0, %v1591
      %v1593 = vpop.f32.mrf.mxu0
      %v1594 = vpop.f32.mrf.mxu0
      %v1595 = vpop.f32.mrf.mxu0
      %1596 = vdwg.mxu0
      %v1598 = vsel %vm1458, %v1453, 0
      %v1601 = vsel %vm1458, %v1457, 0
      %1603 = vmatprep.subr.bf16.mxu0 0
      %1604 = vmatpush1.bf16.xpose.msra.mxu0 0
      %1605 = vmatprep.subr.bf16.mxu0 0
      %1606 = vmatpush1.bf16.xpose.msra.mxu0 0
      %1607 = vmatprep.subr.bf16.mxu0 0
      %1608 = vmatpush1.bf16.xpose.msra.mxu0 0
      %1609 = vmatprep.subr.bf16.mxu0 0
      %1610 = vmatpush1.bf16.xpose.msra.mxu0 0
      %1611 = vmatprep.subr.bf16.mxu0 0
      %1612 = vmatpush1.bf16.xpose.msra.mxu0 0
      %1613 = vmatprep.subr.bf16.mxu0 0
      %1614 = vmatpush1.bf16.xpose.msra.mxu0 0
      %1615 = vmatprep.subr.bf16.mxu0 0
      %1616 = vmatpush1.bf16.xpose.msra.mxu0 0
      %1617 = vmatprep.subr.bf16.mxu0 0
      %1618 = vmatpush1.bf16.xpose.msra.mxu0 %v1601
      %1619 = vmatprep.subr.bf16.mxu0 0
      %1620 = vmatpush2.bf16.xpose.msra.mxu0 0
      %1621 = vmatprep.subr.bf16.mxu0 0
      %1622 = vmatpush2.bf16.xpose.msra.mxu0 0
      %1623 = vmatprep.subr.bf16.mxu0 0
      %1624 = vmatpush2.bf16.xpose.msra.mxu0 0
      %1625 = vmatprep.subr.bf16.mxu0 0
      %1626 = vmatpush2.bf16.xpose.msra.mxu0 0
      %1627 = vmatprep.subr.bf16.mxu0 0
      %1628 = vmatpush2.bf16.xpose.msra.mxu0 0
      %1629 = vmatprep.subr.bf16.mxu0 0
      %1630 = vmatpush2.bf16.xpose.msra.mxu0 0
      %1631 = vmatprep.subr.bf16.mxu0 0
      %1632 = vmatpush2.bf16.xpose.msra.mxu0 0
      %1633 = vmatprep.subr.bf16.mxu0 0
      %1634 = vmatpush2.bf16.xpose.msra.mxu0 0
      %1635 = vmatprep.mubr.bf16.mxu0 0
      %1636 = vmatmul.mubr.bf16.gmra.mxu0 %v1598
      %v1637 = vpop.f32.mrf.mxu0
      %v1638 = vadd.f32 0.0, %v1637
      %v1639 = vpop.f32.mrf.mxu0
      %v1640 = vpop.f32.mrf.mxu0
      %v1641 = vpop.f32.mrf.mxu0
      %1642 = vdwg.mxu0
      %v1643 = vmul.f32 %v1500, 0.35355338
      %v1644 = vmul.f32 %v1546, 0.35355338
      %v1645 = vmul.f32 %v1592, 0.35355338
      %v1646 = vmul.f32 %v1638, 0.35355338
      %v1647 = vlaneseq
      %v1648 = vshrl.u32 %v1647, 7
      %v1649 = vlaneseq
      %v1650 = vand.u32 %v1649, 127
      %vm1651 = vcmp.ge.s32.totalorder %v1648, %v1650
      %v1652 = vsel %vm1651, 1, 0
      %vm1653 = vcmp.eq.s32.totalorder %v1652, 1
      %v1654 = vsel %vm1653, %v1643, -1e+30
      %v1655 = vsel %vm1653, %v1644, -1e+30
      %v1656 = vsel %vm1653, %v1645, -1e+30
      %v1657 = vsel %vm1653, %v1646, -1e+30
      %v1658 = vsel %vm1458, %v1654, -inf
      %1659 = vmax.xlane.f32.xlu0 %v1658
      %v1660 = vpop.xlane.xlu0 %1659
      %v1661 = vsel %vm1458, %v1655, -inf
      %1662 = vmax.xlane.f32.xlu0 %v1661
      %v1663 = vpop.xlane.xlu0 %1662
      %v1664 = vsel %vm1458, %v1656, -inf
      %1665 = vmax.xlane.f32.xlu0 %v1664
      %v1666 = vpop.xlane.xlu0 %1665
      %v1667 = vsel %vm1458, %v1657, -inf
      %1668 = vmax.xlane.f32.xlu0 %v1667
      %v1669 = vpop.xlane.xlu0 %1668
      %v1670 = vsub.f32 %v1654, %v1660
      %v1671 = vsub.f32 %v1655, %v1663
      %v1672 = vsub.f32 %v1656, %v1666
      %v1673 = vsub.f32 %v1657, %v1669
      %v1674 = vmul.f32 %v1670, 1.442695
      %v1675 = vpow.pop %v1674
      %v1676 = vmul.f32 %v1671, 1.442695
      %v1677 = vpow.pop %v1676
      %v1678 = vmul.f32 %v1672, 1.442695
      %v1679 = vpow.pop %v1678
      %v1680 = vmul.f32 %v1673, 1.442695
      %v1681 = vpow.pop %v1680
      %v1682 = vsel %vm1458, %v1675, 0.0
      %1683 = vadd.xlane.f32.xlu0 %v1682
      %v1684 = vpop.xlane.xlu0 %1683
      %v1685 = vsel %vm1458, %v1677, 0.0
      %1686 = vadd.xlane.f32.xlu0 %v1685
      %v1687 = vpop.xlane.xlu0 %1686
      %v1688 = vsel %vm1458, %v1679, 0.0
      %1689 = vadd.xlane.f32.xlu0 %v1688
      %v1690 = vpop.xlane.xlu0 %1689
      %v1691 = vsel %vm1458, %v1681, 0.0
      %1692 = vadd.xlane.f32.xlu0 %v1691
      %v1693 = vpop.xlane.xlu0 %1692
      %v1694 = vrcp.pop %v1684
      %v1695 = vrcp.pop %v1687
      %v1696 = vrcp.pop %v1690
      %v1697 = vrcp.pop %v1693
      %v1698 = vmul.f32 %v1675, %v1694
      %v1699 = vmul.f32 %v1677, %v1695
      %v1700 = vmul.f32 %v1679, %v1696
      %v1701 = vmul.f32 %v1681, %v1697
      %v1702 = vpack.c.bf16 %v1698, %v1698
      %v1703 = vpack.c.bf16 %v1699, %v1699
      %v1704 = vpack.c.bf16 %v1700, %v1700
      %v1705 = vpack.c.bf16 %v1701, %v1701
      %v1706 = vpack.c.bf16 %v1446, %v1446
      %v1707 = vpack.c.bf16 %v1447, %v1447
      %v1708 = vpack.c.bf16 %v1448, %v1448
      %v1709 = vpack.c.bf16 %v1449, %v1449
      %v1711 = vsel %vm1458, %v1702, 0
      %vm1713 = vcmask 1043456
      %v1715 = vsel %vm1713, %v1706, 0
      %1717 = vmatprep.subr.bf16.mxu0 0
      %1718 = vmatpush1.bf16.msra.mxu0 0
      %1719 = vmatprep.subr.bf16.mxu0 0
      %1720 = vmatpush1.bf16.msra.mxu0 0
      %1721 = vmatprep.subr.bf16.mxu0 0
      %1722 = vmatpush1.bf16.msra.mxu0 0
      %1723 = vmatprep.subr.bf16.mxu0 0
      %1724 = vmatpush1.bf16.msra.mxu0 0
      %1725 = vmatprep.subr.bf16.mxu0 0
      %1726 = vmatpush1.bf16.msra.mxu0 0
      %1727 = vmatprep.subr.bf16.mxu0 0
      %1728 = vmatpush1.bf16.msra.mxu0 0
      %1729 = vmatprep.subr.bf16.mxu0 0
      %1730 = vmatpush1.bf16.msra.mxu0 0
      %1731 = vmatprep.subr.bf16.mxu0 0
      %1732 = vmatpush1.bf16.msra.mxu0 %v1715
      %1733 = vmatprep.subr.bf16.mxu0 0
      %1734 = vmatpush2.bf16.msra.mxu0 0
      %1735 = vmatprep.subr.bf16.mxu0 0
      %1736 = vmatpush2.bf16.msra.mxu0 0
      %1737 = vmatprep.subr.bf16.mxu0 0
      %1738 = vmatpush2.bf16.msra.mxu0 0
      %1739 = vmatprep.subr.bf16.mxu0 0
      %1740 = vmatpush2.bf16.msra.mxu0 0
      %1741 = vmatprep.subr.bf16.mxu0 0
      %1742 = vmatpush2.bf16.msra.mxu0 0
      %1743 = vmatprep.subr.bf16.mxu0 0
      %1744 = vmatpush2.bf16.msra.mxu0 0
      %1745 = vmatprep.subr.bf16.mxu0 0
      %1746 = vmatpush2.bf16.msra.mxu0 0
      %1747 = vmatprep.subr.bf16.mxu0 0
      %1748 = vmatpush2.bf16.msra.mxu0 0
      %1749 = vmatprep.mubr.bf16.mxu0 0
      %1750 = vmatmul.mubr.bf16.gmra.mxu0 %v1711
      %v1751 = vpop.f32.mrf.mxu0
      %v1752 = vadd.f32 0.0, %v1751
      %v1753 = vpop.f32.mrf.mxu0
      %v1754 = vpop.f32.mrf.mxu0
      %v1755 = vpop.f32.mrf.mxu0
      %1756 = vdwg.mxu0
      %v1758 = vsel %vm1458, %v1703, 0
      %v1761 = vsel %vm1713, %v1707, 0
      %1763 = vmatprep.subr.bf16.mxu0 0
      %1764 = vmatpush1.bf16.msra.mxu0 0
      %1765 = vmatprep.subr.bf16.mxu0 0
      %1766 = vmatpush1.bf16.msra.mxu0 0
      %1767 = vmatprep.subr.bf16.mxu0 0
      %1768 = vmatpush1.bf16.msra.mxu0 0
      %1769 = vmatprep.subr.bf16.mxu0 0
      %1770 = vmatpush1.bf16.msra.mxu0 0
      %1771 = vmatprep.subr.bf16.mxu0 0
      %1772 = vmatpush1.bf16.msra.mxu0 0
      %1773 = vmatprep.subr.bf16.mxu0 0
      %1774 = vmatpush1.bf16.msra.mxu0 0
      %1775 = vmatprep.subr.bf16.mxu0 0
      %1776 = vmatpush1.bf16.msra.mxu0 0
      %1777 = vmatprep.subr.bf16.mxu0 0
      %1778 = vmatpush1.bf16.msra.mxu0 %v1761
      %1779 = vmatprep.subr.bf16.mxu0 0
      %1780 = vmatpush2.bf16.msra.mxu0 0
      %1781 = vmatprep.subr.bf16.mxu0 0
      %1782 = vmatpush2.bf16.msra.mxu0 0
      %1783 = vmatprep.subr.bf16.mxu0 0
      %1784 = vmatpush2.bf16.msra.mxu0 0
      %1785 = vmatprep.subr.bf16.mxu0 0
      %1786 = vmatpush2.bf16.msra.mxu0 0
      %1787 = vmatprep.subr.bf16.mxu0 0
      %1788 = vmatpush2.bf16.msra.mxu0 0
      %1789 = vmatprep.subr.bf16.mxu0 0
      %1790 = vmatpush2.bf16.msra.mxu0 0
      %1791 = vmatprep.subr.bf16.mxu0 0
      %1792 = vmatpush2.bf16.msra.mxu0 0
      %1793 = vmatprep.subr.bf16.mxu0 0
      %1794 = vmatpush2.bf16.msra.mxu0 0
      %1795 = vmatprep.mubr.bf16.mxu0 0
      %1796 = vmatmul.mubr.bf16.gmra.mxu0 %v1758
      %v1797 = vpop.f32.mrf.mxu0
      %v1798 = vadd.f32 0.0, %v1797
      %v1799 = vpop.f32.mrf.mxu0
      %v1800 = vpop.f32.mrf.mxu0
      %v1801 = vpop.f32.mrf.mxu0
      %1802 = vdwg.mxu0
      %v1804 = vsel %vm1458, %v1704, 0
      %v1807 = vsel %vm1713, %v1708, 0
      %1809 = vmatprep.subr.bf16.mxu0 0
      %1810 = vmatpush1.bf16.msra.mxu0 0
      %1811 = vmatprep.subr.bf16.mxu0 0
      %1812 = vmatpush1.bf16.msra.mxu0 0
      %1813 = vmatprep.subr.bf16.mxu0 0
      %1814 = vmatpush1.bf16.msra.mxu0 0
      %1815 = vmatprep.subr.bf16.mxu0 0
      %1816 = vmatpush1.bf16.msra.mxu0 0
      %1817 = vmatprep.subr.bf16.mxu0 0
      %1818 = vmatpush1.bf16.msra.mxu0 0
      %1819 = vmatprep.subr.bf16.mxu0 0
      %1820 = vmatpush1.bf16.msra.mxu0 0
      %1821 = vmatprep.subr.bf16.mxu0 0
      %1822 = vmatpush1.bf16.msra.mxu0 0
      %1823 = vmatprep.subr.bf16.mxu0 0
      %1824 = vmatpush1.bf16.msra.mxu0 %v1807
      %1825 = vmatprep.subr.bf16.mxu0 0
      %1826 = vmatpush2.bf16.msra.mxu0 0
      %1827 = vmatprep.subr.bf16.mxu0 0
      %1828 = vmatpush2.bf16.msra.mxu0 0
      %1829 = vmatprep.subr.bf16.mxu0 0
      %1830 = vmatpush2.bf16.msra.mxu0 0
      %1831 = vmatprep.subr.bf16.mxu0 0
      %1832 = vmatpush2.bf16.msra.mxu0 0
      %1833 = vmatprep.subr.bf16.mxu0 0
      %1834 = vmatpush2.bf16.msra.mxu0 0
      %1835 = vmatprep.subr.bf16.mxu0 0
      %1836 = vmatpush2.bf16.msra.mxu0 0
      %1837 = vmatprep.subr.bf16.mxu0 0
      %1838 = vmatpush2.bf16.msra.mxu0 0
      %1839 = vmatprep.subr.bf16.mxu0 0
      %1840 = vmatpush2.bf16.msra.mxu0 0
      %1841 = vmatprep.mubr.bf16.mxu0 0
      %1842 = vmatmul.mubr.bf16.gmra.mxu0 %v1804
      %v1843 = vpop.f32.mrf.mxu0
      %v1844 = vadd.f32 0.0, %v1843
      %v1845 = vpop.f32.mrf.mxu0
      %v1846 = vpop.f32.mrf.mxu0
      %v1847 = vpop.f32.mrf.mxu0
      %1848 = vdwg.mxu0
      %v1850 = vsel %vm1458, %v1705, 0
      %v1853 = vsel %vm1713, %v1709, 0
      %1855 = vmatprep.subr.bf16.mxu0 0
      %1856 = vmatpush1.bf16.msra.mxu0 0
      %1857 = vmatprep.subr.bf16.mxu0 0
      %1858 = vmatpush1.bf16.msra.mxu0 0
      %1859 = vmatprep.subr.bf16.mxu0 0
      %1860 = vmatpush1.bf16.msra.mxu0 0
      %1861 = vmatprep.subr.bf16.mxu0 0
      %1862 = vmatpush1.bf16.msra.mxu0 0
      %1863 = vmatprep.subr.bf16.mxu0 0
      %1864 = vmatpush1.bf16.msra.mxu0 0
      %1865 = vmatprep.subr.bf16.mxu0 0
      %1866 = vmatpush1.bf16.msra.mxu0 0
      %1867 = vmatprep.subr.bf16.mxu0 0
      %1868 = vmatpush1.bf16.msra.mxu0 0
      %1869 = vmatprep.subr.bf16.mxu0 0
      %1870 = vmatpush1.bf16.msra.mxu0 %v1853
      %1871 = vmatprep.subr.bf16.mxu0 0
      %1872 = vmatpush2.bf16.msra.mxu0 0
      %1873 = vmatprep.subr.bf16.mxu0 0
      %1874 = vmatpush2.bf16.msra.mxu0 0
      %1875 = vmatprep.subr.bf16.mxu0 0
      %1876 = vmatpush2.bf16.msra.mxu0 0
      %1877 = vmatprep.subr.bf16.mxu0 0
      %1878 = vmatpush2.bf16.msra.mxu0 0
      %1879 = vmatprep.subr.bf16.mxu0 0
      %1880 = vmatpush2.bf16.msra.mxu0 0
      %1881 = vmatprep.subr.bf16.mxu0 0
      %1882 = vmatpush2.bf16.msra.mxu0 0
      %1883 = vmatprep.subr.bf16.mxu0 0
      %1884 = vmatpush2.bf16.msra.mxu0 0
      %1885 = vmatprep.subr.bf16.mxu0 0
      %1886 = vmatpush2.bf16.msra.mxu0 0
      %1887 = vmatprep.mubr.bf16.mxu0 0
      %1888 = vmatmul.mubr.bf16.gmra.mxu0 %v1850
      %v1889 = vpop.f32.mrf.mxu0
      %v1890 = vadd.f32 0.0, %v1889
      %v1891 = vpop.f32.mrf.mxu0
      %v1892 = vpop.f32.mrf.mxu0
      %v1893 = vpop.f32.mrf.mxu0
      %1894 = vdwg.mxu0
      %v1895 = vcombine.low %v1752, %v1844
      %v1896 = vcombine.high %v1752, %v1844
      %v1898 = vunpack.c.l.s4 1983009808
      %v1899 = vunpack.c.0.s8 %v1898
      %v1900 = vlaneseq
      %v1901 = vshrl.u32 %v1900, 7
      %v1902 = vsub.s32 %v1899, %v1901
      %v1903 = vrot.slane %v1895, %v1902
      %v1905 = vunpack.c.l.s4 1983009808
      %v1906 = vunpack.c.0.s8 %v1905
      %v1907 = vlaneseq
      %v1908 = vshrl.u32 %v1907, 7
      %v1909 = vsub.s32 %v1906, %v1908
      %v1910 = vrot.slane %v1896, %v1909
      %v1911 = vcombine.low %v1798, %v1890
      %v1912 = vcombine.high %v1798, %v1890
      %v1914 = vunpack.c.l.s4 1983009808
      %v1915 = vunpack.c.0.s8 %v1914
      %v1916 = vlaneseq
      %v1917 = vshrl.u32 %v1916, 7
      %v1918 = vsub.s32 %v1915, %v1917
      %v1919 = vrot.slane %v1911, %v1918
      %v1921 = vunpack.c.l.s4 1983009808
      %v1922 = vunpack.c.0.s8 %v1921
      %v1923 = vlaneseq
      %v1924 = vshrl.u32 %v1923, 7
      %v1925 = vsub.s32 %v1922, %v1924
      %v1926 = vrot.slane %v1912, %v1925
      %v1927 = vcombine.low %v1903, %v1919
      %v1928 = vcombine.high %v1903, %v1919
      %v1930 = vunpack.c.l.s4 1934713408
      %v1931 = vunpack.c.0.s8 %v1930
      %v1932 = vlaneseq
      %v1933 = vshrl.u32 %v1932, 7
      %v1934 = vsub.s32 %v1931, %v1933
      %v1935 = vrot.slane %v1927, %v1934
      %v1937 = vunpack.c.l.s4 1934713408
      %v1938 = vunpack.c.0.s8 %v1937
      %v1939 = vlaneseq
      %v1940 = vshrl.u32 %v1939, 7
      %v1941 = vsub.s32 %v1938, %v1940
      %v1942 = vrot.slane %v1928, %v1941
      %v1943 = vcombine.low %v1910, %v1926
      %v1944 = vcombine.high %v1910, %v1926
      %v1946 = vunpack.c.l.s4 1934713408
      %v1947 = vunpack.c.0.s8 %v1946
      %v1948 = vlaneseq
      %v1949 = vshrl.u32 %v1948, 7
      %v1950 = vsub.s32 %v1947, %v1949
      %v1951 = vrot.slane %v1943, %v1950
      %v1953 = vunpack.c.l.s4 1934713408
      %v1954 = vunpack.c.0.s8 %v1953
      %v1955 = vlaneseq
      %v1956 = vshrl.u32 %v1955, 7
      %v1957 = vsub.s32 %v1954, %v1956
      %v1958 = vrot.slane %v1944, %v1957
      %v1959 = vcombine.high %v1935, 0.0
      %v1960 = vcombine.high %v1942, 0.0
      %v1961 = vcombine.high %v1951, 0.0
      %v1962 = vcombine.high %v1958, 0.0
      %v1963 = vcombine.low %v1935, %v1942
      %v1965 = vunpack.c.l.s4 1983009808
      %v1966 = vunpack.c.0.s8 %v1965
      %v1967 = vlaneseq
      %v1968 = vshrl.u32 %v1967, 7
      %v1969 = vsub.s32 %v1966, %v1968
      %v1970 = vrot.slane %v1963, %v1969
      %v1971 = vcombine.low %v1959, %v1960
      %v1973 = vunpack.c.l.s4 1983009808
      %v1974 = vunpack.c.0.s8 %v1973
      %v1975 = vlaneseq
      %v1976 = vshrl.u32 %v1975, 7
      %v1977 = vsub.s32 %v1974, %v1976
      %v1978 = vrot.slane %v1971, %v1977
      %v1979 = vcombine.low %v1951, %v1958
      %v1981 = vunpack.c.l.s4 1983009808
      %v1982 = vunpack.c.0.s8 %v1981
      %v1983 = vlaneseq
      %v1984 = vshrl.u32 %v1983, 7
      %v1985 = vsub.s32 %v1982, %v1984
      %v1986 = vrot.slane %v1979, %v1985
      %v1987 = vcombine.low %v1961, %v1962
      %v1989 = vunpack.c.l.s4 1983009808
      %v1990 = vunpack.c.0.s8 %v1989
      %v1991 = vlaneseq
      %v1992 = vshrl.u32 %v1991, 7
      %v1993 = vsub.s32 %v1990, %v1992
      %v1994 = vrot.slane %v1987, %v1993
      %v1995 = vcombine.low %v1970, %v1978
      %v1996 = vcombine.high %v1970, %v1978
      %v1998 = vunpack.c.l.s4 1934713408
      %v1999 = vunpack.c.0.s8 %v1998
      %v2000 = vlaneseq
      %v2001 = vshrl.u32 %v2000, 7
      %v2002 = vsub.s32 %v1999, %v2001
      %v2003 = vrot.slane %v1995, %v2002
      %v2005 = vunpack.c.l.s4 1934713408
      %v2006 = vunpack.c.0.s8 %v2005
      %v2007 = vlaneseq
      %v2008 = vshrl.u32 %v2007, 7
      %v2009 = vsub.s32 %v2006, %v2008
      %v2010 = vrot.slane %v1996, %v2009
      %v2011 = vcombine.low %v1986, %v1994
      %v2012 = vcombine.high %v1986, %v1994
      %v2014 = vunpack.c.l.s4 1934713408
      %v2015 = vunpack.c.0.s8 %v2014
      %v2016 = vlaneseq
      %v2017 = vshrl.u32 %v2016, 7
      %v2018 = vsub.s32 %v2015, %v2017
      %v2019 = vrot.slane %v2011, %v2018
      %v2021 = vunpack.c.l.s4 1934713408
      %v2022 = vunpack.c.0.s8 %v2021
      %v2023 = vlaneseq
      %v2024 = vshrl.u32 %v2023, 7
      %v2025 = vsub.s32 %v2022, %v2024
      %v2026 = vrot.slane %v2012, %v2025
      %v2027 = vcombine.low %v2003, %v2019
      %v2028 = vcombine.high %v2003, %v2019
      %v2029 = vcombine.low %v2010, %v2026
      %v2030 = vcombine.high %v2010, %v2026
      %2032 = vrot.lane.b32.xlu0 %v2028, 8
      %v2033 = vpop.permute.xlu0 %2032
      %2036 = vrot.lane.b32.xlu0 %v2029, 16
      %v2037 = vpop.permute.xlu0 %2036
      %2040 = vrot.lane.b32.xlu0 %v2030, 24
      %v2041 = vpop.permute.xlu0 %2040
      %v2043 = vsel %vm1458, %v2027, %v2033
      %vm2044 = vcmask 130048
      %v2045 = vsel %vm2044, %v2043, %v2037
      %vm2046 = vcmask 195584
      %v2047 = vsel %vm2046, %v2045, %v2041
      %v2048 = vpack.c.bf16 %v2047, %v2047
      %v2049 = vld [vmem:[%s697] sm:$0xf]
      %v2050 = vld [vmem:[%s697 + $0x4] sm:$0xf]
      %v2051 = vld [vmem:[%s697 + $0x8] sm:$0xf]
      %v2052 = vld [vmem:[%s697 + $0xc] sm:$0xf]
      %v2053 = vld [vmem:[%s700] sm:$0x1]
      %v2055 = vlaneseq
      %v2056 = vshrl.u32 %v2055, 7
      %v2057 = vsub.s32 0, %v2056
      %v2058 = vrot.slane %v2053, %v2057
      %v2064 = vunpack.c.l.b16 %v2049
      %v2065 = vunpack.c.l.b16 %v2050
      %v2066 = vunpack.c.l.b16 %v2051
      %v2067 = vunpack.c.l.b16 %v2052
      %v2068 = vpack.c.b16 %v2065, %v2064
      %v2069 = vpack.c.b16 %v2067, %v2066
      %v2073 = vsel %vm732, %v2048, 0
      %2075 = vmatprep.subr.bf16.mxu0 0
      %2076 = vmatpush1.bf16.msra.mxu0 0
      %2077 = vmatprep.subr.bf16.mxu0 0
      %2078 = vmatpush1.bf16.msra.mxu0 0
      %2079 = vmatprep.subr.bf16.mxu0 0
      %2080 = vmatpush1.bf16.msra.mxu0 0
      %2081 = vmatprep.subr.bf16.mxu0 0
      %2082 = vmatpush1.bf16.msra.mxu0 0
      %2083 = vmatprep.subr.bf16.mxu0 0
      %2084 = vmatpush1.bf16.msra.mxu0 0
      %2085 = vmatprep.subr.bf16.mxu0 0
      %2086 = vmatpush1.bf16.msra.mxu0 0
      %2087 = vmatprep.subr.bf16.mxu0 0
      %2088 = vmatpush1.bf16.msra.mxu0 %v2069
      %2089 = vmatprep.subr.bf16.mxu0 0
      %2090 = vmatpush1.bf16.msra.mxu0 %v2068
      %2091 = vmatprep.subr.bf16.mxu0 0
      %2092 = vmatpush2.bf16.msra.mxu0 0
      %2093 = vmatprep.subr.bf16.mxu0 0
      %2094 = vmatpush2.bf16.msra.mxu0 0
      %2095 = vmatprep.subr.bf16.mxu0 0
      %2096 = vmatpush2.bf16.msra.mxu0 0
      %2097 = vmatprep.subr.bf16.mxu0 0
      %2098 = vmatpush2.bf16.msra.mxu0 0
      %2099 = vmatprep.subr.bf16.mxu0 0
      %2100 = vmatpush2.bf16.msra.mxu0 0
      %2101 = vmatprep.subr.bf16.mxu0 0
      %2102 = vmatpush2.bf16.msra.mxu0 0
      %2103 = vmatprep.subr.bf16.mxu0 0
      %2104 = vmatpush2.bf16.msra.mxu0 0
      %2105 = vmatprep.subr.bf16.mxu0 0
      %2106 = vmatpush2.bf16.msra.mxu0 0
      %2107 = vmatprep.mubr.bf16.mxu0 0
      %2108 = vmatmul.mubr.bf16.gmra.mxu0 %v2073
      %v2109 = vpop.f32.mrf.mxu0
      %v2110 = vadd.f32 %v2058, %v2109
      %v2111 = vpop.f32.mrf.mxu0
      %v2112 = vpop.f32.mrf.mxu0
      %v2113 = vpop.f32.mrf.mxu0
      %2114 = vdwg.mxu0
      %v2115 = vld [vmem:[%s681] sm:$0x1]
      %v2116 = vld [vmem:[%s684] sm:$0x1]
      %v2118 = vlaneseq
      %v2119 = vshrl.u32 %v2118, 7
      %v2120 = vsub.s32 0, %v2119
      %v2121 = vrot.slane %v2115, %v2120
      %v2123 = vmul.f32 %v746, %v2121
      %v2125 = vlaneseq
      %v2126 = vshrl.u32 %v2125, 7
      %v2127 = vsub.s32 0, %v2126
      %v2128 = vrot.slane %v2116, %v2127
      %v2130 = vadd.f32 %v2123, %v2128
      %v2131 = vpack.c.bf16 %v2130, %v2130
      %v2132 = vld [vmem:[%s705] sm:$0xf]
      %v2133 = vld [vmem:[%s705 + $0x4] sm:$0xf]
      %v2134 = vld [vmem:[%s705 + $0x8] sm:$0xf]
      %v2135 = vld [vmem:[%s705 + $0xc] sm:$0xf]
      %v2136 = vld [vmem:[%s708] sm:$0x1]
      %v2138 = vlaneseq
      %v2139 = vshrl.u32 %v2138, 7
      %v2140 = vsub.s32 0, %v2139
      %v2141 = vrot.slane %v2136, %v2140
      %v2147 = vunpack.c.l.b16 %v2132
      %v2148 = vunpack.c.l.b16 %v2133
      %v2149 = vunpack.c.l.b16 %v2134
      %v2150 = vunpack.c.l.b16 %v2135
      %v2151 = vpack.c.b16 %v2148, %v2147
      %v2152 = vpack.c.b16 %v2150, %v2149
      %v2156 = vsel %vm732, %v2131, 0
      %2158 = vmatprep.subr.bf16.mxu0 0
      %2159 = vmatpush1.bf16.msra.mxu0 0
      %2160 = vmatprep.subr.bf16.mxu0 0
      %2161 = vmatpush1.bf16.msra.mxu0 0
      %2162 = vmatprep.subr.bf16.mxu0 0
      %2163 = vmatpush1.bf16.msra.mxu0 0
      %2164 = vmatprep.subr.bf16.mxu0 0
      %2165 = vmatpush1.bf16.msra.mxu0 0
      %2166 = vmatprep.subr.bf16.mxu0 0
      %2167 = vmatpush1.bf16.msra.mxu0 0
      %2168 = vmatprep.subr.bf16.mxu0 0
      %2169 = vmatpush1.bf16.msra.mxu0 0
      %2170 = vmatprep.subr.bf16.mxu0 0
      %2171 = vmatpush1.bf16.msra.mxu0 %v2152
      %2172 = vmatprep.subr.bf16.mxu0 0
      %2173 = vmatpush1.bf16.msra.mxu0 %v2151
      %2174 = vmatprep.subr.bf16.mxu0 0
      %2175 = vmatpush2.bf16.msra.mxu0 0
      %2176 = vmatprep.subr.bf16.mxu0 0
      %2177 = vmatpush2.bf16.msra.mxu0 0
      %2178 = vmatprep.subr.bf16.mxu0 0
      %2179 = vmatpush2.bf16.msra.mxu0 0
      %2180 = vmatprep.subr.bf16.mxu0 0
      %2181 = vmatpush2.bf16.msra.mxu0 0
      %2182 = vmatprep.subr.bf16.mxu0 0
      %2183 = vmatpush2.bf16.msra.mxu0 0
      %2184 = vmatprep.subr.bf16.mxu0 0
      %2185 = vmatpush2.bf16.msra.mxu0 0
      %2186 = vmatprep.subr.bf16.mxu0 0
      %2187 = vmatpush2.bf16.msra.mxu0 0
      %2188 = vmatprep.subr.bf16.mxu0 0
      %2189 = vmatpush2.bf16.msra.mxu0 0
      %2190 = vmatprep.mubr.bf16.mxu0 0
      %2191 = vmatmul.mubr.bf16.gmra.mxu0 %v2156
      %v2192 = vpop.f32.mrf.mxu0
      %v2193 = vadd.f32 %v2141, %v2192
      %v2194 = vpop.f32.mrf.mxu0
      %v2195 = vpop.f32.mrf.mxu0
      %v2196 = vpop.f32.mrf.mxu0
      %2197 = vdwg.mxu0
      %v2198 = vmul.f32 %v2193, %v2193
      %v2199 = vmul.f32 %v2193, %v2198
      %v2200 = vmul.f32 %v2199, 0.044715
      %v2201 = vadd.f32 %v2193, %v2200
      %v2202 = vmul.f32 %v2201, 0.7978846
      %v2203 = vtanh.pop %v2202
      %v2204 = vadd.f32 %v2203, 1.0
      %v2205 = vmul.f32 %v2204, 0.5
      %v2206 = vmul.f32 %v2193, %v2205
      %v2207 = vpack.c.bf16 %v2206, %v2206
      %v2208 = vld [vmem:[%s713] sm:$0xf]
      %v2209 = vld [vmem:[%s713 + $0x4] sm:$0xf]
      %v2210 = vld [vmem:[%s713 + $0x8] sm:$0xf]
      %v2211 = vld [vmem:[%s713 + $0xc] sm:$0xf]
      %v2212 = vld [vmem:[%s713 + $0x10] sm:$0xf]
      %v2213 = vld [vmem:[%s713 + $0x14] sm:$0xf]
      %v2214 = vld [vmem:[%s713 + $0x18] sm:$0xf]
      %v2215 = vld [vmem:[%s713 + $0x1c] sm:$0xf]
      %v2216 = vld [vmem:[%s713 + $0x20] sm:$0xf]
      %v2217 = vld [vmem:[%s713 + $0x24] sm:$0xf]
      %v2218 = vld [vmem:[%s713 + $0x28] sm:$0xf]
      %v2219 = vld [vmem:[%s713 + $0x2c] sm:$0xf]
      %v2220 = vld [vmem:[%s713 + $0x30] sm:$0xf]
      %v2221 = vld [vmem:[%s713 + $0x34] sm:$0xf]
      %v2222 = vld [vmem:[%s713 + $0x38] sm:$0xf]
      %v2223 = vld [vmem:[%s713 + $0x3c] sm:$0xf]
      %v2224 = vld [vmem:[%s716] sm:$0x1]
      %v2226 = vlaneseq
      %v2227 = vshrl.u32 %v2226, 7
      %v2228 = vsub.s32 0, %v2227
      %v2229 = vrot.slane %v2224, %v2228
      %v2247 = vunpack.c.l.b16 %v2208
      %v2248 = vunpack.c.l.b16 %v2209
      %v2249 = vunpack.c.l.b16 %v2210
      %v2250 = vunpack.c.l.b16 %v2211
      %v2251 = vunpack.c.l.b16 %v2212
      %v2252 = vunpack.c.l.b16 %v2213
      %v2253 = vunpack.c.l.b16 %v2214
      %v2254 = vunpack.c.l.b16 %v2215
      %v2255 = vunpack.c.l.b16 %v2216
      %v2256 = vunpack.c.l.b16 %v2217
      %v2257 = vunpack.c.l.b16 %v2218
      %v2258 = vunpack.c.l.b16 %v2219
      %v2259 = vunpack.c.l.b16 %v2220
      %v2260 = vunpack.c.l.b16 %v2221
      %v2261 = vunpack.c.l.b16 %v2222
      %v2262 = vunpack.c.l.b16 %v2223
      %v2263 = vpack.c.b16 %v2248, %v2247
      %v2264 = vpack.c.b16 %v2250, %v2249
      %v2265 = vpack.c.b16 %v2252, %v2251
      %v2266 = vpack.c.b16 %v2254, %v2253
      %v2267 = vpack.c.b16 %v2256, %v2255
      %v2268 = vpack.c.b16 %v2258, %v2257
      %v2269 = vpack.c.b16 %v2260, %v2259
      %v2270 = vpack.c.b16 %v2262, %v2261
      %2279 = vmatprep.subr.bf16.mxu0 0
      %2280 = vmatpush1.bf16.msra.mxu0 %v2270
      %2281 = vmatprep.subr.bf16.mxu0 0
      %2282 = vmatpush1.bf16.msra.mxu0 %v2269
      %2283 = vmatprep.subr.bf16.mxu0 0
      %2284 = vmatpush1.bf16.msra.mxu0 %v2268
      %2285 = vmatprep.subr.bf16.mxu0 0
      %2286 = vmatpush1.bf16.msra.mxu0 %v2267
      %2287 = vmatprep.subr.bf16.mxu0 0
      %2288 = vmatpush1.bf16.msra.mxu0 %v2266
      %2289 = vmatprep.subr.bf16.mxu0 0
      %2290 = vmatpush1.bf16.msra.mxu0 %v2265
      %2291 = vmatprep.subr.bf16.mxu0 0
      %2292 = vmatpush1.bf16.msra.mxu0 %v2264
      %2293 = vmatprep.subr.bf16.mxu0 0
      %2294 = vmatpush1.bf16.msra.mxu0 %v2263
      %2295 = vmatprep.subr.bf16.mxu0 0
      %2296 = vmatpush2.bf16.msra.mxu0 0
      %2297 = vmatprep.subr.bf16.mxu0 0
      %2298 = vmatpush2.bf16.msra.mxu0 0
      %2299 = vmatprep.subr.bf16.mxu0 0
      %2300 = vmatpush2.bf16.msra.mxu0 0
      %2301 = vmatprep.subr.bf16.mxu0 0
      %2302 = vmatpush2.bf16.msra.mxu0 0
      %2303 = vmatprep.subr.bf16.mxu0 0
      %2304 = vmatpush2.bf16.msra.mxu0 0
      %2305 = vmatprep.subr.bf16.mxu0 0
      %2306 = vmatpush2.bf16.msra.mxu0 0
      %2307 = vmatprep.subr.bf16.mxu0 0
      %2308 = vmatpush2.bf16.msra.mxu0 0
      %2309 = vmatprep.subr.bf16.mxu0 0
      %2310 = vmatpush2.bf16.msra.mxu0 0
      %2311 = vmatprep.mubr.bf16.mxu0 0
      %2312 = vmatmul.mubr.bf16.gmra.mxu0 %v2207
      %v2313 = vpop.f32.mrf.mxu0
      %v2314 = vadd.f32 %v2229, %v2313
      %v2315 = vpop.f32.mrf.mxu0
      %v2316 = vpop.f32.mrf.mxu0
      %v2317 = vpop.f32.mrf.mxu0
      %2318 = vdwg.mxu0
      %v2319 = vadd.f32 %v729, %v2110
      %v2320 = vadd.f32 %v2319, %v2314
      %2321 = vst.msk [vmem:[%s720] sm:$0xff] %vm732, %v2320
      %p2322 = scmp.lt.s32.totalorder %s31, 1
      %s2323 = scalar_select %p2322, %s31, 1
      %s2324 = smul.addr %s2323, 8
      %s2325 = scalar_lea.vmem %s16, %s2324
      // Predicated region
      $region89: #{gpt_stage_full_forward.4} parent=83 // pred_check
        %p2326 = pneg %p458
      $region90: #{gpt_stage_full_forward.4} parent=83 // pred_check_branch
        %2328 = sbr.rel (%p2326) target = $region92
      $region91: #{gpt_stage_full_forward.4} parent=83 // pred_region
        _
      $region92: #{gpt_stage_full_forward.4} parent=83 // pred_fallthru
        _
    $region84: #{gpt_stage_full_forward.4} parent=5 // pred_fallthru
      _
    %p2329 = scmp.le.s32.totalorder 2, %s22
    // Predicated region
    $region93: #{gpt_stage_full_forward.4} parent=5 // pred_check
      %p2330 = pneg %p2329
    $region94: #{gpt_stage_full_forward.4} parent=5 // pred_check_branch
      %2332 = sbr.rel (%p2330) target = $region96
    $region95: #{gpt_stage_full_forward.4} parent=5 // pred_region
      %s2333 = ssub.s32 %s22, 2
      // Predicated region
      $region97: #{gpt_stage_full_forward.4} parent=95 // pred_check
        %p2334 = pneg %p464
      $region98: #{gpt_stage_full_forward.4} parent=95 // pred_check_branch
        %2336 = sbr.rel (%p2334) target = $region100
      $region99: #{gpt_stage_full_forward.4} parent=95 // pred_region
        %p2337 = scmp.lt.s32.totalorder %s33, 1
        %s2338 = scalar_select %p2337, %s33, 1
        %s2339 = smul.addr %s2338, 8
        %s2340 = scalar_lea.vmem %s16, %s2339
      $region100: #{gpt_stage_full_forward.4} parent=95 // pred_fallthru
        _
    $region96: #{gpt_stage_full_forward.4} parent=5 // pred_fallthru
      _
  $region6: #{gpt_stage_full_forward.4} parent=0 // loop_footer
    %s26 = sadd.s32 1, %s22
  $region7: #{gpt_stage_full_forward.4} parent=0 // loop_footer_branch
    %21 = sbr.rel target = $region3
  $region8: #{gpt_stage_full_forward.4} parent=0 // loop_exit
    _

</llo_original>
